<compile_context>
chip_gen: v7x
topology: tpu7x:2x2x1
jax: 0.10.0
libtpu: 0.0.40
codegen_flags: <defaults>
</compile_context>

<pallas_src>
import math
import numpy as np
import jax
import jax.numpy as jnp
from jax.experimental import pallas as pl
from jax.experimental.pallas import tpu as pltpu  # noqa: F401  (kept for TPU-specific tuning hooks)


# ----------------------------- hyper-parameters -----------------------------
class hp:
    encoder_hidden = 32
    variance_predictor_hidden = 32
    length_predictor_hidden = 32
    variance_predictor_head = 2
    length_predictor_head = 2
    fft_conv1d_filter_size = 64     # d_inner of the position-wise FFN
    n_bins = 16
    f0_min, f0_max = 40.0, 90.0
    energy_min, energy_max = 0.0, 1.0


N_HEAD = 2                      # same for all predictors here
H = hp.encoder_hidden
D_INNER = hp.fft_conv1d_filter_size
NEG_INF = -1e9

# packed parameter slabs per predictor
SLAB_ORDER = ("w_qkv", "w_o", "w_1", "w_2", "b_qkv", "b_1", "vec_h")
# vec_h rows: 0=bo  1=ln1_gamma  2=ln1_beta  3=b2  4=ln2_gamma  5=ln2_beta
#             6=wout (Linear(H,1) weight as a row)  7=bout (broadcast)


# ------------------------------- kernel helpers ------------------------------
def _layer_norm(x, g, b, eps=1e-5):
    mu = jnp.mean(x, axis=-1, keepdims=True)
    var = jnp.mean((x - mu) ** 2, axis=-1, keepdims=True)
    return (x - mu) * jax.lax.rsqrt(var + eps) * g + b


def _fft_block(x, attn_bias, nonpad_col, nonpad_lane,
               w_qkv, w_o, w_1, w_2, b_qkv, b_1, vec_h):
    """FFT block (fused-QKV MHA + FFN + 2x LayerNorm, masked) + Linear(H,1) head.

    x           : (BT, H)  f32   activations with positional encoding already added
    attn_bias   : (BT, BT) f32   0 where attention allowed (same batch, valid key), -1e9 else
    nonpad_col  : (BT, 1)  f32   1.0 for valid rows
    nonpad_lane : (1, BT)  f32   1.0 for valid positions (lane layout)
    weight slabs: bf16;  bias / LN / head vectors: f32
    returns     : (1, BT) f32    lane-dense, masked prediction row
    """
    BT, Hd = x.shape
    dk = Hd // N_HEAD
    scale = 1.0 / math.sqrt(dk)

    # ---- fused QKV projection: one (BT,H) x (H,3H) MXU matmul ----
    qkv = jnp.dot(x.astype(jnp.bfloat16), w_qkv,
                  preferred_element_type=jnp.float32) + b_qkv          # (BT, 3H)

    heads = []
    for h in range(N_HEAD):
        qh = qkv[:, h * dk:(h + 1) * dk]
        kh = qkv[:, Hd + h * dk:Hd + (h + 1) * dk]
        vh = qkv[:, 2 * Hd + h * dk:2 * Hd + (h + 1) * dk]
        # scores: contract over dk without explicit transpose
        s = jax.lax.dot_general(qh, kh, (((1,), (1,)), ((), ())),
                                preferred_element_type=jnp.float32) * scale
        s = s + attn_bias
        s = s - jnp.max(s, axis=-1, keepdims=True)
        p = jnp.exp(s)
        p = p * pl.reciprocal(jnp.sum(p, axis=-1, keepdims=True), approx=True)
        heads.append(jnp.dot(p.astype(jnp.bfloat16), vh.astype(jnp.bfloat16),
                             preferred_element_type=jnp.float32))      # (BT, dk)

    # concat heads on lanes -> single full-width output projection
    oh = jnp.concatenate(heads, axis=-1)                               # (BT, H)
    attn = jnp.dot(oh.astype(jnp.bfloat16), w_o,
                   preferred_element_type=jnp.float32) + vec_h[0:1, :]
    h1 = _layer_norm(x + attn, vec_h[1:2, :], vec_h[2:3, :]) * nonpad_col

    # ---- position-wise FFN ----
    f = jnp.dot(h1.astype(jnp.bfloat16), w_1,
                preferred_element_type=jnp.float32) + b_1
    f = jnp.maximum(f, 0.0)
    f = jnp.dot(f.astype(jnp.bfloat16), w_2,
                preferred_element_type=jnp.float32) + vec_h[3:4, :]
    h2 = _layer_norm(h1 + f, vec_h[4:5, :], vec_h[5:6, :]) * nonpad_col

    # ---- Linear(H,1) head, emitted lane-dense as (1, BT) + masked_fill(mask, 0) ----
    o = jax.lax.dot_general(vec_h[6:7, :], h2, (((1,), (1,)), ((), ())),
                            preferred_element_type=jnp.float32)        # (1, BT)
    o = o + vec_h[7:8, 0:1]
    return o * nonpad_lane


def _mask_helpers(seg_col, seg_lane):
    nonpad_col = (seg_col >= 0.0).astype(jnp.float32)       # (BT, 1)
    nonpad_lane = (seg_lane >= 0.0).astype(jnp.float32)     # (1, BT)
    attn_bias = jnp.where(seg_col == seg_lane, 0.0, NEG_INF)  # block-diag + key pad mask
    return attn_bias, nonpad_col, nonpad_lane


# ------------------------------- Pallas kernels ------------------------------
def _duration_kernel(x_ref, pe_ref, segc_ref, segl_ref,
                     wqkv_ref, wo_ref, w1_ref, w2_ref, bqkv_ref, b1_ref, vech_ref,
                     out_ref):
    BT, T = x_ref.shape[0], pe_ref.shape[0]
    B = BT // T
    pe = pe_ref[...]
    pe_bt = jnp.concatenate([pe] * B, axis=0) if B > 1 else pe
    x = x_ref[...] + pe_bt                                   # PE added in-kernel
    attn_bias, nonpad_col, nonpad_lane = _mask_helpers(segc_ref[...], segl_ref[...])
    out_ref[...] = _fft_block(x, attn_bias, nonpad_col, nonpad_lane,
                              wqkv_ref[...], wo_ref[...], w1_ref[...], w2_ref[...],
                              bqkv_ref[...], b1_ref[...], vech_ref[...])


def _pitch_energy_kernel(x_ref, pn_ref, pemb_ref, eemb_ref, pe_ref,
                         segc_ref, segl_ref,
                         wqkv_ref, wo_ref, w1_ref, w2_ref, bqkv_ref, b1_ref, vech_ref,
                         pitch_ref, energy_ref, xout_ref):
    """Fused: pitch predictor (on x+pn_emb) + ReLU, energy predictor (on x),
    and x_out = x + pitch_embedding + energy_embedding.  Weights stacked [pitch, energy]."""
    BT, T = x_ref.shape[0], pe_ref.shape[0]
    B = BT // T
    pe = pe_ref[...]
    pe_bt = jnp.concatenate([pe] * B, axis=0) if B > 1 else pe
    x = x_ref[...]                                           # (BT, H) f32
    attn_bias, nonpad_col, nonpad_lane = _mask_helpers(segc_ref[...], segl_ref[...])

    # pitch predictor on x + pitch_norm_embedding (PE added in-kernel), then ReLU
    p_row = _fft_block(x + pn_ref[...] + pe_bt, attn_bias, nonpad_col, nonpad_lane,
                       wqkv_ref[0], wo_ref[0], w1_ref[0], w2_ref[0],
                       bqkv_ref[0], b1_ref[0], vech_ref[0])
    pitch_ref[...] = jnp.maximum(p_row, 0.0)

    # energy predictor on x
    e_row = _fft_block(x + pe_bt, attn_bias, nonpad_col, nonpad_lane,
                       wqkv_ref[1], wo_ref[1], w1_ref[1], w2_ref[1],
                       bqkv_ref[1], b1_ref[1], vech_ref[1])
    energy_ref[...] = e_row

    # fused elementwise: x = x + pitch_embedding + energy_embedding
    xout_ref[...] = x + pemb_ref[...] + eemb_ref[...]


# ------------------------------- wrappers ------------------------------------
def _sinusoid_pe(T, d):
    pos = np.arange(T)[:, None]
    i = np.arange(d)[None, :]
    angle = pos / np.power(10000.0, 2 * (i // 2) / d)
    pe = np.zeros((T, d), dtype=np.float32)
    pe[:, 0::2] = np.sin(angle[:, 0::2])
    pe[:, 1::2] = np.cos(angle[:, 1::2])
    return jnp.asarray(pe)


def _segments(mask_bool):
    """Segment id per flattened position: batch index for valid, -1 for padding."""
    B, T = mask_bool.shape
    seg = jnp.broadcast_to(jnp.arange(B, dtype=jnp.float32)[:, None], (B, T))
    seg = jnp.where(mask_bool, -1.0, seg).reshape(B * T)
    return seg.reshape(B * T, 1), seg.reshape(1, B * T)


def duration_predictor_forward(x, src_mask, params):
    """LengthPredictor: Decoder(1 FFT block) + Linear(H,1) + masked_fill, one pallas_call."""
    B, T, Hd = x.shape
    seg_col, seg_lane = _segments(src_mask)
    out = pl.pallas_call(
        _duration_kernel,
        out_shape=jax.ShapeDtypeStruct((1, B * T), jnp.float32),
    )(x.reshape(B * T, Hd).astype(jnp.float32), _sinusoid_pe(T, Hd),
      seg_col, seg_lane, *[params[k] for k in SLAB_ORDER])
    return out.reshape(B, T)


def pitch_energy_forward(x_mel, mel_mask, pn_emb, pitch_emb, energy_emb,
                         pitch_params, energy_params):
    """One fused pallas_call: pitch predictor, energy predictor, and x + emb + emb."""
    B, M, Hd = x_mel.shape
    seg_col, seg_lane = _segments(mel_mask)
    stacked = [jnp.stack([pitch_params[k], energy_params[k]], axis=0)
               for k in SLAB_ORDER]
    pitch, energy, x_out = pl.pallas_call(
        _pitch_energy_kernel,
        out_shape=(jax.ShapeDtypeStruct((1, B * M), jnp.float32),
                   jax.ShapeDtypeStruct((1, B * M), jnp.float32),
                   jax.ShapeDtypeStruct((B * M, Hd), jnp.float32)),
    )(x_mel.reshape(B * M, Hd).astype(jnp.float32),
      pn_emb.reshape(B * M, Hd).astype(jnp.float32),
      pitch_emb.reshape(B * M, Hd).astype(jnp.float32),
      energy_emb.reshape(B * M, Hd).astype(jnp.float32),
      _sinusoid_pe(M, Hd), seg_col, seg_lane, *stacked)
    return pitch.reshape(B, M), energy.reshape(B, M), x_out.reshape(B, M, Hd)


def length_regulate(x, duration, max_len):
    """LengthRegulator (training path): repeat frame i duration[i] times, pad to max_len.
    Data-dependent ragged gather -> computed in plain JAX (glue)."""
    B, T, Hd = x.shape
    duration = duration.astype(jnp.int32)
    cum = jnp.cumsum(duration, axis=1)                       # (B, T)
    mel_len = cum[:, -1]                                     # (B,)
    pos = jnp.arange(max_len)[None, :]                       # (1, M)
    idx = jnp.sum(cum[:, None, :] <= pos[:, :, None], axis=-1)   # source index per mel frame
    idx = jnp.clip(idx, 0, T - 1)
    out = jnp.take_along_axis(x, idx[:, :, None], axis=1)    # (B, M, H)
    valid = (pos < mel_len[:, None]).astype(x.dtype)
    out = out * valid[:, :, None]                            # zero padding (utils.pad)
    return out, mel_len


# ------------------------------ parameter init --------------------------------
def init_predictor_params(key):
    ks = jax.random.split(key, 7)
    s = 0.05
    mat = lambda k, shape: jax.random.normal(k, shape, jnp.float32) * s
    wq, wk, wv, wo = (mat(ks[i], (H, H)) for i in range(4))
    w1 = mat(ks[4], (H, D_INNER))
    w2 = mat(ks[5], (D_INNER, H))
    wout = mat(ks[6], (H, 1))
    vec_h = jnp.concatenate([
        jnp.zeros((1, H), jnp.float32),   # bo
        jnp.ones((1, H), jnp.float32),    # ln1 gamma
        jnp.zeros((1, H), jnp.float32),   # ln1 beta
        jnp.zeros((1, H), jnp.float32),   # b2
        jnp.ones((1, H), jnp.float32),    # ln2 gamma
        jnp.zeros((1, H), jnp.float32),   # ln2 beta
        wout.T,                           # Linear(H,1) weight as a row
        jnp.zeros((1, H), jnp.float32),   # Linear(H,1) bias (broadcast)
    ], axis=0)
    return dict(
        w_qkv=jnp.concatenate([wq, wk, wv], axis=1).astype(jnp.bfloat16),  # (H, 3H)
        w_o=wo.astype(jnp.bfloat16),
        w_1=w1.astype(jnp.bfloat16),
        w_2=w2.astype(jnp.bfloat16),
        b_qkv=jnp.zeros((1, 3 * H), jnp.float32),
        b_1=jnp.zeros((1, D_INNER), jnp.float32),
        vec_h=vec_h,
    )


def init_variance_adaptor_params(key):
    k_dur, k_pitch, k_energy, k_e1, k_e2, k_e3 = jax.random.split(key, 6)
    s = 0.05
    n_emb = hp.n_bins + 2
    return dict(
        dur=init_predictor_params(k_dur),
        pitch=init_predictor_params(k_pitch),
        energy=init_predictor_params(k_energy),
        pitch_embedding=jax.random.normal(k_e1, (n_emb, hp.encoder_hidden), jnp.float32) * s,
        pitch_norm_embedding=jax.random.normal(k_e2, (n_emb, hp.variance_predictor_hidden), jnp.float32) * s,
        energy_embedding=jax.random.normal(k_e3, (n_emb, hp.encoder_hidden), jnp.float32) * s,
    )


# --------------------------- VarianceAdaptor.forward ---------------------------
def variance_adaptor_forward(params, x, src_mask, mel_mask,
                             duration_target, pitch_target, pitch_norm,
                             energy_target, max_len):
    # 1) duration predictor (LengthPredictor): Decoder + Linear + masked_fill
    log_duration_prediction = duration_predictor_forward(x, src_mask, params["dur"])

    # 2) length regulator (training path: duration_target given)
    x_mel, mel_len = length_regulate(x, duration_target, max_len)

    # 3) embedding lookups (glue): pitch_norm / bucketized pitch & energy targets
    pn_emb = jnp.take(params["pitch_norm_embedding"], pitch_norm, axis=0)     # (B, M, H)

    src_p = jnp.ceil((pitch_target - hp.f0_min) / (hp.f0_max - hp.f0_min) * hp.n_bins)
    src_p = jnp.clip(src_p.astype(jnp.int32), 0, hp.n_bins + 1)
    pitch_embedding = jnp.take(params["pitch_embedding"], src_p, axis=0)      # (B, M, H)

    src_e = jnp.ceil((energy_target - hp.energy_min) /
                     (hp.energy_max - hp.energy_min) * hp.n_bins)
    src_e = jnp.clip(src_e.astype(jnp.int32), 0, hp.n_bins + 1)
    energy_embedding = jnp.take(params["energy_embedding"], src_e, axis=0)    # (B, M, H)

    # 4) fused Pallas call: pitch predictor (+ReLU), energy predictor,
    #    and x = x + pitch_embedding + energy_embedding
    pitch_prediction, energy_prediction, x_out = pitch_energy_forward(
        x_mel, mel_mask, pn_emb, pitch_embedding, energy_embedding,
        params["pitch"], params["energy"])

    return (x_out, log_duration_prediction, pitch_prediction,
            energy_prediction, mel_len, mel_mask)


# ------------------------------------ main -------------------------------------
if __name__ == "__main__":
    key = jax.random.PRNGKey(0)
    k_par, k_x, k_pn, k_pt, k_et = jax.random.split(key, 5)

    B, T_SRC, MAX_LEN = 2, 8, 16
    params = init_variance_adaptor_params(k_par)

    x = jax.random.normal(k_x, (B, T_SRC, H), jnp.float32)
    src_lens = jnp.array([8, 6], jnp.int32)
    src_mask = jnp.arange(T_SRC)[None, :] >= src_lens[:, None]          # True = pad

    duration_target = jnp.array([[2, 1, 2, 1, 2, 1, 2, 1],
                                 [3, 2, 1, 2, 2, 1, 0, 0]], jnp.int32)  # sums: 12, 11
    mel_len_true = jnp.sum(duration_target, axis=1)
    mel_mask = jnp.arange(MAX_LEN)[None, :] >= mel_len_true[:, None]    # True = pad

    pitch_norm = jax.random.randint(k_pn, (B, MAX_LEN), 0, hp.n_bins + 2, jnp.int32)
    pitch_target = jax.random.uniform(k_pt, (B, MAX_LEN), jnp.float32,
                                      hp.f0_min, hp.f0_max)
    energy_target = jax.random.uniform(k_et, (B, MAX_LEN), jnp.float32,
                                       hp.energy_min, hp.energy_max)

    fwd = jax.jit(variance_adaptor_forward, static_argnames=("max_len",))
    outs = fwd(params, x, src_mask, mel_mask, duration_target,
               pitch_target, pitch_norm, energy_target, max_len=MAX_LEN)
    outs = jax.block_until_ready(outs)

    x_out, log_dur, pitch_pred, energy_pred, mel_len, mel_mask_out = outs
    assert x_out.shape == (B, MAX_LEN, H)
    assert log_dur.shape == (B, T_SRC)
    assert pitch_pred.shape == (B, MAX_LEN)
    assert energy_pred.shape == (B, MAX_LEN)
    assert mel_len.shape == (B,)
    assert bool(jnp.all(jnp.isfinite(x_out)))
    assert bool(jnp.all(jnp.isfinite(log_dur)))
    assert bool(jnp.all(pitch_pred >= 0.0))
    print("KERNEL_OK")
</pallas_src>

<mosaic_0001>
module attributes {stable_mosaic.version = 11 : i64} {
  func.func @_pitch_energy_kernel(%arg0: memref<32x32xf32, #tpu.memory_space<vmem>>, %arg1: memref<32x32xf32, #tpu.memory_space<vmem>>, %arg2: memref<32x32xf32, #tpu.memory_space<vmem>>, %arg3: memref<32x32xf32, #tpu.memory_space<vmem>>, %arg4: memref<16x32xf32, #tpu.memory_space<vmem>>, %arg5: memref<32x1xf32, #tpu.memory_space<vmem>>, %arg6: memref<1x32xf32, #tpu.memory_space<vmem>>, %arg7: memref<2x32x96xbf16, #tpu.memory_space<vmem>>, %arg8: memref<2x32x32xbf16, #tpu.memory_space<vmem>>, %arg9: memref<2x32x64xbf16, #tpu.memory_space<vmem>>, %arg10: memref<2x64x32xbf16, #tpu.memory_space<vmem>>, %arg11: memref<2x1x96xf32, #tpu.memory_space<vmem>>, %arg12: memref<2x1x64xf32, #tpu.memory_space<vmem>>, %arg13: memref<2x8x32xf32, #tpu.memory_space<vmem>>, %arg14: memref<1x32xf32, #tpu.memory_space<vmem>>, %arg15: memref<1x32xf32, #tpu.memory_space<vmem>>, %arg16: memref<32x32xf32, #tpu.memory_space<vmem>>) attributes {dimension_semantics = [], scalar_prefetch = 0 : i64, scratch_operands = 0 : i64, tpu.core_type = #tpu.core_type<tc>} {
    %c0 = arith.constant 0 : index
    %c0_0 = arith.constant 0 : index
    %0 = vector.load %arg4[%c0, %c0_0] : memref<16x32xf32, #tpu.memory_space<vmem>>, vector<16x32xf32>
    %1 = tpu.concatenate %0, %0 in 0 : vector<16x32xf32>, vector<16x32xf32> -> vector<32x32xf32>
    %c0_1 = arith.constant 0 : index
    %c0_2 = arith.constant 0 : index
    %2 = vector.load %arg0[%c0_1, %c0_2] : memref<32x32xf32, #tpu.memory_space<vmem>>, vector<32x32xf32>
    %c0_3 = arith.constant 0 : index
    %c0_4 = arith.constant 0 : index
    %3 = vector.load %arg5[%c0_3, %c0_4] : memref<32x1xf32, #tpu.memory_space<vmem>>, vector<32x1xf32>
    %c0_5 = arith.constant 0 : index
    %c0_6 = arith.constant 0 : index
    %4 = vector.load %arg6[%c0_5, %c0_6] : memref<1x32xf32, #tpu.memory_space<vmem>>, vector<1x32xf32>
    %cst = arith.constant 0.000000e+00 : f32
    %5 = vector.broadcast %cst : f32 to vector<32x1xf32>
    %6 = arith.cmpf oge, %3, %5 : vector<32x1xf32>
    %7 = arith.extui %6 : vector<32x1xi1> to vector<32x1xi32>
    %8 = arith.sitofp %7 : vector<32x1xi32> to vector<32x1xf32>
    %cst_7 = arith.constant 0.000000e+00 : f32
    %9 = vector.broadcast %cst_7 : f32 to vector<1x32xf32>
    %10 = arith.cmpf oge, %4, %9 : vector<1x32xf32>
    %11 = arith.extui %10 : vector<1x32xi1> to vector<1x32xi32>
    %12 = arith.sitofp %11 : vector<1x32xi32> to vector<1x32xf32>
    %13 = vector.broadcast %3 : vector<32x1xf32> to vector<32x32xf32>
    %14 = vector.broadcast %4 : vector<1x32xf32> to vector<32x32xf32>
    %15 = arith.cmpf oeq, %13, %14 : vector<32x32xf32>
    %cst_8 = arith.constant 0.000000e+00 : f32
    %cst_9 = arith.constant -1.000000e+09 : f32
    %16 = vector.broadcast %cst_8 : f32 to vector<32x32xf32>
    %17 = vector.broadcast %cst_9 : f32 to vector<32x32xf32>
    %18 = arith.select %15, %16, %17 : vector<32x32xi1>, vector<32x32xf32>
    %c0_10 = arith.constant 0 : index
    %c0_11 = arith.constant 0 : index
    %19 = vector.load %arg1[%c0_10, %c0_11] : memref<32x32xf32, #tpu.memory_space<vmem>>, vector<32x32xf32>
    %20 = arith.addf %2, %19 : vector<32x32xf32>
    %21 = arith.addf %20, %1 : vector<32x32xf32>
    %c0_12 = arith.constant 0 : index
    %c0_13 = arith.constant 0 : index
    %c0_14 = arith.constant 0 : index
    %22 = vector.load %arg7[%c0_12, %c0_13, %c0_14] : memref<2x32x96xbf16, #tpu.memory_space<vmem>>, vector<1x32x96xbf16>
    %23 = vector.shape_cast %22 : vector<1x32x96xbf16> to vector<32x96xbf16>
    %c0_15 = arith.constant 0 : index
    %c0_16 = arith.constant 0 : index
    %c0_17 = arith.constant 0 : index
    %24 = vector.load %arg8[%c0_15, %c0_16, %c0_17] : memref<2x32x32xbf16, #tpu.memory_space<vmem>>, vector<1x32x32xbf16>
    %25 = vector.shape_cast %24 : vector<1x32x32xbf16> to vector<32x32xbf16>
    %c0_18 = arith.constant 0 : index
    %c0_19 = arith.constant 0 : index
    %c0_20 = arith.constant 0 : index
    %26 = vector.load %arg9[%c0_18, %c0_19, %c0_20] : memref<2x32x64xbf16, #tpu.memory_space<vmem>>, vector<1x32x64xbf16>
    %27 = vector.shape_cast %26 : vector<1x32x64xbf16> to vector<32x64xbf16>
    %c0_21 = arith.constant 0 : index
    %c0_22 = arith.constant 0 : index
    %c0_23 = arith.constant 0 : index
    %28 = vector.load %arg10[%c0_21, %c0_22, %c0_23] : memref<2x64x32xbf16, #tpu.memory_space<vmem>>, vector<1x64x32xbf16>
    %29 = vector.shape_cast %28 : vector<1x64x32xbf16> to vector<64x32xbf16>
    %c0_24 = arith.constant 0 : index
    %c0_25 = arith.constant 0 : index
    %c0_26 = arith.constant 0 : index
    %30 = vector.load %arg11[%c0_24, %c0_25, %c0_26] : memref<2x1x96xf32, #tpu.memory_space<vmem>>, vector<1x1x96xf32>
    %31 = vector.shape_cast %30 : vector<1x1x96xf32> to vector<1x96xf32>
    %c0_27 = arith.constant 0 : index
    %c0_28 = arith.constant 0 : index
    %c0_29 = arith.constant 0 : index
    %32 = vector.load %arg12[%c0_27, %c0_28, %c0_29] : memref<2x1x64xf32, #tpu.memory_space<vmem>>, vector<1x1x64xf32>
    %33 = vector.shape_cast %32 : vector<1x1x64xf32> to vector<1x64xf32>
    %c0_30 = arith.constant 0 : index
    %c0_31 = arith.constant 0 : index
    %c0_32 = arith.constant 0 : index
    %34 = vector.load %arg13[%c0_30, %c0_31, %c0_32] : memref<2x8x32xf32, #tpu.memory_space<vmem>>, vector<1x8x32xf32>
    %35 = vector.shape_cast %34 : vector<1x8x32xf32> to vector<8x32xf32>
    %36 = arith.truncf %21 : vector<32x32xf32> to vector<32x32xbf16>
    %cst_33 = arith.constant dense<0.000000e+00> : vector<32x96xf32>
    %37 = tpu.matmul %36, %23, %cst_33 {dimension_numbers = #tpu.dot_dimension_numbers<[1], [0], [0], [1], [0, 0, 1, 1], [], []>} : vector<32x32xbf16>, vector<32x96xbf16>, vector<32x96xf32> -> vector<32x96xf32>
    %38 = vector.broadcast %31 : vector<1x96xf32> to vector<32x96xf32>
    %39 = arith.addf %37, %38 : vector<32x96xf32>
    %40 = vector.extract_strided_slice %39 {offsets = [0, 0], sizes = [32, 16], strides = [1, 1]} : vector<32x96xf32> to vector<32x16xf32>
    %41 = vector.extract_strided_slice %39 {offsets = [0, 32], sizes = [32, 16], strides = [1, 1]} : vector<32x96xf32> to vector<32x16xf32>
    %42 = vector.extract_strided_slice %39 {offsets = [0, 64], sizes = [32, 16], strides = [1, 1]} : vector<32x96xf32> to vector<32x16xf32>
    %cst_34 = arith.constant dense<0.000000e+00> : vector<32x32xf32>
    %43 = tpu.matmul %40, %41, %cst_34 {dimension_numbers = #tpu.dot_dimension_numbers<[1], [1], [0], [0], [0, 0, 1, 0], [], []>} : vector<32x16xf32>, vector<32x16xf32>, vector<32x32xf32> -> vector<32x32xf32>
    %cst_35 = arith.constant 2.500000e-01 : f32
    %44 = vector.broadcast %cst_35 : f32 to vector<32x32xf32>
    %45 = arith.mulf %43, %44 : vector<32x32xf32>
    %46 = arith.addf %45, %18 : vector<32x32xf32>
    %cst_36 = arith.constant dense<0xFF800000> : vector<32xf32>
    %47 = vector.multi_reduction <maximumf>, %46, %cst_36 [1] : vector<32x32xf32> to vector<32xf32>
    %48 = vector.shape_cast %47 : vector<32xf32> to vector<32x1xf32>
    %49 = vector.broadcast %48 : vector<32x1xf32> to vector<32x32xf32>
    %50 = arith.subf %46, %49 : vector<32x32xf32>
    %51 = math.exp %50 : vector<32x32xf32>
    %cst_37 = arith.constant dense<0.000000e+00> : vector<32xf32>
    %52 = vector.multi_reduction <add>, %51, %cst_37 [1] : vector<32x32xf32> to vector<32xf32>
    %53 = vector.shape_cast %52 : vector<32xf32> to vector<32x1xf32>
    %54 = tpu.reciprocal %53 {approx = true} : vector<32x1xf32> -> vector<32x1xf32>
    %55 = vector.broadcast %54 : vector<32x1xf32> to vector<32x32xf32>
    %56 = arith.mulf %51, %55 : vector<32x32xf32>
    %57 = arith.truncf %56 : vector<32x32xf32> to vector<32x32xbf16>
    %58 = arith.truncf %42 : vector<32x16xf32> to vector<32x16xbf16>
    %cst_38 = arith.constant dense<0.000000e+00> : vector<32x16xf32>
    %59 = tpu.matmul %57, %58, %cst_38 {dimension_numbers = #tpu.dot_dimension_numbers<[1], [0], [0], [1], [0, 0, 1, 1], [], []>} : vector<32x32xbf16>, vector<32x16xbf16>, vector<32x16xf32> -> vector<32x16xf32>
    %60 = vector.extract_strided_slice %39 {offsets = [0, 16], sizes = [32, 16], strides = [1, 1]} : vector<32x96xf32> to vector<32x16xf32>
    %61 = vector.extract_strided_slice %39 {offsets = [0, 48], sizes = [32, 16], strides = [1, 1]} : vector<32x96xf32> to vector<32x16xf32>
    %62 = vector.extract_strided_slice %39 {offsets = [0, 80], sizes = [32, 16], strides = [1, 1]} : vector<32x96xf32> to vector<32x16xf32>
    %cst_39 = arith.constant dense<0.000000e+00> : vector<32x32xf32>
    %63 = tpu.matmul %60, %61, %cst_39 {dimension_numbers = #tpu.dot_dimension_numbers<[1], [1], [0], [0], [0, 0, 1, 0], [], []>} : vector<32x16xf32>, vector<32x16xf32>, vector<32x32xf32> -> vector<32x32xf32>
    %cst_40 = arith.constant 2.500000e-01 : f32
    %64 = vector.broadcast %cst_40 : f32 to vector<32x32xf32>
    %65 = arith.mulf %63, %64 : vector<32x32xf32>
    %66 = arith.addf %65, %18 : vector<32x32xf32>
    %cst_41 = arith.constant dense<0xFF800000> : vector<32xf32>
    %67 = vector.multi_reduction <maximumf>, %66, %cst_41 [1] : vector<32x32xf32> to vector<32xf32>
    %68 = vector.shape_cast %67 : vector<32xf32> to vector<32x1xf32>
    %69 = vector.broadcast %68 : vector<32x1xf32> to vector<32x32xf32>
    %70 = arith.subf %66, %69 : vector<32x32xf32>
    %71 = math.exp %70 : vector<32x32xf32>
    %cst_42 = arith.constant dense<0.000000e+00> : vector<32xf32>
    %72 = vector.multi_reduction <add>, %71, %cst_42 [1] : vector<32x32xf32> to vector<32xf32>
    %73 = vector.shape_cast %72 : vector<32xf32> to vector<32x1xf32>
    %74 = tpu.reciprocal %73 {approx = true} : vector<32x1xf32> -> vector<32x1xf32>
    %75 = vector.broadcast %74 : vector<32x1xf32> to vector<32x32xf32>
    %76 = arith.mulf %71, %75 : vector<32x32xf32>
    %77 = arith.truncf %76 : vector<32x32xf32> to vector<32x32xbf16>
    %78 = arith.truncf %62 : vector<32x16xf32> to vector<32x16xbf16>
    %cst_43 = arith.constant dense<0.000000e+00> : vector<32x16xf32>
    %79 = tpu.matmul %77, %78, %cst_43 {dimension_numbers = #tpu.dot_dimension_numbers<[1], [0], [0], [1], [0, 0, 1, 1], [], []>} : vector<32x32xbf16>, vector<32x16xbf16>, vector<32x16xf32> -> vector<32x16xf32>
    %80 = tpu.concatenate %59, %79 in 1 : vector<32x16xf32>, vector<32x16xf32> -> vector<32x32xf32>
    %81 = arith.truncf %80 : vector<32x32xf32> to vector<32x32xbf16>
    %cst_44 = arith.constant dense<0.000000e+00> : vector<32x32xf32>
    %82 = tpu.matmul %81, %25, %cst_44 {dimension_numbers = #tpu.dot_dimension_numbers<[1], [0], [0], [1], [0, 0, 1, 1], [], []>} : vector<32x32xbf16>, vector<32x32xbf16>, vector<32x32xf32> -> vector<32x32xf32>
    %83 = vector.extract_strided_slice %35 {offsets = [0, 0], sizes = [1, 32], strides = [1, 1]} : vector<8x32xf32> to vector<1x32xf32>
    %84 = vector.broadcast %83 : vector<1x32xf32> to vector<32x32xf32>
    %85 = arith.addf %82, %84 : vector<32x32xf32>
    %86 = arith.addf %21, %85 : vector<32x32xf32>
    %87 = vector.extract_strided_slice %35 {offsets = [1, 0], sizes = [1, 32], strides = [1, 1]} : vector<8x32xf32> to vector<1x32xf32>
    %88 = vector.extract_strided_slice %35 {offsets = [2, 0], sizes = [1, 32], strides = [1, 1]} : vector<8x32xf32> to vector<1x32xf32>
    %cst_45 = arith.constant dense<0.000000e+00> : vector<32xf32>
    %89 = vector.multi_reduction <add>, %86, %cst_45 [1] : vector<32x32xf32> to vector<32xf32>
    %90 = vector.shape_cast %89 : vector<32xf32> to vector<32x1xf32>
    %cst_46 = arith.constant 3.200000e+01 : f32
    %91 = vector.broadcast %cst_46 : f32 to vector<32x1xf32>
    %92 = arith.divf %90, %91 : vector<32x1xf32>
    %93 = vector.broadcast %92 : vector<32x1xf32> to vector<32x32xf32>
    %94 = arith.subf %86, %93 : vector<32x32xf32>
    %95 = arith.mulf %94, %94 : vector<32x32xf32>
    %cst_47 = arith.constant dense<0.000000e+00> : vector<32xf32>
    %96 = vector.multi_reduction <add>, %95, %cst_47 [1] : vector<32x32xf32> to vector<32xf32>
    %97 = vector.shape_cast %96 : vector<32xf32> to vector<32x1xf32>
    %cst_48 = arith.constant 3.200000e+01 : f32
    %98 = vector.broadcast %cst_48 : f32 to vector<32x1xf32>
    %99 = arith.divf %97, %98 : vector<32x1xf32>
    %100 = vector.broadcast %92 : vector<32x1xf32> to vector<32x32xf32>
    %101 = arith.subf %86, %100 : vector<32x32xf32>
    %cst_49 = arith.constant 9.99999974E-6 : f32
    %102 = vector.broadcast %cst_49 : f32 to vector<32x1xf32>
    %103 = arith.addf %99, %102 : vector<32x1xf32>
    %104 = math.rsqrt %103 : vector<32x1xf32>
    %105 = vector.broadcast %104 : vector<32x1xf32> to vector<32x32xf32>
    %106 = arith.mulf %101, %105 : vector<32x32xf32>
    %107 = vector.broadcast %87 : vector<1x32xf32> to vector<32x32xf32>
    %108 = arith.mulf %106, %107 : vector<32x32xf32>
    %109 = vector.broadcast %88 : vector<1x32xf32> to vector<32x32xf32>
    %110 = arith.addf %108, %109 : vector<32x32xf32>
    %111 = vector.broadcast %8 : vector<32x1xf32> to vector<32x32xf32>
    %112 = arith.mulf %110, %111 : vector<32x32xf32>
    %113 = arith.truncf %112 : vector<32x32xf32> to vector<32x32xbf16>
    %cst_50 = arith.constant dense<0.000000e+00> : vector<32x64xf32>
    %114 = tpu.matmul %113, %27, %cst_50 {dimension_numbers = #tpu.dot_dimension_numbers<[1], [0], [0], [1], [0, 0, 1, 1], [], []>} : vector<32x32xbf16>, vector<32x64xbf16>, vector<32x64xf32> -> vector<32x64xf32>
    %115 = vector.broadcast %33 : vector<1x64xf32> to vector<32x64xf32>
    %116 = arith.addf %114, %115 : vector<32x64xf32>
    %cst_51 = arith.constant 0.000000e+00 : f32
    %117 = vector.broadcast %cst_51 : f32 to vector<32x64xf32>
    %118 = arith.maximumf %116, %117 : vector<32x64xf32>
    %119 = arith.truncf %118 : vector<32x64xf32> to vector<32x64xbf16>
    %cst_52 = arith.constant dense<0.000000e+00> : vector<32x32xf32>
    %120 = tpu.matmul %119, %29, %cst_52 {dimension_numbers = #tpu.dot_dimension_numbers<[1], [0], [0], [1], [0, 0, 1, 1], [], []>} : vector<32x64xbf16>, vector<64x32xbf16>, vector<32x32xf32> -> vector<32x32xf32>
    %121 = vector.extract_strided_slice %35 {offsets = [3, 0], sizes = [1, 32], strides = [1, 1]} : vector<8x32xf32> to vector<1x32xf32>
    %122 = vector.broadcast %121 : vector<1x32xf32> to vector<32x32xf32>
    %123 = arith.addf %120, %122 : vector<32x32xf32>
    %124 = arith.addf %112, %123 : vector<32x32xf32>
    %125 = vector.extract_strided_slice %35 {offsets = [4, 0], sizes = [1, 32], strides = [1, 1]} : vector<8x32xf32> to vector<1x32xf32>
    %126 = vector.extract_strided_slice %35 {offsets = [5, 0], sizes = [1, 32], strides = [1, 1]} : vector<8x32xf32> to vector<1x32xf32>
    %cst_53 = arith.constant dense<0.000000e+00> : vector<32xf32>
    %127 = vector.multi_reduction <add>, %124, %cst_53 [1] : vector<32x32xf32> to vector<32xf32>
    %128 = vector.shape_cast %127 : vector<32xf32> to vector<32x1xf32>
    %cst_54 = arith.constant 3.200000e+01 : f32
    %129 = vector.broadcast %cst_54 : f32 to vector<32x1xf32>
    %130 = arith.divf %128, %129 : vector<32x1xf32>
    %131 = vector.broadcast %130 : vector<32x1xf32> to vector<32x32xf32>
    %132 = arith.subf %124, %131 : vector<32x32xf32>
    %133 = arith.mulf %132, %132 : vector<32x32xf32>
    %cst_55 = arith.constant dense<0.000000e+00> : vector<32xf32>
    %134 = vector.multi_reduction <add>, %133, %cst_55 [1] : vector<32x32xf32> to vector<32xf32>
    %135 = vector.shape_cast %134 : vector<32xf32> to vector<32x1xf32>
    %cst_56 = arith.constant 3.200000e+01 : f32
    %136 = vector.broadcast %cst_56 : f32 to vector<32x1xf32>
    %137 = arith.divf %135, %136 : vector<32x1xf32>
    %138 = vector.broadcast %130 : vector<32x1xf32> to vector<32x32xf32>
    %139 = arith.subf %124, %138 : vector<32x32xf32>
    %cst_57 = arith.constant 9.99999974E-6 : f32
    %140 = vector.broadcast %cst_57 : f32 to vector<32x1xf32>
    %141 = arith.addf %137, %140 : vector<32x1xf32>
    %142 = math.rsqrt %141 : vector<32x1xf32>
    %143 = vector.broadcast %142 : vector<32x1xf32> to vector<32x32xf32>
    %144 = arith.mulf %139, %143 : vector<32x32xf32>
    %145 = vector.broadcast %125 : vector<1x32xf32> to vector<32x32xf32>
    %146 = arith.mulf %144, %145 : vector<32x32xf32>
    %147 = vector.broadcast %126 : vector<1x32xf32> to vector<32x32xf32>
    %148 = arith.addf %146, %147 : vector<32x32xf32>
    %149 = vector.broadcast %8 : vector<32x1xf32> to vector<32x32xf32>
    %150 = arith.mulf %148, %149 : vector<32x32xf32>
    %151 = vector.extract_strided_slice %35 {offsets = [6, 0], sizes = [1, 32], strides = [1, 1]} : vector<8x32xf32> to vector<1x32xf32>
    %cst_58 = arith.constant dense<0.000000e+00> : vector<1x32xf32>
    %152 = tpu.matmul %151, %150, %cst_58 {dimension_numbers = #tpu.dot_dimension_numbers<[1], [1], [0], [0], [0, 0, 1, 0], [], []>} : vector<1x32xf32>, vector<32x32xf32>, vector<1x32xf32> -> vector<1x32xf32>
    %153 = vector.extract_strided_slice %35 {offsets = [7, 0], sizes = [1, 1], strides = [1, 1]} : vector<8x32xf32> to vector<1x1xf32>
    %154 = vector.broadcast %153 : vector<1x1xf32> to vector<1x32xf32>
    %155 = arith.addf %152, %154 : vector<1x32xf32>
    %156 = arith.mulf %155, %12 : vector<1x32xf32>
    %cst_59 = arith.constant 0.000000e+00 : f32
    %157 = vector.broadcast %cst_59 : f32 to vector<1x32xf32>
    %158 = arith.maximumf %156, %157 : vector<1x32xf32>
    %c0_60 = arith.constant 0 : index
    %c0_61 = arith.constant 0 : index
    %159 = vector.load %arg14[%c0_60, %c0_61] : memref<1x32xf32, #tpu.memory_space<vmem>>, vector<1x32xf32>
    tpu.vector_store %arg14[%c0_60, %c0_61], %158 {strides = array<i32>} : memref<1x32xf32, #tpu.memory_space<vmem>>, vector<1x32xf32>,
    %160 = arith.addf %2, %1 : vector<32x32xf32>
    %c1 = arith.constant 1 : index
    %c0_62 = arith.constant 0 : index
    %c0_63 = arith.constant 0 : index
    %161 = vector.load %arg7[%c1, %c0_62, %c0_63] : memref<2x32x96xbf16, #tpu.memory_space<vmem>>, vector<1x32x96xbf16>
    %162 = vector.shape_cast %161 : vector<1x32x96xbf16> to vector<32x96xbf16>
    %c1_64 = arith.constant 1 : index
    %c0_65 = arith.constant 0 : index
    %c0_66 = arith.constant 0 : index
    %163 = vector.load %arg8[%c1_64, %c0_65, %c0_66] : memref<2x32x32xbf16, #tpu.memory_space<vmem>>, vector<1x32x32xbf16>
    %164 = vector.shape_cast %163 : vector<1x32x32xbf16> to vector<32x32xbf16>
    %c1_67 = arith.constant 1 : index
    %c0_68 = arith.constant 0 : index
    %c0_69 = arith.constant 0 : index
    %165 = vector.load %arg9[%c1_67, %c0_68, %c0_69] : memref<2x32x64xbf16, #tpu.memory_space<vmem>>, vector<1x32x64xbf16>
    %166 = vector.shape_cast %165 : vector<1x32x64xbf16> to vector<32x64xbf16>
    %c1_70 = arith.constant 1 : index
    %c0_71 = arith.constant 0 : index
    %c0_72 = arith.constant 0 : index
    %167 = vector.load %arg10[%c1_70, %c0_71, %c0_72] : memref<2x64x32xbf16, #tpu.memory_space<vmem>>, vector<1x64x32xbf16>
    %168 = vector.shape_cast %167 : vector<1x64x32xbf16> to vector<64x32xbf16>
    %c1_73 = arith.constant 1 : index
    %c0_74 = arith.constant 0 : index
    %c0_75 = arith.constant 0 : index
    %169 = vector.load %arg11[%c1_73, %c0_74, %c0_75] : memref<2x1x96xf32, #tpu.memory_space<vmem>>, vector<1x1x96xf32>
    %170 = vector.shape_cast %169 : vector<1x1x96xf32> to vector<1x96xf32>
    %c1_76 = arith.constant 1 : index
    %c0_77 = arith.constant 0 : index
    %c0_78 = arith.constant 0 : index
    %171 = vector.load %arg12[%c1_76, %c0_77, %c0_78] : memref<2x1x64xf32, #tpu.memory_space<vmem>>, vector<1x1x64xf32>
    %172 = vector.shape_cast %171 : vector<1x1x64xf32> to vector<1x64xf32>
    %c1_79 = arith.constant 1 : index
    %c0_80 = arith.constant 0 : index
    %c0_81 = arith.constant 0 : index
    %173 = vector.load %arg13[%c1_79, %c0_80, %c0_81] : memref<2x8x32xf32, #tpu.memory_space<vmem>>, vector<1x8x32xf32>
    %174 = vector.shape_cast %173 : vector<1x8x32xf32> to vector<8x32xf32>
    %175 = arith.truncf %160 : vector<32x32xf32> to vector<32x32xbf16>
    %cst_82 = arith.constant dense<0.000000e+00> : vector<32x96xf32>
    %176 = tpu.matmul %175, %162, %cst_82 {dimension_numbers = #tpu.dot_dimension_numbers<[1], [0], [0], [1], [0, 0, 1, 1], [], []>} : vector<32x32xbf16>, vector<32x96xbf16>, vector<32x96xf32> -> vector<32x96xf32>
    %177 = vector.broadcast %170 : vector<1x96xf32> to vector<32x96xf32>
    %178 = arith.addf %176, %177 : vector<32x96xf32>
    %179 = vector.extract_strided_slice %178 {offsets = [0, 0], sizes = [32, 16], strides = [1, 1]} : vector<32x96xf32> to vector<32x16xf32>
    %180 = vector.extract_strided_slice %178 {offsets = [0, 32], sizes = [32, 16], strides = [1, 1]} : vector<32x96xf32> to vector<32x16xf32>
    %181 = vector.extract_strided_slice %178 {offsets = [0, 64], sizes = [32, 16], strides = [1, 1]} : vector<32x96xf32> to vector<32x16xf32>
    %cst_83 = arith.constant dense<0.000000e+00> : vector<32x32xf32>
    %182 = tpu.matmul %179, %180, %cst_83 {dimension_numbers = #tpu.dot_dimension_numbers<[1], [1], [0], [0], [0, 0, 1, 0], [], []>} : vector<32x16xf32>, vector<32x16xf32>, vector<32x32xf32> -> vector<32x32xf32>
    %cst_84 = arith.constant 2.500000e-01 : f32
    %183 = vector.broadcast %cst_84 : f32 to vector<32x32xf32>
    %184 = arith.mulf %182, %183 : vector<32x32xf32>
    %185 = arith.addf %184, %18 : vector<32x32xf32>
    %cst_85 = arith.constant dense<0xFF800000> : vector<32xf32>
    %186 = vector.multi_reduction <maximumf>, %185, %cst_85 [1] : vector<32x32xf32> to vector<32xf32>
    %187 = vector.shape_cast %186 : vector<32xf32> to vector<32x1xf32>
    %188 = vector.broadcast %187 : vector<32x1xf32> to vector<32x32xf32>
    %189 = arith.subf %185, %188 : vector<32x32xf32>
    %190 = math.exp %189 : vector<32x32xf32>
    %cst_86 = arith.constant dense<0.000000e+00> : vector<32xf32>
    %191 = vector.multi_reduction <add>, %190, %cst_86 [1] : vector<32x32xf32> to vector<32xf32>
    %192 = vector.shape_cast %191 : vector<32xf32> to vector<32x1xf32>
    %193 = tpu.reciprocal %192 {approx = true} : vector<32x1xf32> -> vector<32x1xf32>
    %194 = vector.broadcast %193 : vector<32x1xf32> to vector<32x32xf32>
    %195 = arith.mulf %190, %194 : vector<32x32xf32>
    %196 = arith.truncf %195 : vector<32x32xf32> to vector<32x32xbf16>
    %197 = arith.truncf %181 : vector<32x16xf32> to vector<32x16xbf16>
    %cst_87 = arith.constant dense<0.000000e+00> : vector<32x16xf32>
    %198 = tpu.matmul %196, %197, %cst_87 {dimension_numbers = #tpu.dot_dimension_numbers<[1], [0], [0], [1], [0, 0, 1, 1], [], []>} : vector<32x32xbf16>, vector<32x16xbf16>, vector<32x16xf32> -> vector<32x16xf32>
    %199 = vector.extract_strided_slice %178 {offsets = [0, 16], sizes = [32, 16], strides = [1, 1]} : vector<32x96xf32> to vector<32x16xf32>
    %200 = vector.extract_strided_slice %178 {offsets = [0, 48], sizes = [32, 16], strides = [1, 1]} : vector<32x96xf32> to vector<32x16xf32>
    %201 = vector.extract_strided_slice %178 {offsets = [0, 80], sizes = [32, 16], strides = [1, 1]} : vector<32x96xf32> to vector<32x16xf32>
    %cst_88 = arith.constant dense<0.000000e+00> : vector<32x32xf32>
    %202 = tpu.matmul %199, %200, %cst_88 {dimension_numbers = #tpu.dot_dimension_numbers<[1], [1], [0], [0], [0, 0, 1, 0], [], []>} : vector<32x16xf32>, vector<32x16xf32>, vector<32x32xf32> -> vector<32x32xf32>
    %cst_89 = arith.constant 2.500000e-01 : f32
    %203 = vector.broadcast %cst_89 : f32 to vector<32x32xf32>
    %204 = arith.mulf %202, %203 : vector<32x32xf32>
    %205 = arith.addf %204, %18 : vector<32x32xf32>
    %cst_90 = arith.constant dense<0xFF800000> : vector<32xf32>
    %206 = vector.multi_reduction <maximumf>, %205, %cst_90 [1] : vector<32x32xf32> to vector<32xf32>
    %207 = vector.shape_cast %206 : vector<32xf32> to vector<32x1xf32>
    %208 = vector.broadcast %207 : vector<32x1xf32> to vector<32x32xf32>
    %209 = arith.subf %205, %208 : vector<32x32xf32>
    %210 = math.exp %209 : vector<32x32xf32>
    %cst_91 = arith.constant dense<0.000000e+00> : vector<32xf32>
    %211 = vector.multi_reduction <add>, %210, %cst_91 [1] : vector<32x32xf32> to vector<32xf32>
    %212 = vector.shape_cast %211 : vector<32xf32> to vector<32x1xf32>
    %213 = tpu.reciprocal %212 {approx = true} : vector<32x1xf32> -> vector<32x1xf32>
    %214 = vector.broadcast %213 : vector<32x1xf32> to vector<32x32xf32>
    %215 = arith.mulf %210, %214 : vector<32x32xf32>
    %216 = arith.truncf %215 : vector<32x32xf32> to vector<32x32xbf16>
    %217 = arith.truncf %201 : vector<32x16xf32> to vector<32x16xbf16>
    %cst_92 = arith.constant dense<0.000000e+00> : vector<32x16xf32>
    %218 = tpu.matmul %216, %217, %cst_92 {dimension_numbers = #tpu.dot_dimension_numbers<[1], [0], [0], [1], [0, 0, 1, 1], [], []>} : vector<32x32xbf16>, vector<32x16xbf16>, vector<32x16xf32> -> vector<32x16xf32>
    %219 = tpu.concatenate %198, %218 in 1 : vector<32x16xf32>, vector<32x16xf32> -> vector<32x32xf32>
    %220 = arith.truncf %219 : vector<32x32xf32> to vector<32x32xbf16>
    %cst_93 = arith.constant dense<0.000000e+00> : vector<32x32xf32>
    %221 = tpu.matmul %220, %164, %cst_93 {dimension_numbers = #tpu.dot_dimension_numbers<[1], [0], [0], [1], [0, 0, 1, 1], [], []>} : vector<32x32xbf16>, vector<32x32xbf16>, vector<32x32xf32> -> vector<32x32xf32>
    %222 = vector.extract_strided_slice %174 {offsets = [0, 0], sizes = [1, 32], strides = [1, 1]} : vector<8x32xf32> to vector<1x32xf32>
    %223 = vector.broadcast %222 : vector<1x32xf32> to vector<32x32xf32>
    %224 = arith.addf %221, %223 : vector<32x32xf32>
    %225 = arith.addf %160, %224 : vector<32x32xf32>
    %226 = vector.extract_strided_slice %174 {offsets = [1, 0], sizes = [1, 32], strides = [1, 1]} : vector<8x32xf32> to vector<1x32xf32>
    %227 = vector.extract_strided_slice %174 {offsets = [2, 0], sizes = [1, 32], strides = [1, 1]} : vector<8x32xf32> to vector<1x32xf32>
    %cst_94 = arith.constant dense<0.000000e+00> : vector<32xf32>
    %228 = vector.multi_reduction <add>, %225, %cst_94 [1] : vector<32x32xf32> to vector<32xf32>
    %229 = vector.shape_cast %228 : vector<32xf32> to vector<32x1xf32>
    %cst_95 = arith.constant 3.200000e+01 : f32
    %230 = vector.broadcast %cst_95 : f32 to vector<32x1xf32>
    %231 = arith.divf %229, %230 : vector<32x1xf32>
    %232 = vector.broadcast %231 : vector<32x1xf32> to vector<32x32xf32>
    %233 = arith.subf %225, %232 : vector<32x32xf32>
    %234 = arith.mulf %233, %233 : vector<32x32xf32>
    %cst_96 = arith.constant dense<0.000000e+00> : vector<32xf32>
    %235 = vector.multi_reduction <add>, %234, %cst_96 [1] : vector<32x32xf32> to vector<32xf32>
    %236 = vector.shape_cast %235 : vector<32xf32> to vector<32x1xf32>
    %cst_97 = arith.constant 3.200000e+01 : f32
    %237 = vector.broadcast %cst_97 : f32 to vector<32x1xf32>
    %238 = arith.divf %236, %237 : vector<32x1xf32>
    %239 = vector.broadcast %231 : vector<32x1xf32> to vector<32x32xf32>
    %240 = arith.subf %225, %239 : vector<32x32xf32>
    %cst_98 = arith.constant 9.99999974E-6 : f32
    %241 = vector.broadcast %cst_98 : f32 to vector<32x1xf32>
    %242 = arith.addf %238, %241 : vector<32x1xf32>
    %243 = math.rsqrt %242 : vector<32x1xf32>
    %244 = vector.broadcast %243 : vector<32x1xf32> to vector<32x32xf32>
    %245 = arith.mulf %240, %244 : vector<32x32xf32>
    %246 = vector.broadcast %226 : vector<1x32xf32> to vector<32x32xf32>
    %247 = arith.mulf %245, %246 : vector<32x32xf32>
    %248 = vector.broadcast %227 : vector<1x32xf32> to vector<32x32xf32>
    %249 = arith.addf %247, %248 : vector<32x32xf32>
    %250 = vector.broadcast %8 : vector<32x1xf32> to vector<32x32xf32>
    %251 = arith.mulf %249, %250 : vector<32x32xf32>
    %252 = arith.truncf %251 : vector<32x32xf32> to vector<32x32xbf16>
    %cst_99 = arith.constant dense<0.000000e+00> : vector<32x64xf32>
    %253 = tpu.matmul %252, %166, %cst_99 {dimension_numbers = #tpu.dot_dimension_numbers<[1], [0], [0], [1], [0, 0, 1, 1], [], []>} : vector<32x32xbf16>, vector<32x64xbf16>, vector<32x64xf32> -> vector<32x64xf32>
    %254 = vector.broadcast %172 : vector<1x64xf32> to vector<32x64xf32>
    %255 = arith.addf %253, %254 : vector<32x64xf32>
    %cst_100 = arith.constant 0.000000e+00 : f32
    %256 = vector.broadcast %cst_100 : f32 to vector<32x64xf32>
    %257 = arith.maximumf %255, %256 : vector<32x64xf32>
    %258 = arith.truncf %257 : vector<32x64xf32> to vector<32x64xbf16>
    %cst_101 = arith.constant dense<0.000000e+00> : vector<32x32xf32>
    %259 = tpu.matmul %258, %168, %cst_101 {dimension_numbers = #tpu.dot_dimension_numbers<[1], [0], [0], [1], [0, 0, 1, 1], [], []>} : vector<32x64xbf16>, vector<64x32xbf16>, vector<32x32xf32> -> vector<32x32xf32>
    %260 = vector.extract_strided_slice %174 {offsets = [3, 0], sizes = [1, 32], strides = [1, 1]} : vector<8x32xf32> to vector<1x32xf32>
    %261 = vector.broadcast %260 : vector<1x32xf32> to vector<32x32xf32>
    %262 = arith.addf %259, %261 : vector<32x32xf32>
    %263 = arith.addf %251, %262 : vector<32x32xf32>
    %264 = vector.extract_strided_slice %174 {offsets = [4, 0], sizes = [1, 32], strides = [1, 1]} : vector<8x32xf32> to vector<1x32xf32>
    %265 = vector.extract_strided_slice %174 {offsets = [5, 0], sizes = [1, 32], strides = [1, 1]} : vector<8x32xf32> to vector<1x32xf32>
    %cst_102 = arith.constant dense<0.000000e+00> : vector<32xf32>
    %266 = vector.multi_reduction <add>, %263, %cst_102 [1] : vector<32x32xf32> to vector<32xf32>
    %267 = vector.shape_cast %266 : vector<32xf32> to vector<32x1xf32>
    %cst_103 = arith.constant 3.200000e+01 : f32
    %268 = vector.broadcast %cst_103 : f32 to vector<32x1xf32>
    %269 = arith.divf %267, %268 : vector<32x1xf32>
    %270 = vector.broadcast %269 : vector<32x1xf32> to vector<32x32xf32>
    %271 = arith.subf %263, %270 : vector<32x32xf32>
    %272 = arith.mulf %271, %271 : vector<32x32xf32>
    %cst_104 = arith.constant dense<0.000000e+00> : vector<32xf32>
    %273 = vector.multi_reduction <add>, %272, %cst_104 [1] : vector<32x32xf32> to vector<32xf32>
    %274 = vector.shape_cast %273 : vector<32xf32> to vector<32x1xf32>
    %cst_105 = arith.constant 3.200000e+01 : f32
    %275 = vector.broadcast %cst_105 : f32 to vector<32x1xf32>
    %276 = arith.divf %274, %275 : vector<32x1xf32>
    %277 = vector.broadcast %269 : vector<32x1xf32> to vector<32x32xf32>
    %278 = arith.subf %263, %277 : vector<32x32xf32>
    %cst_106 = arith.constant 9.99999974E-6 : f32
    %279 = vector.broadcast %cst_106 : f32 to vector<32x1xf32>
    %280 = arith.addf %276, %279 : vector<32x1xf32>
    %281 = math.rsqrt %280 : vector<32x1xf32>
    %282 = vector.broadcast %281 : vector<32x1xf32> to vector<32x32xf32>
    %283 = arith.mulf %278, %282 : vector<32x32xf32>
    %284 = vector.broadcast %264 : vector<1x32xf32> to vector<32x32xf32>
    %285 = arith.mulf %283, %284 : vector<32x32xf32>
    %286 = vector.broadcast %265 : vector<1x32xf32> to vector<32x32xf32>
    %287 = arith.addf %285, %286 : vector<32x32xf32>
    %288 = vector.broadcast %8 : vector<32x1xf32> to vector<32x32xf32>
    %289 = arith.mulf %287, %288 : vector<32x32xf32>
    %290 = vector.extract_strided_slice %174 {offsets = [6, 0], sizes = [1, 32], strides = [1, 1]} : vector<8x32xf32> to vector<1x32xf32>
    %cst_107 = arith.constant dense<0.000000e+00> : vector<1x32xf32>
    %291 = tpu.matmul %290, %289, %cst_107 {dimension_numbers = #tpu.dot_dimension_numbers<[1], [1], [0], [0], [0, 0, 1, 0], [], []>} : vector<1x32xf32>, vector<32x32xf32>, vector<1x32xf32> -> vector<1x32xf32>
    %292 = vector.extract_strided_slice %174 {offsets = [7, 0], sizes = [1, 1], strides = [1, 1]} : vector<8x32xf32> to vector<1x1xf32>
    %293 = vector.broadcast %292 : vector<1x1xf32> to vector<1x32xf32>
    %294 = arith.addf %291, %293 : vector<1x32xf32>
    %295 = arith.mulf %294, %12 : vector<1x32xf32>
    %c0_108 = arith.constant 0 : index
    %c0_109 = arith.constant 0 : index
    %296 = vector.load %arg15[%c0_108, %c0_109] : memref<1x32xf32, #tpu.memory_space<vmem>>, vector<1x32xf32>
    tpu.vector_store %arg15[%c0_108, %c0_109], %295 {strides = array<i32>} : memref<1x32xf32, #tpu.memory_space<vmem>>, vector<1x32xf32>,
    %c0_110 = arith.constant 0 : index
    %c0_111 = arith.constant 0 : index
    %297 = vector.load %arg2[%c0_110, %c0_111] : memref<32x32xf32, #tpu.memory_space<vmem>>, vector<32x32xf32>
    %298 = arith.addf %2, %297 : vector<32x32xf32>
    %c0_112 = arith.constant 0 : index
    %c0_113 = arith.constant 0 : index
    %299 = vector.load %arg3[%c0_112, %c0_113] : memref<32x32xf32, #tpu.memory_space<vmem>>, vector<32x32xf32>
    %300 = arith.addf %298, %299 : vector<32x32xf32>
    %c0_114 = arith.constant 0 : index
    %c0_115 = arith.constant 0 : index
    %301 = vector.load %arg16[%c0_114, %c0_115] : memref<32x32xf32, #tpu.memory_space<vmem>>, vector<32x32xf32>
    tpu.vector_store %arg16[%c0_114, %c0_115], %300 {strides = array<i32>} : memref<32x32xf32, #tpu.memory_space<vmem>>, vector<32x32xf32>,
    return
  }
}

module attributes {stable_mosaic.version = 11 : i64} {
  func.func @_duration_kernel(%arg0: memref<16x32xf32, #tpu.memory_space<vmem>>, %arg1: memref<8x32xf32, #tpu.memory_space<vmem>>, %arg2: memref<16x1xf32, #tpu.memory_space<vmem>>, %arg3: memref<1x16xf32, #tpu.memory_space<vmem>>, %arg4: memref<32x96xbf16, #tpu.memory_space<vmem>>, %arg5: memref<32x32xbf16, #tpu.memory_space<vmem>>, %arg6: memref<32x64xbf16, #tpu.memory_space<vmem>>, %arg7: memref<64x32xbf16, #tpu.memory_space<vmem>>, %arg8: memref<1x96xf32, #tpu.memory_space<vmem>>, %arg9: memref<1x64xf32, #tpu.memory_space<vmem>>, %arg10: memref<8x32xf32, #tpu.memory_space<vmem>>, %arg11: memref<1x16xf32, #tpu.memory_space<vmem>>) attributes {dimension_semantics = [], scalar_prefetch = 0 : i64, scratch_operands = 0 : i64, tpu.core_type = #tpu.core_type<tc>} {
    %c0 = arith.constant 0 : index
    %c0_0 = arith.constant 0 : index
    %0 = vector.load %arg1[%c0, %c0_0] : memref<8x32xf32, #tpu.memory_space<vmem>>, vector<8x32xf32>
    %1 = tpu.concatenate %0, %0 in 0 : vector<8x32xf32>, vector<8x32xf32> -> vector<16x32xf32>
    %c0_1 = arith.constant 0 : index
    %c0_2 = arith.constant 0 : index
    %2 = vector.load %arg0[%c0_1, %c0_2] : memref<16x32xf32, #tpu.memory_space<vmem>>, vector<16x32xf32>
    %3 = arith.addf %2, %1 : vector<16x32xf32>
    %c0_3 = arith.constant 0 : index
    %c0_4 = arith.constant 0 : index
    %4 = vector.load %arg2[%c0_3, %c0_4] : memref<16x1xf32, #tpu.memory_space<vmem>>, vector<16x1xf32>
    %c0_5 = arith.constant 0 : index
    %c0_6 = arith.constant 0 : index
    %5 = vector.load %arg3[%c0_5, %c0_6] : memref<1x16xf32, #tpu.memory_space<vmem>>, vector<1x16xf32>
    %cst = arith.constant 0.000000e+00 : f32
    %6 = vector.broadcast %cst : f32 to vector<16x1xf32>
    %7 = arith.cmpf oge, %4, %6 : vector<16x1xf32>
    %8 = arith.extui %7 : vector<16x1xi1> to vector<16x1xi32>
    %9 = arith.sitofp %8 : vector<16x1xi32> to vector<16x1xf32>
    %cst_7 = arith.constant 0.000000e+00 : f32
    %10 = vector.broadcast %cst_7 : f32 to vector<1x16xf32>
    %11 = arith.cmpf oge, %5, %10 : vector<1x16xf32>
    %12 = arith.extui %11 : vector<1x16xi1> to vector<1x16xi32>
    %13 = arith.sitofp %12 : vector<1x16xi32> to vector<1x16xf32>
    %14 = vector.broadcast %4 : vector<16x1xf32> to vector<16x16xf32>
    %15 = vector.broadcast %5 : vector<1x16xf32> to vector<16x16xf32>
    %16 = arith.cmpf oeq, %14, %15 : vector<16x16xf32>
    %cst_8 = arith.constant 0.000000e+00 : f32
    %cst_9 = arith.constant -1.000000e+09 : f32
    %17 = vector.broadcast %cst_8 : f32 to vector<16x16xf32>
    %18 = vector.broadcast %cst_9 : f32 to vector<16x16xf32>
    %19 = arith.select %16, %17, %18 : vector<16x16xi1>, vector<16x16xf32>
    %c0_10 = arith.constant 0 : index
    %c0_11 = arith.constant 0 : index
    %20 = vector.load %arg4[%c0_10, %c0_11] : memref<32x96xbf16, #tpu.memory_space<vmem>>, vector<32x96xbf16>
    %c0_12 = arith.constant 0 : index
    %c0_13 = arith.constant 0 : index
    %21 = vector.load %arg5[%c0_12, %c0_13] : memref<32x32xbf16, #tpu.memory_space<vmem>>, vector<32x32xbf16>
    %c0_14 = arith.constant 0 : index
    %c0_15 = arith.constant 0 : index
    %22 = vector.load %arg6[%c0_14, %c0_15] : memref<32x64xbf16, #tpu.memory_space<vmem>>, vector<32x64xbf16>
    %c0_16 = arith.constant 0 : index
    %c0_17 = arith.constant 0 : index
    %23 = vector.load %arg7[%c0_16, %c0_17] : memref<64x32xbf16, #tpu.memory_space<vmem>>, vector<64x32xbf16>
    %c0_18 = arith.constant 0 : index
    %c0_19 = arith.constant 0 : index
    %24 = vector.load %arg8[%c0_18, %c0_19] : memref<1x96xf32, #tpu.memory_space<vmem>>, vector<1x96xf32>
    %c0_20 = arith.constant 0 : index
    %c0_21 = arith.constant 0 : index
    %25 = vector.load %arg9[%c0_20, %c0_21] : memref<1x64xf32, #tpu.memory_space<vmem>>, vector<1x64xf32>
    %c0_22 = arith.constant 0 : index
    %c0_23 = arith.constant 0 : index
    %26 = vector.load %arg10[%c0_22, %c0_23] : memref<8x32xf32, #tpu.memory_space<vmem>>, vector<8x32xf32>
    %27 = arith.truncf %3 : vector<16x32xf32> to vector<16x32xbf16>
    %cst_24 = arith.constant dense<0.000000e+00> : vector<16x96xf32>
    %28 = tpu.matmul %27, %20, %cst_24 {dimension_numbers = #tpu.dot_dimension_numbers<[1], [0], [0], [1], [0, 0, 1, 1], [], []>} : vector<16x32xbf16>, vector<32x96xbf16>, vector<16x96xf32> -> vector<16x96xf32>
    %29 = vector.broadcast %24 : vector<1x96xf32> to vector<16x96xf32>
    %30 = arith.addf %28, %29 : vector<16x96xf32>
    %31 = vector.extract_strided_slice %30 {offsets = [0, 0], sizes = [16, 16], strides = [1, 1]} : vector<16x96xf32> to vector<16x16xf32>
    %32 = vector.extract_strided_slice %30 {offsets = [0, 32], sizes = [16, 16], strides = [1, 1]} : vector<16x96xf32> to vector<16x16xf32>
    %33 = vector.extract_strided_slice %30 {offsets = [0, 64], sizes = [16, 16], strides = [1, 1]} : vector<16x96xf32> to vector<16x16xf32>
    %cst_25 = arith.constant dense<0.000000e+00> : vector<16x16xf32>
    %34 = tpu.matmul %31, %32, %cst_25 {dimension_numbers = #tpu.dot_dimension_numbers<[1], [1], [0], [0], [0, 0, 1, 0], [], []>} : vector<16x16xf32>, vector<16x16xf32>, vector<16x16xf32> -> vector<16x16xf32>
    %cst_26 = arith.constant 2.500000e-01 : f32
    %35 = vector.broadcast %cst_26 : f32 to vector<16x16xf32>
    %36 = arith.mulf %34, %35 : vector<16x16xf32>
    %37 = arith.addf %36, %19 : vector<16x16xf32>
    %cst_27 = arith.constant dense<0xFF800000> : vector<16xf32>
    %38 = vector.multi_reduction <maximumf>, %37, %cst_27 [1] : vector<16x16xf32> to vector<16xf32>
    %39 = vector.shape_cast %38 : vector<16xf32> to vector<16x1xf32>
    %40 = vector.broadcast %39 : vector<16x1xf32> to vector<16x16xf32>
    %41 = arith.subf %37, %40 : vector<16x16xf32>
    %42 = math.exp %41 : vector<16x16xf32>
    %cst_28 = arith.constant dense<0.000000e+00> : vector<16xf32>
    %43 = vector.multi_reduction <add>, %42, %cst_28 [1] : vector<16x16xf32> to vector<16xf32>
    %44 = vector.shape_cast %43 : vector<16xf32> to vector<16x1xf32>
    %45 = tpu.reciprocal %44 {approx = true} : vector<16x1xf32> -> vector<16x1xf32>
    %46 = vector.broadcast %45 : vector<16x1xf32> to vector<16x16xf32>
    %47 = arith.mulf %42, %46 : vector<16x16xf32>
    %48 = arith.truncf %47 : vector<16x16xf32> to vector<16x16xbf16>
    %49 = arith.truncf %33 : vector<16x16xf32> to vector<16x16xbf16>
    %cst_29 = arith.constant dense<0.000000e+00> : vector<16x16xf32>
    %50 = tpu.matmul %48, %49, %cst_29 {dimension_numbers = #tpu.dot_dimension_numbers<[1], [0], [0], [1], [0, 0, 1, 1], [], []>} : vector<16x16xbf16>, vector<16x16xbf16>, vector<16x16xf32> -> vector<16x16xf32>
    %51 = vector.extract_strided_slice %30 {offsets = [0, 16], sizes = [16, 16], strides = [1, 1]} : vector<16x96xf32> to vector<16x16xf32>
    %52 = vector.extract_strided_slice %30 {offsets = [0, 48], sizes = [16, 16], strides = [1, 1]} : vector<16x96xf32> to vector<16x16xf32>
    %53 = vector.extract_strided_slice %30 {offsets = [0, 80], sizes = [16, 16], strides = [1, 1]} : vector<16x96xf32> to vector<16x16xf32>
    %cst_30 = arith.constant dense<0.000000e+00> : vector<16x16xf32>
    %54 = tpu.matmul %51, %52, %cst_30 {dimension_numbers = #tpu.dot_dimension_numbers<[1], [1], [0], [0], [0, 0, 1, 0], [], []>} : vector<16x16xf32>, vector<16x16xf32>, vector<16x16xf32> -> vector<16x16xf32>
    %cst_31 = arith.constant 2.500000e-01 : f32
    %55 = vector.broadcast %cst_31 : f32 to vector<16x16xf32>
    %56 = arith.mulf %54, %55 : vector<16x16xf32>
    %57 = arith.addf %56, %19 : vector<16x16xf32>
    %cst_32 = arith.constant dense<0xFF800000> : vector<16xf32>
    %58 = vector.multi_reduction <maximumf>, %57, %cst_32 [1] : vector<16x16xf32> to vector<16xf32>
    %59 = vector.shape_cast %58 : vector<16xf32> to vector<16x1xf32>
    %60 = vector.broadcast %59 : vector<16x1xf32> to vector<16x16xf32>
    %61 = arith.subf %57, %60 : vector<16x16xf32>
    %62 = math.exp %61 : vector<16x16xf32>
    %cst_33 = arith.constant dense<0.000000e+00> : vector<16xf32>
    %63 = vector.multi_reduction <add>, %62, %cst_33 [1] : vector<16x16xf32> to vector<16xf32>
    %64 = vector.shape_cast %63 : vector<16xf32> to vector<16x1xf32>
    %65 = tpu.reciprocal %64 {approx = true} : vector<16x1xf32> -> vector<16x1xf32>
    %66 = vector.broadcast %65 : vector<16x1xf32> to vector<16x16xf32>
    %67 = arith.mulf %62, %66 : vector<16x16xf32>
    %68 = arith.truncf %67 : vector<16x16xf32> to vector<16x16xbf16>
    %69 = arith.truncf %53 : vector<16x16xf32> to vector<16x16xbf16>
    %cst_34 = arith.constant dense<0.000000e+00> : vector<16x16xf32>
    %70 = tpu.matmul %68, %69, %cst_34 {dimension_numbers = #tpu.dot_dimension_numbers<[1], [0], [0], [1], [0, 0, 1, 1], [], []>} : vector<16x16xbf16>, vector<16x16xbf16>, vector<16x16xf32> -> vector<16x16xf32>
    %71 = tpu.concatenate %50, %70 in 1 : vector<16x16xf32>, vector<16x16xf32> -> vector<16x32xf32>
    %72 = arith.truncf %71 : vector<16x32xf32> to vector<16x32xbf16>
    %cst_35 = arith.constant dense<0.000000e+00> : vector<16x32xf32>
    %73 = tpu.matmul %72, %21, %cst_35 {dimension_numbers = #tpu.dot_dimension_numbers<[1], [0], [0], [1], [0, 0, 1, 1], [], []>} : vector<16x32xbf16>, vector<32x32xbf16>, vector<16x32xf32> -> vector<16x32xf32>
    %74 = vector.extract_strided_slice %26 {offsets = [0, 0], sizes = [1, 32], strides = [1, 1]} : vector<8x32xf32> to vector<1x32xf32>
    %75 = vector.broadcast %74 : vector<1x32xf32> to vector<16x32xf32>
    %76 = arith.addf %73, %75 : vector<16x32xf32>
    %77 = arith.addf %3, %76 : vector<16x32xf32>
    %78 = vector.extract_strided_slice %26 {offsets = [1, 0], sizes = [1, 32], strides = [1, 1]} : vector<8x32xf32> to vector<1x32xf32>
    %79 = vector.extract_strided_slice %26 {offsets = [2, 0], sizes = [1, 32], strides = [1, 1]} : vector<8x32xf32> to vector<1x32xf32>
    %cst_36 = arith.constant dense<0.000000e+00> : vector<16xf32>
    %80 = vector.multi_reduction <add>, %77, %cst_36 [1] : vector<16x32xf32> to vector<16xf32>
    %81 = vector.shape_cast %80 : vector<16xf32> to vector<16x1xf32>
    %cst_37 = arith.constant 3.200000e+01 : f32
    %82 = vector.broadcast %cst_37 : f32 to vector<16x1xf32>
    %83 = arith.divf %81, %82 : vector<16x1xf32>
    %84 = vector.broadcast %83 : vector<16x1xf32> to vector<16x32xf32>
    %85 = arith.subf %77, %84 : vector<16x32xf32>
    %86 = arith.mulf %85, %85 : vector<16x32xf32>
    %cst_38 = arith.constant dense<0.000000e+00> : vector<16xf32>
    %87 = vector.multi_reduction <add>, %86, %cst_38 [1] : vector<16x32xf32> to vector<16xf32>
    %88 = vector.shape_cast %87 : vector<16xf32> to vector<16x1xf32>
    %cst_39 = arith.constant 3.200000e+01 : f32
    %89 = vector.broadcast %cst_39 : f32 to vector<16x1xf32>
    %90 = arith.divf %88, %89 : vector<16x1xf32>
    %91 = vector.broadcast %83 : vector<16x1xf32> to vector<16x32xf32>
    %92 = arith.subf %77, %91 : vector<16x32xf32>
    %cst_40 = arith.constant 9.99999974E-6 : f32
    %93 = vector.broadcast %cst_40 : f32 to vector<16x1xf32>
    %94 = arith.addf %90, %93 : vector<16x1xf32>
    %95 = math.rsqrt %94 : vector<16x1xf32>
    %96 = vector.broadcast %95 : vector<16x1xf32> to vector<16x32xf32>
    %97 = arith.mulf %92, %96 : vector<16x32xf32>
    %98 = vector.broadcast %78 : vector<1x32xf32> to vector<16x32xf32>
    %99 = arith.mulf %97, %98 : vector<16x32xf32>
    %100 = vector.broadcast %79 : vector<1x32xf32> to vector<16x32xf32>
    %101 = arith.addf %99, %100 : vector<16x32xf32>
    %102 = vector.broadcast %9 : vector<16x1xf32> to vector<16x32xf32>
    %103 = arith.mulf %101, %102 : vector<16x32xf32>
    %104 = arith.truncf %103 : vector<16x32xf32> to vector<16x32xbf16>
    %cst_41 = arith.constant dense<0.000000e+00> : vector<16x64xf32>
    %105 = tpu.matmul %104, %22, %cst_41 {dimension_numbers = #tpu.dot_dimension_numbers<[1], [0], [0], [1], [0, 0, 1, 1], [], []>} : vector<16x32xbf16>, vector<32x64xbf16>, vector<16x64xf32> -> vector<16x64xf32>
    %106 = vector.broadcast %25 : vector<1x64xf32> to vector<16x64xf32>
    %107 = arith.addf %105, %106 : vector<16x64xf32>
    %cst_42 = arith.constant 0.000000e+00 : f32
    %108 = vector.broadcast %cst_42 : f32 to vector<16x64xf32>
    %109 = arith.maximumf %107, %108 : vector<16x64xf32>
    %110 = arith.truncf %109 : vector<16x64xf32> to vector<16x64xbf16>
    %cst_43 = arith.constant dense<0.000000e+00> : vector<16x32xf32>
    %111 = tpu.matmul %110, %23, %cst_43 {dimension_numbers = #tpu.dot_dimension_numbers<[1], [0], [0], [1], [0, 0, 1, 1], [], []>} : vector<16x64xbf16>, vector<64x32xbf16>, vector<16x32xf32> -> vector<16x32xf32>
    %112 = vector.extract_strided_slice %26 {offsets = [3, 0], sizes = [1, 32], strides = [1, 1]} : vector<8x32xf32> to vector<1x32xf32>
    %113 = vector.broadcast %112 : vector<1x32xf32> to vector<16x32xf32>
    %114 = arith.addf %111, %113 : vector<16x32xf32>
    %115 = arith.addf %103, %114 : vector<16x32xf32>
    %116 = vector.extract_strided_slice %26 {offsets = [4, 0], sizes = [1, 32], strides = [1, 1]} : vector<8x32xf32> to vector<1x32xf32>
    %117 = vector.extract_strided_slice %26 {offsets = [5, 0], sizes = [1, 32], strides = [1, 1]} : vector<8x32xf32> to vector<1x32xf32>
    %cst_44 = arith.constant dense<0.000000e+00> : vector<16xf32>
    %118 = vector.multi_reduction <add>, %115, %cst_44 [1] : vector<16x32xf32> to vector<16xf32>
    %119 = vector.shape_cast %118 : vector<16xf32> to vector<16x1xf32>
    %cst_45 = arith.constant 3.200000e+01 : f32
    %120 = vector.broadcast %cst_45 : f32 to vector<16x1xf32>
    %121 = arith.divf %119, %120 : vector<16x1xf32>
    %122 = vector.broadcast %121 : vector<16x1xf32> to vector<16x32xf32>
    %123 = arith.subf %115, %122 : vector<16x32xf32>
    %124 = arith.mulf %123, %123 : vector<16x32xf32>
    %cst_46 = arith.constant dense<0.000000e+00> : vector<16xf32>
    %125 = vector.multi_reduction <add>, %124, %cst_46 [1] : vector<16x32xf32> to vector<16xf32>
    %126 = vector.shape_cast %125 : vector<16xf32> to vector<16x1xf32>
    %cst_47 = arith.constant 3.200000e+01 : f32
    %127 = vector.broadcast %cst_47 : f32 to vector<16x1xf32>
    %128 = arith.divf %126, %127 : vector<16x1xf32>
    %129 = vector.broadcast %121 : vector<16x1xf32> to vector<16x32xf32>
    %130 = arith.subf %115, %129 : vector<16x32xf32>
    %cst_48 = arith.constant 9.99999974E-6 : f32
    %131 = vector.broadcast %cst_48 : f32 to vector<16x1xf32>
    %132 = arith.addf %128, %131 : vector<16x1xf32>
    %133 = math.rsqrt %132 : vector<16x1xf32>
    %134 = vector.broadcast %133 : vector<16x1xf32> to vector<16x32xf32>
    %135 = arith.mulf %130, %134 : vector<16x32xf32>
    %136 = vector.broadcast %116 : vector<1x32xf32> to vector<16x32xf32>
    %137 = arith.mulf %135, %136 : vector<16x32xf32>
    %138 = vector.broadcast %117 : vector<1x32xf32> to vector<16x32xf32>
    %139 = arith.addf %137, %138 : vector<16x32xf32>
    %140 = vector.broadcast %9 : vector<16x1xf32> to vector<16x32xf32>
    %141 = arith.mulf %139, %140 : vector<16x32xf32>
    %142 = vector.extract_strided_slice %26 {offsets = [6, 0], sizes = [1, 32], strides = [1, 1]} : vector<8x32xf32> to vector<1x32xf32>
    %cst_49 = arith.constant dense<0.000000e+00> : vector<1x16xf32>
    %143 = tpu.matmul %142, %141, %cst_49 {dimension_numbers = #tpu.dot_dimension_numbers<[1], [1], [0], [0], [0, 0, 1, 0], [], []>} : vector<1x32xf32>, vector<16x32xf32>, vector<1x16xf32> -> vector<1x16xf32>
    %144 = vector.extract_strided_slice %26 {offsets = [7, 0], sizes = [1, 1], strides = [1, 1]} : vector<8x32xf32> to vector<1x1xf32>
    %145 = vector.broadcast %144 : vector<1x1xf32> to vector<1x16xf32>
    %146 = arith.addf %143, %145 : vector<1x16xf32>
    %147 = arith.mulf %146, %13 : vector<1x16xf32>
    %c0_50 = arith.constant 0 : index
    %c0_51 = arith.constant 0 : index
    %148 = vector.load %arg11[%c0_50, %c0_51] : memref<1x16xf32, #tpu.memory_space<vmem>>, vector<1x16xf32>
    tpu.vector_store %arg11[%c0_50, %c0_51], %147 {strides = array<i32>} : memref<1x16xf32, #tpu.memory_space<vmem>>, vector<1x16xf32>,
    return
  }
}

</mosaic_0001>

<llo_original>
// kernel: variance_adaptor_forward.2
$region0: #{variance_adaptor_forward.2}
  #allocation0 [shape = 'u32[]', space=smem, size = 0x4, offset = 0x4, fixed_abs, tag = 'smem constant byte address 0x4 - core index']
  #allocation1 [shape = 'u32[144,128]{1,0:T(1,128)}', space=vmem, size = 0x12000, scoped, tag = 'internal scratch']
  %s0 = inlined_call_operand.vmem [shape: f32[16,32], index: 0, kind: input, shape index: {}]
  %s1 = inlined_call_operand.vmem [shape: f32[8,32], index: 1, kind: input, shape index: {}]
  %s2 = inlined_call_operand.vmem [shape: f32[16,1], index: 2, kind: input, shape index: {}]
  %s3 = inlined_call_operand.vmem [shape: f32[1,16], index: 3, kind: input, shape index: {}]
  %s4 = inlined_call_operand.vmem [shape: bf16[32,96], index: 4, kind: input, shape index: {}]
  %s5 = inlined_call_operand.vmem [shape: bf16[32,32], index: 5, kind: input, shape index: {}]
  %s6 = inlined_call_operand.vmem [shape: bf16[32,64], index: 6, kind: input, shape index: {}]
  %s7 = inlined_call_operand.vmem [shape: bf16[64,32], index: 7, kind: input, shape index: {}]
  %s8 = inlined_call_operand.vmem [shape: f32[1,96], index: 8, kind: input, shape index: {}]
  %s9 = inlined_call_operand.vmem [shape: f32[1,64], index: 9, kind: input, shape index: {}]
  %s10 = inlined_call_operand.vmem [shape: f32[8,32], index: 10, kind: input, shape index: {}]
  %s11 = inlined_call_operand.vmem [shape: f32[1,16], index: 11, kind: output, shape index: {}]
  %s12 = sld [smem:[#allocation0]]
  $region54: #{variance_adaptor_forward.2} parent=0
    _
  %s14 = ssub.s32 1, %s12
  %s15 = scalar_select 0, %s14, %s12
  // Predicated region
  $region2: #{variance_adaptor_forward.2} parent=0 // pred_check
    _
  $region3: #{variance_adaptor_forward.2} parent=0 // pred_check_branch
    %17 = sbr.rel (0) target = $region5
  $region4: #{variance_adaptor_forward.2} parent=0 // pred_region
    _
  $region5: #{variance_adaptor_forward.2} parent=0 // pred_fallthru
    _
  // Predicated region
  $region6: #{variance_adaptor_forward.2} parent=0 // pred_check
    _
  $region7: #{variance_adaptor_forward.2} parent=0 // pred_check_branch
    %19 = sbr.rel (0) target = $region9
  $region8: #{variance_adaptor_forward.2} parent=0 // pred_region
    _
  $region9: #{variance_adaptor_forward.2} parent=0 // pred_fallthru
    _
  // Predicated region
  $region10: #{variance_adaptor_forward.2} parent=0 // pred_check
    _
  $region11: #{variance_adaptor_forward.2} parent=0 // pred_check_branch
    %21 = sbr.rel (0) target = $region13
  $region12: #{variance_adaptor_forward.2} parent=0 // pred_region
    _
  $region13: #{variance_adaptor_forward.2} parent=0 // pred_fallthru
    _
  // Predicated region
  $region14: #{variance_adaptor_forward.2} parent=0 // pred_check
    _
  $region15: #{variance_adaptor_forward.2} parent=0 // pred_check_branch
    %23 = sbr.rel (0) target = $region17
  $region16: #{variance_adaptor_forward.2} parent=0 // pred_region
    _
  $region17: #{variance_adaptor_forward.2} parent=0 // pred_fallthru
    _
  // Predicated region
  $region18: #{variance_adaptor_forward.2} parent=0 // pred_check
    _
  $region19: #{variance_adaptor_forward.2} parent=0 // pred_check_branch
    %25 = sbr.rel (0) target = $region21
  $region20: #{variance_adaptor_forward.2} parent=0 // pred_region
    _
  $region21: #{variance_adaptor_forward.2} parent=0 // pred_fallthru
    _
  // Predicated region
  $region22: #{variance_adaptor_forward.2} parent=0 // pred_check
    _
  $region23: #{variance_adaptor_forward.2} parent=0 // pred_check_branch
    %27 = sbr.rel (0) target = $region25
  $region24: #{variance_adaptor_forward.2} parent=0 // pred_region
    _
  $region25: #{variance_adaptor_forward.2} parent=0 // pred_fallthru
    _
  // Predicated region
  $region26: #{variance_adaptor_forward.2} parent=0 // pred_check
    _
  $region27: #{variance_adaptor_forward.2} parent=0 // pred_check_branch
    %29 = sbr.rel (0) target = $region29
  $region28: #{variance_adaptor_forward.2} parent=0 // pred_region
    _
  $region29: #{variance_adaptor_forward.2} parent=0 // pred_fallthru
    _
  // Predicated region
  $region30: #{variance_adaptor_forward.2} parent=0 // pred_check
    _
  $region31: #{variance_adaptor_forward.2} parent=0 // pred_check_branch
    %31 = sbr.rel (0) target = $region33
  $region32: #{variance_adaptor_forward.2} parent=0 // pred_region
    _
  $region33: #{variance_adaptor_forward.2} parent=0 // pred_fallthru
    _
  // Predicated region
  $region34: #{variance_adaptor_forward.2} parent=0 // pred_check
    _
  $region35: #{variance_adaptor_forward.2} parent=0 // pred_check_branch
    %33 = sbr.rel (0) target = $region37
  $region36: #{variance_adaptor_forward.2} parent=0 // pred_region
    _
  $region37: #{variance_adaptor_forward.2} parent=0 // pred_fallthru
    _
  // Predicated region
  $region38: #{variance_adaptor_forward.2} parent=0 // pred_check
    _
  $region39: #{variance_adaptor_forward.2} parent=0 // pred_check_branch
    %35 = sbr.rel (0) target = $region41
  $region40: #{variance_adaptor_forward.2} parent=0 // pred_region
    _
  $region41: #{variance_adaptor_forward.2} parent=0 // pred_fallthru
    _
  // Predicated region
  $region42: #{variance_adaptor_forward.2} parent=0 // pred_check
    _
  $region43: #{variance_adaptor_forward.2} parent=0 // pred_check_branch
    %37 = sbr.rel (0) target = $region45
  $region44: #{variance_adaptor_forward.2} parent=0 // pred_region
    _
  $region45: #{variance_adaptor_forward.2} parent=0 // pred_fallthru
    _
  %v39 = vld [vmem:[%s1] sm:$0xff]
  %v40 = vld [vmem:[%s0] sm:$0xff]
  %v41 = vld [vmem:[%s0 + $0x8] sm:$0xff]
  %v42 = vadd.f32 %v40, %v39
  %v43 = vadd.f32 %v41, %v39
  %v44 = vld [vmem:[%s2] sm:$0xff]
  %v45 = vld [vmem:[%s2 + $0x8] sm:$0xff]
  %v46 = vld [vmem:[%s3] sm:$0x1]
  %vm47 = vcmp.ge.f32.partialorder %v44, 0.0
  %vm48 = vcmp.ge.f32.partialorder %v45, 0.0
  %v49 = vsel %vm47, 1, 0
  %v50 = vsel %vm48, 1, 0
  %v51 = vcvt.s32.f32 %v49
  %v52 = vcvt.s32.f32 %v50
  %vm53 = vcmp.ge.f32.partialorder %v46, 0.0
  %v54 = vsel %vm53, 1, 0
  %v55 = vcvt.s32.f32 %v54
  %57 = vset.pattern.permute.xlu0 0
  %58 = vperm.xlu0 %57, %v44
  %v59 = vpop.permute.xlu0 %58
  %62 = vset.pattern.permute.xlu0 0
  %63 = vperm.xlu0 %62, %v45
  %v64 = vpop.permute.xlu0 %63
  %v67 = vlaneseq
  %v68 = vshrl.u32 %v67, 7
  %v69 = vsub.s32 0, %v68
  %v70 = vrot.slane %v46, %v69
  %vm72 = vcmp.eq.f32.partialorder %v59, %v70
  %vm73 = vcmp.eq.f32.partialorder %v64, %v70
  %v74 = vsel %vm72, 0.0, -1e+09
  %v75 = vsel %vm73, 0.0, -1e+09
  %v76 = vld [vmem:[%s4] sm:$0xf]
  %v77 = vld [vmem:[%s4 + $0x4] sm:$0xf]
  %v78 = vld [vmem:[%s4 + $0x8] sm:$0xf]
  %v79 = vld [vmem:[%s4 + $0xc] sm:$0xf]
  %v80 = vld [vmem:[%s5] sm:$0xf]
  %v81 = vld [vmem:[%s5 + $0x4] sm:$0xf]
  %v82 = vld [vmem:[%s5 + $0x8] sm:$0xf]
  %v83 = vld [vmem:[%s5 + $0xc] sm:$0xf]
  %v84 = vld [vmem:[%s6] sm:$0xf]
  %v85 = vld [vmem:[%s6 + $0x4] sm:$0xf]
  %v86 = vld [vmem:[%s6 + $0x8] sm:$0xf]
  %v87 = vld [vmem:[%s6 + $0xc] sm:$0xf]
  %v88 = vld [vmem:[%s7] sm:$0xf]
  %v89 = vld [vmem:[%s7 + $0x4] sm:$0xf]
  %v90 = vld [vmem:[%s7 + $0x8] sm:$0xf]
  %v91 = vld [vmem:[%s7 + $0xc] sm:$0xf]
  %v92 = vld [vmem:[%s7 + $0x10] sm:$0xf]
  %v93 = vld [vmem:[%s7 + $0x14] sm:$0xf]
  %v94 = vld [vmem:[%s7 + $0x18] sm:$0xf]
  %v95 = vld [vmem:[%s7 + $0x1c] sm:$0xf]
  %v96 = vld [vmem:[%s8] sm:$0x1]
  %v97 = vld [vmem:[%s9] sm:$0x1]
  %v98 = vld [vmem:[%s10] sm:$0xff]
  %v99 = vpack.c.bf16 %v43, %v42
  %v101 = vlaneseq
  %v102 = vshrl.u32 %v101, 7
  %v103 = vsub.s32 0, %v102
  %v104 = vrot.slane %v96, %v103
  %v110 = vunpack.c.l.b16 %v76
  %v111 = vunpack.c.l.b16 %v77
  %v112 = vunpack.c.l.b16 %v78
  %v113 = vunpack.c.l.b16 %v79
  %v114 = vpack.c.b16 %v111, %v110
  %v115 = vpack.c.b16 %v113, %v112
  %vm118 = vcmask 261120
  %v120 = vsel %vm118, %v99, 0
  %122 = vmatprep.subr.bf16.mxu0 0
  %123 = vmatpush1.bf16.msra.mxu0 %v114
  %124 = vmatprep.subr.bf16.mxu0 0
  %125 = vmatpush1.bf16.msra.mxu0 %v115
  %126 = vmatprep.subr.bf16.mxu0 0
  %127 = vmatpush1.bf16.msra.mxu0 0
  %128 = vmatprep.subr.bf16.mxu0 0
  %129 = vmatpush1.bf16.msra.mxu0 0
  %130 = vmatprep.subr.bf16.mxu0 0
  %131 = vmatpush1.bf16.msra.mxu0 0
  %132 = vmatprep.subr.bf16.mxu0 0
  %133 = vmatpush1.bf16.msra.mxu0 0
  %134 = vmatprep.subr.bf16.mxu0 0
  %135 = vmatpush1.bf16.msra.mxu0 0
  %136 = vmatprep.subr.bf16.mxu0 0
  %137 = vmatpush1.bf16.msra.mxu0 0
  %138 = vmatprep.subr.bf16.mxu0 0
  %139 = vmatpush1.bf16.msra.mxu0 0
  %140 = vmatprep.subr.bf16.mxu0 0
  %141 = vmatpush1.bf16.msra.mxu0 0
  %142 = vmatprep.subr.bf16.mxu0 0
  %143 = vmatpush1.bf16.msra.mxu0 0
  %144 = vmatprep.subr.bf16.mxu0 0
  %145 = vmatpush1.bf16.msra.mxu0 0
  %146 = vmatprep.subr.bf16.mxu0 0
  %147 = vmatpush1.bf16.msra.mxu0 0
  %148 = vmatprep.subr.bf16.mxu0 0
  %149 = vmatpush1.bf16.msra.mxu0 0
  %150 = vmatprep.subr.bf16.mxu0 0
  %151 = vmatpush1.bf16.msra.mxu0 0
  %152 = vmatprep.subr.bf16.mxu0 0
  %153 = vmatpush1.bf16.msra.mxu0 0
  %154 = vmatprep.mubr.bf16.mxu0 0
  %155 = vmatmul.mubr.bf16.gmra.mrb[0].mxu0 %v120
  %v156 = vpop.f32.mrb[0].mxu0
  %v157 = vadd.f32 %v104, %v156
  %v158 = vpop.f32.mrb[0].mxu0
  %v159 = vpop.f32.mrb[0].mxu0
  %v160 = vadd.f32 %v104, %v159
  %v161 = vpop.f32.mrb[0].mxu0
  %162 = vdwg.mxu0
  %165 = vrot.lane.b32.xlu0 %v157, 96
  %v166 = vpop.permute.xlu0 %165
  %167 = vrot.lane.b32.xlu0 %v160, 96
  %v168 = vpop.permute.xlu0 %167
  %vm169 = vcmask 130048
  %v170 = vsel %vm169, %v157, 0
  %v172 = vsel %vm169, %v160, 0
  %v174 = vsel %vm169, %v166, 0
  %v176 = vsel %vm169, %v168, 0
  %178 = vmatprep.subr.mxu0 0.0
  %179 = vmatpush1.xpose.msra.mxu0 %v174
  %180 = vmatprep.subr.mxu0 0.0
  %181 = vmatpush1.xpose.msra.mxu0 %v176
  %182 = vmatprep.subr.mxu0 0.0
  %183 = vmatpush1.xpose.msra.mxu0 0.0
  %184 = vmatprep.subr.mxu0 0.0
  %185 = vmatpush1.xpose.msra.mxu0 0.0
  %186 = vmatprep.subr.mxu0 0.0
  %187 = vmatpush1.xpose.msra.mxu0 0.0
  %188 = vmatprep.subr.mxu0 0.0
  %189 = vmatpush1.xpose.msra.mxu0 0.0
  %190 = vmatprep.subr.mxu0 0.0
  %191 = vmatpush1.xpose.msra.mxu0 0.0
  %192 = vmatprep.subr.mxu0 0.0
  %193 = vmatpush1.xpose.msra.mxu0 0.0
  %194 = vmatprep.subr.mxu0 0.0
  %195 = vmatpush1.xpose.msra.mxu0 0.0
  %196 = vmatprep.subr.mxu0 0.0
  %197 = vmatpush1.xpose.msra.mxu0 0.0
  %198 = vmatprep.subr.mxu0 0.0
  %199 = vmatpush1.xpose.msra.mxu0 0.0
  %200 = vmatprep.subr.mxu0 0.0
  %201 = vmatpush1.xpose.msra.mxu0 0.0
  %202 = vmatprep.subr.mxu0 0.0
  %203 = vmatpush1.xpose.msra.mxu0 0.0
  %204 = vmatprep.subr.mxu0 0.0
  %205 = vmatpush1.xpose.msra.mxu0 0.0
  %206 = vmatprep.subr.mxu0 0.0
  %207 = vmatpush1.xpose.msra.mxu0 0.0
  %208 = vmatprep.subr.mxu0 0.0
  %209 = vmatpush1.xpose.msra.mxu0 0.0
  %210 = vmatprep.subr.mxu0 0.0
  %211 = vmatpush1.xpose.msra.mxu0 0.0
  %212 = vmatprep.subr.mxu0 0.0
  %213 = vmatpush1.xpose.msra.mxu0 0.0
  %214 = vmatprep.subr.mxu0 0.0
  %215 = vmatpush1.xpose.msra.mxu0 0.0
  %216 = vmatprep.subr.mxu0 0.0
  %217 = vmatpush1.xpose.msra.mxu0 0.0
  %218 = vmatprep.subr.mxu0 0.0
  %219 = vmatpush1.xpose.msra.mxu0 0.0
  %220 = vmatprep.subr.mxu0 0.0
  %221 = vmatpush1.xpose.msra.mxu0 0.0
  %222 = vmatprep.subr.mxu0 0.0
  %223 = vmatpush1.xpose.msra.mxu0 0.0
  %224 = vmatprep.subr.mxu0 0.0
  %225 = vmatpush1.xpose.msra.mxu0 0.0
  %226 = vmatprep.subr.mxu0 0.0
  %227 = vmatpush1.xpose.msra.mxu0 0.0
  %228 = vmatprep.subr.mxu0 0.0
  %229 = vmatpush1.xpose.msra.mxu0 0.0
  %230 = vmatprep.subr.mxu0 0.0
  %231 = vmatpush1.xpose.msra.mxu0 0.0
  %232 = vmatprep.subr.mxu0 0.0
  %233 = vmatpush1.xpose.msra.mxu0 0.0
  %234 = vmatprep.subr.mxu0 0.0
  %235 = vmatpush1.xpose.msra.mxu0 0.0
  %236 = vmatprep.subr.mxu0 0.0
  %237 = vmatpush1.xpose.msra.mxu0 0.0
  %238 = vmatprep.subr.mxu0 0.0
  %239 = vmatpush1.xpose.msra.mxu0 0.0
  %240 = vmatprep.subr.mxu0 0.0
  %241 = vmatpush1.xpose.msra.mxu0 0.0
  %242 = vmatprep.mubr.f32.mxu0 0.0
  %243 = vmatmul.mubr.f32.gmra.mrb[0].mxu0 %v170
  %v244 = vpop.f32.mrb[0].mxu0
  %v245 = vadd.f32 0.0, %v244
  %v246 = vpop.f32.mrb[0].mxu0
  %247 = vmatprep.mubr.f32.mxu0 0.0
  %248 = vmatmul.mubr.f32.gmra.mrb[0].mxu0 %v172
  %v249 = vpop.f32.mrb[0].mxu0
  %v250 = vadd.f32 0.0, %v249
  %v251 = vpop.f32.mrb[0].mxu0
  %252 = vdwg.mxu0
  %v253 = vmul.f32 %v245, 0.25
  %v254 = vmul.f32 %v250, 0.25
  %v255 = vadd.f32 %v253, %v74
  %v256 = vadd.f32 %v254, %v75
  %v257 = vsel %vm169, %v255, -inf
  %258 = vmax.xlane.f32.xlu0 %v257
  %v259 = vpop.xlane.xlu0 %258
  %v260 = vsel %vm169, %v256, -inf
  %261 = vmax.xlane.f32.xlu0 %v260
  %v262 = vpop.xlane.xlu0 %261
  %v263 = vsub.f32 %v255, %v259
  %v264 = vsub.f32 %v256, %v262
  %v265 = vmul.f32 %v263, 1.442695
  %v266 = vpow.pop %v265
  %v267 = vmul.f32 %v264, 1.442695
  %v268 = vpow.pop %v267
  %v269 = vsel %vm169, %v266, 0.0
  %270 = vadd.xlane.f32.xlu0 %v269
  %v271 = vpop.xlane.xlu0 %270
  %v272 = vsel %vm169, %v268, 0.0
  %273 = vadd.xlane.f32.xlu0 %v272
  %v274 = vpop.xlane.xlu0 %273
  %v275 = vrcp.pop %v271
  %v276 = vrcp.pop %v274
  %v277 = vmul.f32 %v266, %v275
  %v278 = vmul.f32 %v268, %v276
  %v279 = vpack.c.bf16 %v278, %v277
  %v280 = vpack.c.bf16 %v160, %v157
  %282 = vrot.lane.b32.xlu0 %v280, 64
  %v283 = vpop.permute.xlu0 %282
  %v286 = vsel %vm169, %v279, 0
  %288 = vmatprep.subr.bf16.mxu0 0
  %289 = vmatpush1.bf16.msra.mxu0 %v283
  %290 = vmatprep.subr.bf16.mxu0 0
  %291 = vmatpush1.bf16.msra.mxu0 0
  %292 = vmatprep.subr.bf16.mxu0 0
  %293 = vmatpush1.bf16.msra.mxu0 0
  %294 = vmatprep.subr.bf16.mxu0 0
  %295 = vmatpush1.bf16.msra.mxu0 0
  %296 = vmatprep.subr.bf16.mxu0 0
  %297 = vmatpush1.bf16.msra.mxu0 0
  %298 = vmatprep.subr.bf16.mxu0 0
  %299 = vmatpush1.bf16.msra.mxu0 0
  %300 = vmatprep.subr.bf16.mxu0 0
  %301 = vmatpush1.bf16.msra.mxu0 0
  %302 = vmatprep.subr.bf16.mxu0 0
  %303 = vmatpush1.bf16.msra.mxu0 0
  %304 = vmatprep.subr.bf16.mxu0 0
  %305 = vmatpush1.bf16.msra.mxu0 0
  %306 = vmatprep.subr.bf16.mxu0 0
  %307 = vmatpush1.bf16.msra.mxu0 0
  %308 = vmatprep.subr.bf16.mxu0 0
  %309 = vmatpush1.bf16.msra.mxu0 0
  %310 = vmatprep.subr.bf16.mxu0 0
  %311 = vmatpush1.bf16.msra.mxu0 0
  %312 = vmatprep.subr.bf16.mxu0 0
  %313 = vmatpush1.bf16.msra.mxu0 0
  %314 = vmatprep.subr.bf16.mxu0 0
  %315 = vmatpush1.bf16.msra.mxu0 0
  %316 = vmatprep.subr.bf16.mxu0 0
  %317 = vmatpush1.bf16.msra.mxu0 0
  %318 = vmatprep.subr.bf16.mxu0 0
  %319 = vmatpush1.bf16.msra.mxu0 0
  %320 = vmatprep.mubr.bf16.mxu0 0
  %321 = vmatmul.mubr.bf16.gmra.mrb[0].mxu0 %v286
  %v322 = vpop.f32.mrb[0].mxu0
  %v323 = vadd.f32 0.0, %v322
  %v324 = vpop.f32.mrb[0].mxu0
  %v325 = vpop.f32.mrb[0].mxu0
  %v326 = vadd.f32 0.0, %v325
  %v327 = vpop.f32.mrb[0].mxu0
  %328 = vdwg.mxu0
  %329 = vrot.lane.b32.xlu0 %v157, 112
  %v330 = vpop.permute.xlu0 %329
  %331 = vrot.lane.b32.xlu0 %v160, 112
  %v332 = vpop.permute.xlu0 %331
  %333 = vrot.lane.b32.xlu0 %v157, 80
  %v334 = vpop.permute.xlu0 %333
  %335 = vrot.lane.b32.xlu0 %v160, 80
  %v336 = vpop.permute.xlu0 %335
  %v337 = vsel %vm169, %v330, 0
  %v339 = vsel %vm169, %v332, 0
  %v341 = vsel %vm169, %v334, 0
  %v343 = vsel %vm169, %v336, 0
  %345 = vmatprep.subr.mxu0 0.0
  %346 = vmatpush1.xpose.msra.mxu0 %v341
  %347 = vmatprep.subr.mxu0 0.0
  %348 = vmatpush1.xpose.msra.mxu0 %v343
  %349 = vmatprep.subr.mxu0 0.0
  %350 = vmatpush1.xpose.msra.mxu0 0.0
  %351 = vmatprep.subr.mxu0 0.0
  %352 = vmatpush1.xpose.msra.mxu0 0.0
  %353 = vmatprep.subr.mxu0 0.0
  %354 = vmatpush1.xpose.msra.mxu0 0.0
  %355 = vmatprep.subr.mxu0 0.0
  %356 = vmatpush1.xpose.msra.mxu0 0.0
  %357 = vmatprep.subr.mxu0 0.0
  %358 = vmatpush1.xpose.msra.mxu0 0.0
  %359 = vmatprep.subr.mxu0 0.0
  %360 = vmatpush1.xpose.msra.mxu0 0.0
  %361 = vmatprep.subr.mxu0 0.0
  %362 = vmatpush1.xpose.msra.mxu0 0.0
  %363 = vmatprep.subr.mxu0 0.0
  %364 = vmatpush1.xpose.msra.mxu0 0.0
  %365 = vmatprep.subr.mxu0 0.0
  %366 = vmatpush1.xpose.msra.mxu0 0.0
  %367 = vmatprep.subr.mxu0 0.0
  %368 = vmatpush1.xpose.msra.mxu0 0.0
  %369 = vmatprep.subr.mxu0 0.0
  %370 = vmatpush1.xpose.msra.mxu0 0.0
  %371 = vmatprep.subr.mxu0 0.0
  %372 = vmatpush1.xpose.msra.mxu0 0.0
  %373 = vmatprep.subr.mxu0 0.0
  %374 = vmatpush1.xpose.msra.mxu0 0.0
  %375 = vmatprep.subr.mxu0 0.0
  %376 = vmatpush1.xpose.msra.mxu0 0.0
  %377 = vmatprep.subr.mxu0 0.0
  %378 = vmatpush1.xpose.msra.mxu0 0.0
  %379 = vmatprep.subr.mxu0 0.0
  %380 = vmatpush1.xpose.msra.mxu0 0.0
  %381 = vmatprep.subr.mxu0 0.0
  %382 = vmatpush1.xpose.msra.mxu0 0.0
  %383 = vmatprep.subr.mxu0 0.0
  %384 = vmatpush1.xpose.msra.mxu0 0.0
  %385 = vmatprep.subr.mxu0 0.0
  %386 = vmatpush1.xpose.msra.mxu0 0.0
  %387 = vmatprep.subr.mxu0 0.0
  %388 = vmatpush1.xpose.msra.mxu0 0.0
  %389 = vmatprep.subr.mxu0 0.0
  %390 = vmatpush1.xpose.msra.mxu0 0.0
  %391 = vmatprep.subr.mxu0 0.0
  %392 = vmatpush1.xpose.msra.mxu0 0.0
  %393 = vmatprep.subr.mxu0 0.0
  %394 = vmatpush1.xpose.msra.mxu0 0.0
  %395 = vmatprep.subr.mxu0 0.0
  %396 = vmatpush1.xpose.msra.mxu0 0.0
  %397 = vmatprep.subr.mxu0 0.0
  %398 = vmatpush1.xpose.msra.mxu0 0.0
  %399 = vmatprep.subr.mxu0 0.0
  %400 = vmatpush1.xpose.msra.mxu0 0.0
  %401 = vmatprep.subr.mxu0 0.0
  %402 = vmatpush1.xpose.msra.mxu0 0.0
  %403 = vmatprep.subr.mxu0 0.0
  %404 = vmatpush1.xpose.msra.mxu0 0.0
  %405 = vmatprep.subr.mxu0 0.0
  %406 = vmatpush1.xpose.msra.mxu0 0.0
  %407 = vmatprep.subr.mxu0 0.0
  %408 = vmatpush1.xpose.msra.mxu0 0.0
  %409 = vmatprep.mubr.f32.mxu0 0.0
  %410 = vmatmul.mubr.f32.gmra.mrb[0].mxu0 %v337
  %v411 = vpop.f32.mrb[0].mxu0
  %v412 = vadd.f32 0.0, %v411
  %v413 = vpop.f32.mrb[0].mxu0
  %414 = vmatprep.mubr.f32.mxu0 0.0
  %415 = vmatmul.mubr.f32.gmra.mrb[0].mxu0 %v339
  %v416 = vpop.f32.mrb[0].mxu0
  %v417 = vadd.f32 0.0, %v416
  %v418 = vpop.f32.mrb[0].mxu0
  %419 = vdwg.mxu0
  %v420 = vmul.f32 %v412, 0.25
  %v421 = vmul.f32 %v417, 0.25
  %v422 = vadd.f32 %v420, %v74
  %v423 = vadd.f32 %v421, %v75
  %v424 = vsel %vm169, %v422, -inf
  %425 = vmax.xlane.f32.xlu0 %v424
  %v426 = vpop.xlane.xlu0 %425
  %v427 = vsel %vm169, %v423, -inf
  %428 = vmax.xlane.f32.xlu0 %v427
  %v429 = vpop.xlane.xlu0 %428
  %v430 = vsub.f32 %v422, %v426
  %v431 = vsub.f32 %v423, %v429
  %v432 = vmul.f32 %v430, 1.442695
  %v433 = vpow.pop %v432
  %v434 = vmul.f32 %v431, 1.442695
  %v435 = vpow.pop %v434
  %v436 = vsel %vm169, %v433, 0.0
  %437 = vadd.xlane.f32.xlu0 %v436
  %v438 = vpop.xlane.xlu0 %437
  %v439 = vsel %vm169, %v435, 0.0
  %440 = vadd.xlane.f32.xlu0 %v439
  %v441 = vpop.xlane.xlu0 %440
  %v442 = vrcp.pop %v438
  %v443 = vrcp.pop %v441
  %v444 = vmul.f32 %v433, %v442
  %v445 = vmul.f32 %v435, %v443
  %v446 = vpack.c.bf16 %v445, %v444
  %447 = vrot.lane.b32.xlu0 %v280, 48
  %v448 = vpop.permute.xlu0 %447
  %v451 = vsel %vm169, %v446, 0
  %453 = vmatprep.subr.bf16.mxu0 0
  %454 = vmatpush1.bf16.msra.mxu0 %v448
  %455 = vmatprep.subr.bf16.mxu0 0
  %456 = vmatpush1.bf16.msra.mxu0 0
  %457 = vmatprep.subr.bf16.mxu0 0
  %458 = vmatpush1.bf16.msra.mxu0 0
  %459 = vmatprep.subr.bf16.mxu0 0
  %460 = vmatpush1.bf16.msra.mxu0 0
  %461 = vmatprep.subr.bf16.mxu0 0
  %462 = vmatpush1.bf16.msra.mxu0 0
  %463 = vmatprep.subr.bf16.mxu0 0
  %464 = vmatpush1.bf16.msra.mxu0 0
  %465 = vmatprep.subr.bf16.mxu0 0
  %466 = vmatpush1.bf16.msra.mxu0 0
  %467 = vmatprep.subr.bf16.mxu0 0
  %468 = vmatpush1.bf16.msra.mxu0 0
  %469 = vmatprep.subr.bf16.mxu0 0
  %470 = vmatpush1.bf16.msra.mxu0 0
  %471 = vmatprep.subr.bf16.mxu0 0
  %472 = vmatpush1.bf16.msra.mxu0 0
  %473 = vmatprep.subr.bf16.mxu0 0
  %474 = vmatpush1.bf16.msra.mxu0 0
  %475 = vmatprep.subr.bf16.mxu0 0
  %476 = vmatpush1.bf16.msra.mxu0 0
  %477 = vmatprep.subr.bf16.mxu0 0
  %478 = vmatpush1.bf16.msra.mxu0 0
  %479 = vmatprep.subr.bf16.mxu0 0
  %480 = vmatpush1.bf16.msra.mxu0 0
  %481 = vmatprep.subr.bf16.mxu0 0
  %482 = vmatpush1.bf16.msra.mxu0 0
  %483 = vmatprep.subr.bf16.mxu0 0
  %484 = vmatpush1.bf16.msra.mxu0 0
  %485 = vmatprep.mubr.bf16.mxu0 0
  %486 = vmatmul.mubr.bf16.gmra.mrb[0].mxu0 %v451
  %v487 = vpop.f32.mrb[0].mxu0
  %v488 = vadd.f32 0.0, %v487
  %v489 = vpop.f32.mrb[0].mxu0
  %v490 = vpop.f32.mrb[0].mxu0
  %v491 = vadd.f32 0.0, %v490
  %v492 = vpop.f32.mrb[0].mxu0
  %493 = vdwg.mxu0
  %496 = vrot.lane.b32.xlu0 %v488, 16
  %v497 = vpop.permute.xlu0 %496
  %498 = vrot.lane.b32.xlu0 %v491, 16
  %v499 = vpop.permute.xlu0 %498
  %v502 = vsel %vm169, %v323, %v497
  %v503 = vsel %vm169, %v326, %v499
  %v504 = vpack.c.bf16 %v503, %v502
  %v505 = vlaneseq
  %v506 = vshrl.u32 %v505, 7
  %v507 = vsub.s32 0, %v506
  %v508 = vrot.slane %v98, %v507
  %v513 = vunpack.c.l.b16 %v80
  %v514 = vunpack.c.l.b16 %v81
  %v515 = vunpack.c.l.b16 %v82
  %v516 = vunpack.c.l.b16 %v83
  %v517 = vpack.c.b16 %v514, %v513
  %v518 = vpack.c.b16 %v516, %v515
  %v522 = vsel %vm118, %v504, 0
  %524 = vmatprep.subr.bf16.mxu0 0
  %525 = vmatpush1.bf16.msra.mxu0 %v517
  %526 = vmatprep.subr.bf16.mxu0 0
  %527 = vmatpush1.bf16.msra.mxu0 %v518
  %528 = vmatprep.subr.bf16.mxu0 0
  %529 = vmatpush1.bf16.msra.mxu0 0
  %530 = vmatprep.subr.bf16.mxu0 0
  %531 = vmatpush1.bf16.msra.mxu0 0
  %532 = vmatprep.subr.bf16.mxu0 0
  %533 = vmatpush1.bf16.msra.mxu0 0
  %534 = vmatprep.subr.bf16.mxu0 0
  %535 = vmatpush1.bf16.msra.mxu0 0
  %536 = vmatprep.subr.bf16.mxu0 0
  %537 = vmatpush1.bf16.msra.mxu0 0
  %538 = vmatprep.subr.bf16.mxu0 0
  %539 = vmatpush1.bf16.msra.mxu0 0
  %540 = vmatprep.subr.bf16.mxu0 0
  %541 = vmatpush1.bf16.msra.mxu0 0
  %542 = vmatprep.subr.bf16.mxu0 0
  %543 = vmatpush1.bf16.msra.mxu0 0
  %544 = vmatprep.subr.bf16.mxu0 0
  %545 = vmatpush1.bf16.msra.mxu0 0
  %546 = vmatprep.subr.bf16.mxu0 0
  %547 = vmatpush1.bf16.msra.mxu0 0
  %548 = vmatprep.subr.bf16.mxu0 0
  %549 = vmatpush1.bf16.msra.mxu0 0
  %550 = vmatprep.subr.bf16.mxu0 0
  %551 = vmatpush1.bf16.msra.mxu0 0
  %552 = vmatprep.subr.bf16.mxu0 0
  %553 = vmatpush1.bf16.msra.mxu0 0
  %554 = vmatprep.subr.bf16.mxu0 0
  %555 = vmatpush1.bf16.msra.mxu0 0
  %556 = vmatprep.mubr.bf16.mxu0 0
  %557 = vmatmul.mubr.bf16.gmra.mrb[0].mxu0 %v522
  %v558 = vpop.f32.mrb[0].mxu0
  %v559 = vadd.f32 %v508, %v558
  %v560 = vpop.f32.mrb[0].mxu0
  %v561 = vpop.f32.mrb[0].mxu0
  %v562 = vadd.f32 %v508, %v561
  %v563 = vpop.f32.mrb[0].mxu0
  %564 = vdwg.mxu0
  %v565 = vadd.f32 %v42, %v559
  %v566 = vadd.f32 %v43, %v562
  %v567 = vsel %vm118, %v565, 0.0
  %568 = vadd.xlane.f32.xlu0 %v567
  %v569 = vpop.xlane.xlu0 %568
  %v570 = vsel %vm118, %v566, 0.0
  %571 = vadd.xlane.f32.xlu0 %v570
  %v572 = vpop.xlane.xlu0 %571
  %v573 = vrcp.pop 32.0
  %v574 = vmul.f32 %v569, %v573
  %v575 = vmul.f32 %v572, %v573
  %v576 = vsub.f32 %v565, %v574
  %v577 = vsub.f32 %v566, %v575
  %v578 = vmul.f32 %v576, %v576
  %v579 = vmul.f32 %v577, %v577
  %v580 = vsel %vm118, %v578, 0.0
  %581 = vadd.xlane.f32.xlu0 %v580
  %v582 = vpop.xlane.xlu0 %581
  %v583 = vsel %vm118, %v579, 0.0
  %584 = vadd.xlane.f32.xlu0 %v583
  %v585 = vpop.xlane.xlu0 %584
  %v586 = vmul.f32 %v582, %v573
  %v587 = vmul.f32 %v585, %v573
  %v588 = vadd.f32 %v586, 1e-05
  %v589 = vadd.f32 %v587, 1e-05
  %v590 = vrsqrt.pop %v588
  %v591 = vrsqrt.pop %v589
  %v592 = vmul.f32 %v576, %v590
  %v593 = vmul.f32 %v577, %v591
  %v594 = vlaneseq
  %v595 = vshrl.u32 %v594, 7
  %v596 = vsub.s32 1, %v595
  %v597 = vrot.slane %v98, %v596
  %v598 = vmul.f32 %v592, %v597
  %v599 = vmul.f32 %v593, %v597
  %v600 = vlaneseq
  %v601 = vshrl.u32 %v600, 7
  %v602 = vsub.s32 2, %v601
  %v603 = vrot.slane %v98, %v602
  %v604 = vadd.f32 %v598, %v603
  %v605 = vadd.f32 %v599, %v603
  %607 = vset.pattern.permute.xlu0 0
  %608 = vperm.xlu0 %607, %v51
  %v609 = vpop.permute.xlu0 %608
  %612 = vset.pattern.permute.xlu0 0
  %613 = vperm.xlu0 %612, %v52
  %v614 = vpop.permute.xlu0 %613
  %v616 = vmul.f32 %v604, %v609
  %v617 = vmul.f32 %v605, %v614
  %v618 = vpack.c.bf16 %v617, %v616
  %v620 = vlaneseq
  %v621 = vshrl.u32 %v620, 7
  %v622 = vsub.s32 0, %v621
  %v623 = vrot.slane %v97, %v622
  %v629 = vunpack.c.l.b16 %v84
  %v630 = vunpack.c.l.b16 %v85
  %v631 = vunpack.c.l.b16 %v86
  %v632 = vunpack.c.l.b16 %v87
  %v633 = vpack.c.b16 %v630, %v629
  %v634 = vpack.c.b16 %v632, %v631
  %v638 = vsel %vm118, %v618, 0
  %640 = vmatprep.subr.bf16.mxu0 0
  %641 = vmatpush1.bf16.msra.mxu0 %v633
  %642 = vmatprep.subr.bf16.mxu0 0
  %643 = vmatpush1.bf16.msra.mxu0 %v634
  %644 = vmatprep.subr.bf16.mxu0 0
  %645 = vmatpush1.bf16.msra.mxu0 0
  %646 = vmatprep.subr.bf16.mxu0 0
  %647 = vmatpush1.bf16.msra.mxu0 0
  %648 = vmatprep.subr.bf16.mxu0 0
  %649 = vmatpush1.bf16.msra.mxu0 0
  %650 = vmatprep.subr.bf16.mxu0 0
  %651 = vmatpush1.bf16.msra.mxu0 0
  %652 = vmatprep.subr.bf16.mxu0 0
  %653 = vmatpush1.bf16.msra.mxu0 0
  %654 = vmatprep.subr.bf16.mxu0 0
  %655 = vmatpush1.bf16.msra.mxu0 0
  %656 = vmatprep.subr.bf16.mxu0 0
  %657 = vmatpush1.bf16.msra.mxu0 0
  %658 = vmatprep.subr.bf16.mxu0 0
  %659 = vmatpush1.bf16.msra.mxu0 0
  %660 = vmatprep.subr.bf16.mxu0 0
  %661 = vmatpush1.bf16.msra.mxu0 0
  %662 = vmatprep.subr.bf16.mxu0 0
  %663 = vmatpush1.bf16.msra.mxu0 0
  %664 = vmatprep.subr.bf16.mxu0 0
  %665 = vmatpush1.bf16.msra.mxu0 0
  %666 = vmatprep.subr.bf16.mxu0 0
  %667 = vmatpush1.bf16.msra.mxu0 0
  %668 = vmatprep.subr.bf16.mxu0 0
  %669 = vmatpush1.bf16.msra.mxu0 0
  %670 = vmatprep.subr.bf16.mxu0 0
  %671 = vmatpush1.bf16.msra.mxu0 0
  %672 = vmatprep.mubr.bf16.mxu0 0
  %673 = vmatmul.mubr.bf16.gmra.mrb[0].mxu0 %v638
  %v674 = vpop.f32.mrb[0].mxu0
  %v675 = vadd.f32 %v623, %v674
  %v676 = vpop.f32.mrb[0].mxu0
  %v677 = vpop.f32.mrb[0].mxu0
  %v678 = vadd.f32 %v623, %v677
  %v679 = vpop.f32.mrb[0].mxu0
  %680 = vdwg.mxu0
  %v681 = vmax.f32 %v675, 0.0
  %v682 = vmax.f32 %v678, 0.0
  %v683 = vpack.c.bf16 %v682, %v681
  %v684 = vlaneseq
  %v685 = vshrl.u32 %v684, 7
  %v686 = vsub.s32 3, %v685
  %v687 = vrot.slane %v98, %v686
  %v696 = vunpack.c.l.b16 %v88
  %v697 = vunpack.c.l.b16 %v89
  %v698 = vunpack.c.l.b16 %v90
  %v699 = vunpack.c.l.b16 %v91
  %v700 = vunpack.c.l.b16 %v92
  %v701 = vunpack.c.l.b16 %v93
  %v702 = vunpack.c.l.b16 %v94
  %v703 = vunpack.c.l.b16 %v95
  %v704 = vpack.c.b16 %v697, %v696
  %v705 = vpack.c.b16 %v699, %v698
  %v706 = vpack.c.b16 %v701, %v700
  %v707 = vpack.c.b16 %v703, %v702
  %vm712 = vcmask 523264
  %v714 = vsel %vm712, %v683, 0
  %716 = vmatprep.subr.bf16.mxu0 0
  %717 = vmatpush1.bf16.msra.mxu0 %v704
  %718 = vmatprep.subr.bf16.mxu0 0
  %719 = vmatpush1.bf16.msra.mxu0 %v705
  %720 = vmatprep.subr.bf16.mxu0 0
  %721 = vmatpush1.bf16.msra.mxu0 %v706
  %722 = vmatprep.subr.bf16.mxu0 0
  %723 = vmatpush1.bf16.msra.mxu0 %v707
  %724 = vmatprep.subr.bf16.mxu0 0
  %725 = vmatpush1.bf16.msra.mxu0 0
  %726 = vmatprep.subr.bf16.mxu0 0
  %727 = vmatpush1.bf16.msra.mxu0 0
  %728 = vmatprep.subr.bf16.mxu0 0
  %729 = vmatpush1.bf16.msra.mxu0 0
  %730 = vmatprep.subr.bf16.mxu0 0
  %731 = vmatpush1.bf16.msra.mxu0 0
  %732 = vmatprep.subr.bf16.mxu0 0
  %733 = vmatpush1.bf16.msra.mxu0 0
  %734 = vmatprep.subr.bf16.mxu0 0
  %735 = vmatpush1.bf16.msra.mxu0 0
  %736 = vmatprep.subr.bf16.mxu0 0
  %737 = vmatpush1.bf16.msra.mxu0 0
  %738 = vmatprep.subr.bf16.mxu0 0
  %739 = vmatpush1.bf16.msra.mxu0 0
  %740 = vmatprep.subr.bf16.mxu0 0
  %741 = vmatpush1.bf16.msra.mxu0 0
  %742 = vmatprep.subr.bf16.mxu0 0
  %743 = vmatpush1.bf16.msra.mxu0 0
  %744 = vmatprep.subr.bf16.mxu0 0
  %745 = vmatpush1.bf16.msra.mxu0 0
  %746 = vmatprep.subr.bf16.mxu0 0
  %747 = vmatpush1.bf16.msra.mxu0 0
  %748 = vmatprep.mubr.bf16.mxu0 0
  %749 = vmatmul.mubr.bf16.gmra.mrb[0].mxu0 %v714
  %v750 = vpop.f32.mrb[0].mxu0
  %v751 = vadd.f32 %v687, %v750
  %v752 = vpop.f32.mrb[0].mxu0
  %v753 = vpop.f32.mrb[0].mxu0
  %v754 = vadd.f32 %v687, %v753
  %v755 = vpop.f32.mrb[0].mxu0
  %756 = vdwg.mxu0
  %v757 = vadd.f32 %v616, %v751
  %v758 = vadd.f32 %v617, %v754
  %v759 = vsel %vm118, %v757, 0.0
  %760 = vadd.xlane.f32.xlu0 %v759
  %v761 = vpop.xlane.xlu0 %760
  %v762 = vsel %vm118, %v758, 0.0
  %763 = vadd.xlane.f32.xlu0 %v762
  %v764 = vpop.xlane.xlu0 %763
  %v765 = vmul.f32 %v761, %v573
  %v766 = vmul.f32 %v764, %v573
  %v767 = vsub.f32 %v757, %v765
  %v768 = vsub.f32 %v758, %v766
  %v769 = vmul.f32 %v767, %v767
  %v770 = vmul.f32 %v768, %v768
  %v771 = vsel %vm118, %v769, 0.0
  %772 = vadd.xlane.f32.xlu0 %v771
  %v773 = vpop.xlane.xlu0 %772
  %v774 = vsel %vm118, %v770, 0.0
  %775 = vadd.xlane.f32.xlu0 %v774
  %v776 = vpop.xlane.xlu0 %775
  %v777 = vmul.f32 %v773, %v573
  %v778 = vmul.f32 %v776, %v573
  %v779 = vadd.f32 %v777, 1e-05
  %v780 = vadd.f32 %v778, 1e-05
  %v781 = vrsqrt.pop %v779
  %v782 = vrsqrt.pop %v780
  %v783 = vmul.f32 %v767, %v781
  %v784 = vmul.f32 %v768, %v782
  %v785 = vlaneseq
  %v786 = vshrl.u32 %v785, 7
  %v787 = vsub.s32 4, %v786
  %v788 = vrot.slane %v98, %v787
  %v789 = vmul.f32 %v783, %v788
  %v790 = vmul.f32 %v784, %v788
  %v791 = vlaneseq
  %v792 = vshrl.u32 %v791, 7
  %v793 = vsub.s32 5, %v792
  %v794 = vrot.slane %v98, %v793
  %v795 = vadd.f32 %v789, %v794
  %v796 = vadd.f32 %v790, %v794
  %v797 = vmul.f32 %v795, %v609
  %v798 = vmul.f32 %v796, %v614
  %800 = vset.pattern.permute.xlu0 0
  %801 = vperm.xlu0 %800, %v98
  %v802 = vpop.permute.xlu0 %801
  %v803 = vrot.slane %v98, 6
  %v804 = vrot.slane %v802, 7
  %v806 = vsel %vm118, %v803, 0
  %v809 = vsel %vm118, %v797, 0
  %v812 = vsel %vm118, %v798, 0
  %814 = vmatprep.subr.mxu0 0.0
  %815 = vmatpush1.xpose.msra.mxu0 %v809
  %816 = vmatprep.subr.mxu0 0.0
  %817 = vmatpush1.xpose.msra.mxu0 %v812
  %818 = vmatprep.subr.mxu0 0.0
  %819 = vmatpush1.xpose.msra.mxu0 0.0
  %820 = vmatprep.subr.mxu0 0.0
  %821 = vmatpush1.xpose.msra.mxu0 0.0
  %822 = vmatprep.subr.mxu0 0.0
  %823 = vmatpush1.xpose.msra.mxu0 0.0
  %824 = vmatprep.subr.mxu0 0.0
  %825 = vmatpush1.xpose.msra.mxu0 0.0
  %826 = vmatprep.subr.mxu0 0.0
  %827 = vmatpush1.xpose.msra.mxu0 0.0
  %828 = vmatprep.subr.mxu0 0.0
  %829 = vmatpush1.xpose.msra.mxu0 0.0
  %830 = vmatprep.subr.mxu0 0.0
  %831 = vmatpush1.xpose.msra.mxu0 0.0
  %832 = vmatprep.subr.mxu0 0.0
  %833 = vmatpush1.xpose.msra.mxu0 0.0
  %834 = vmatprep.subr.mxu0 0.0
  %835 = vmatpush1.xpose.msra.mxu0 0.0
  %836 = vmatprep.subr.mxu0 0.0
  %837 = vmatpush1.xpose.msra.mxu0 0.0
  %838 = vmatprep.subr.mxu0 0.0
  %839 = vmatpush1.xpose.msra.mxu0 0.0
  %840 = vmatprep.subr.mxu0 0.0
  %841 = vmatpush1.xpose.msra.mxu0 0.0
  %842 = vmatprep.subr.mxu0 0.0
  %843 = vmatpush1.xpose.msra.mxu0 0.0
  %844 = vmatprep.subr.mxu0 0.0
  %845 = vmatpush1.xpose.msra.mxu0 0.0
  %846 = vmatprep.subr.mxu0 0.0
  %847 = vmatpush1.xpose.msra.mxu0 0.0
  %848 = vmatprep.subr.mxu0 0.0
  %849 = vmatpush1.xpose.msra.mxu0 0.0
  %850 = vmatprep.subr.mxu0 0.0
  %851 = vmatpush1.xpose.msra.mxu0 0.0
  %852 = vmatprep.subr.mxu0 0.0
  %853 = vmatpush1.xpose.msra.mxu0 0.0
  %854 = vmatprep.subr.mxu0 0.0
  %855 = vmatpush1.xpose.msra.mxu0 0.0
  %856 = vmatprep.subr.mxu0 0.0
  %857 = vmatpush1.xpose.msra.mxu0 0.0
  %858 = vmatprep.subr.mxu0 0.0
  %859 = vmatpush1.xpose.msra.mxu0 0.0
  %860 = vmatprep.subr.mxu0 0.0
  %861 = vmatpush1.xpose.msra.mxu0 0.0
  %862 = vmatprep.subr.mxu0 0.0
  %863 = vmatpush1.xpose.msra.mxu0 0.0
  %864 = vmatprep.subr.mxu0 0.0
  %865 = vmatpush1.xpose.msra.mxu0 0.0
  %866 = vmatprep.subr.mxu0 0.0
  %867 = vmatpush1.xpose.msra.mxu0 0.0
  %868 = vmatprep.subr.mxu0 0.0
  %869 = vmatpush1.xpose.msra.mxu0 0.0
  %870 = vmatprep.subr.mxu0 0.0
  %871 = vmatpush1.xpose.msra.mxu0 0.0
  %872 = vmatprep.subr.mxu0 0.0
  %873 = vmatpush1.xpose.msra.mxu0 0.0
  %874 = vmatprep.subr.mxu0 0.0
  %875 = vmatpush1.xpose.msra.mxu0 0.0
  %876 = vmatprep.subr.mxu0 0.0
  %877 = vmatpush1.xpose.msra.mxu0 0.0
  %878 = vmatprep.mubr.f32.mxu0 0.0
  %879 = vmatmul.mubr.f32.gmra.mrb[0].mxu0 %v806
  %v880 = vpop.f32.mrb[0].mxu0
  %v881 = vadd.f32 %v804, %v880
  %v882 = vpop.f32.mrb[0].mxu0
  %883 = vdwg.mxu0
  %v884 = vmul.f32 %v881, %v55
  %vm885 = vcmask 122880
  %886 = vst.msk [vmem:[%s11] sm:$0x1] %vm885, %v884
  // Predicated region
  $region46: #{variance_adaptor_forward.2} parent=0 // pred_check
    _
  $region47: #{variance_adaptor_forward.2} parent=0 // pred_check_branch
    %888 = sbr.rel (0) target = $region49
  $region48: #{variance_adaptor_forward.2} parent=0 // pred_region
    _
  $region49: #{variance_adaptor_forward.2} parent=0 // pred_fallthru
    _
  // Predicated region
  $region50: #{variance_adaptor_forward.2} parent=0 // pred_check
    _
  $region51: #{variance_adaptor_forward.2} parent=0 // pred_check_branch
    %890 = sbr.rel (0) target = $region53
  $region52: #{variance_adaptor_forward.2} parent=0 // pred_region
    _
  $region53: #{variance_adaptor_forward.2} parent=0 // pred_fallthru
    _

// kernel: variance_adaptor_forward.3
$region0: #{variance_adaptor_forward.3}
  #allocation0 [shape = 'u32[]', space=smem, size = 0x4, offset = 0x4, fixed_abs, tag = 'smem constant byte address 0x4 - core index']
  #allocation1 [shape = 'u32[144,128]{1,0:T(1,128)}', space=vmem, size = 0x12000, scoped, tag = 'internal scratch']
  %s0 = inlined_call_operand.vmem [shape: f32[32,32], index: 0, kind: input, shape index: {}]
  %s1 = inlined_call_operand.vmem [shape: f32[32,32], index: 1, kind: input, shape index: {}]
  %s2 = inlined_call_operand.vmem [shape: f32[32,32], index: 2, kind: input, shape index: {}]
  %s3 = inlined_call_operand.vmem [shape: f32[32,32], index: 3, kind: input, shape index: {}]
  %s4 = inlined_call_operand.vmem [shape: f32[16,32], index: 4, kind: input, shape index: {}]
  %s5 = inlined_call_operand.vmem [shape: f32[32,1], index: 5, kind: input, shape index: {}]
  %s6 = inlined_call_operand.vmem [shape: f32[1,32], index: 6, kind: input, shape index: {}]
  %s7 = inlined_call_operand.vmem [shape: bf16[2,32,96], index: 7, kind: input, shape index: {}]
  %s8 = inlined_call_operand.vmem [shape: bf16[2,32,32], index: 8, kind: input, shape index: {}]
  %s9 = inlined_call_operand.vmem [shape: bf16[2,32,64], index: 9, kind: input, shape index: {}]
  %s10 = inlined_call_operand.vmem [shape: bf16[2,64,32], index: 10, kind: input, shape index: {}]
  %s11 = inlined_call_operand.vmem [shape: f32[2,1,96], index: 11, kind: input, shape index: {}]
  %s12 = inlined_call_operand.vmem [shape: f32[2,1,64], index: 12, kind: input, shape index: {}]
  %s13 = inlined_call_operand.vmem [shape: f32[2,8,32], index: 13, kind: input, shape index: {}]
  %s14 = inlined_call_operand.vmem [shape: f32[1,32], index: 14, kind: output, shape index: {0}]
  %s15 = inlined_call_operand.vmem [shape: f32[1,32], index: 15, kind: output, shape index: {1}]
  %s16 = inlined_call_operand.hbm [shape: f32[32,32], index: 16, kind: output, shape index: {2}]
  %17 = xla_tuple %s14, %s15, %s16
  %s18 = sld [smem:[#allocation0]]
  $region82: #{variance_adaptor_forward.3} parent=0
    _
  %s20 = ssub.s32 1, %s18
  %s21 = scalar_select 0, %s20, %s18
  $region1: #{variance_adaptor_forward.3} parent=0
    #allocation2 [shape = 'u8[16384]{0}', space=vmem, size = 0x4000, scoped, tag = 'output window, operand 2, single buffered']
    #allocation3 [shape = 's32[1]{0}', space=sflag, size = 0x4, scoped, tag = 'scoped memory for variance_adaptor_forward.3']
    %22 = vsyncpa [#allocation3], 0
    // Predicated region
    $region2: #{variance_adaptor_forward.3} parent=1 // pred_check
      _
    $region3: #{variance_adaptor_forward.3} parent=1 // pred_check_branch
      %24 = sbr.rel (0) target = $region5
    $region4: #{variance_adaptor_forward.3} parent=1 // pred_region
      _
    $region5: #{variance_adaptor_forward.3} parent=1 // pred_fallthru
      _
    // Predicated region
    $region6: #{variance_adaptor_forward.3} parent=1 // pred_check
      _
    $region7: #{variance_adaptor_forward.3} parent=1 // pred_check_branch
      %26 = sbr.rel (0) target = $region9
    $region8: #{variance_adaptor_forward.3} parent=1 // pred_region
      _
    $region9: #{variance_adaptor_forward.3} parent=1 // pred_fallthru
      _
    // Predicated region
    $region10: #{variance_adaptor_forward.3} parent=1 // pred_check
      _
    $region11: #{variance_adaptor_forward.3} parent=1 // pred_check_branch
      %28 = sbr.rel (0) target = $region13
    $region12: #{variance_adaptor_forward.3} parent=1 // pred_region
      _
    $region13: #{variance_adaptor_forward.3} parent=1 // pred_fallthru
      _
    // Predicated region
    $region14: #{variance_adaptor_forward.3} parent=1 // pred_check
      _
    $region15: #{variance_adaptor_forward.3} parent=1 // pred_check_branch
      %30 = sbr.rel (0) target = $region17
    $region16: #{variance_adaptor_forward.3} parent=1 // pred_region
      _
    $region17: #{variance_adaptor_forward.3} parent=1 // pred_fallthru
      _
    // Predicated region
    $region18: #{variance_adaptor_forward.3} parent=1 // pred_check
      _
    $region19: #{variance_adaptor_forward.3} parent=1 // pred_check_branch
      %32 = sbr.rel (0) target = $region21
    $region20: #{variance_adaptor_forward.3} parent=1 // pred_region
      _
    $region21: #{variance_adaptor_forward.3} parent=1 // pred_fallthru
      _
    // Predicated region
    $region22: #{variance_adaptor_forward.3} parent=1 // pred_check
      _
    $region23: #{variance_adaptor_forward.3} parent=1 // pred_check_branch
      %34 = sbr.rel (0) target = $region25
    $region24: #{variance_adaptor_forward.3} parent=1 // pred_region
      _
    $region25: #{variance_adaptor_forward.3} parent=1 // pred_fallthru
      _
    // Predicated region
    $region26: #{variance_adaptor_forward.3} parent=1 // pred_check
      _
    $region27: #{variance_adaptor_forward.3} parent=1 // pred_check_branch
      %36 = sbr.rel (0) target = $region29
    $region28: #{variance_adaptor_forward.3} parent=1 // pred_region
      _
    $region29: #{variance_adaptor_forward.3} parent=1 // pred_fallthru
      _
    // Predicated region
    $region30: #{variance_adaptor_forward.3} parent=1 // pred_check
      _
    $region31: #{variance_adaptor_forward.3} parent=1 // pred_check_branch
      %38 = sbr.rel (0) target = $region33
    $region32: #{variance_adaptor_forward.3} parent=1 // pred_region
      _
    $region33: #{variance_adaptor_forward.3} parent=1 // pred_fallthru
      _
    // Predicated region
    $region34: #{variance_adaptor_forward.3} parent=1 // pred_check
      _
    $region35: #{variance_adaptor_forward.3} parent=1 // pred_check_branch
      %40 = sbr.rel (0) target = $region37
    $region36: #{variance_adaptor_forward.3} parent=1 // pred_region
      _
    $region37: #{variance_adaptor_forward.3} parent=1 // pred_fallthru
      _
    // Predicated region
    $region38: #{variance_adaptor_forward.3} parent=1 // pred_check
      _
    $region39: #{variance_adaptor_forward.3} parent=1 // pred_check_branch
      %42 = sbr.rel (0) target = $region41
    $region40: #{variance_adaptor_forward.3} parent=1 // pred_region
      _
    $region41: #{variance_adaptor_forward.3} parent=1 // pred_fallthru
      _
    // Predicated region
    $region42: #{variance_adaptor_forward.3} parent=1 // pred_check
      _
    $region43: #{variance_adaptor_forward.3} parent=1 // pred_check_branch
      %44 = sbr.rel (0) target = $region45
    $region44: #{variance_adaptor_forward.3} parent=1 // pred_region
      _
    $region45: #{variance_adaptor_forward.3} parent=1 // pred_fallthru
      _
    // Predicated region
    $region46: #{variance_adaptor_forward.3} parent=1 // pred_check
      _
    $region47: #{variance_adaptor_forward.3} parent=1 // pred_check_branch
      %46 = sbr.rel (0) target = $region49
    $region48: #{variance_adaptor_forward.3} parent=1 // pred_region
      _
    $region49: #{variance_adaptor_forward.3} parent=1 // pred_fallthru
      _
    // Predicated region
    $region50: #{variance_adaptor_forward.3} parent=1 // pred_check
      _
    $region51: #{variance_adaptor_forward.3} parent=1 // pred_check_branch
      %48 = sbr.rel (0) target = $region53
    $region52: #{variance_adaptor_forward.3} parent=1 // pred_region
      _
    $region53: #{variance_adaptor_forward.3} parent=1 // pred_fallthru
      _
    // Predicated region
    $region54: #{variance_adaptor_forward.3} parent=1 // pred_check
      _
    $region55: #{variance_adaptor_forward.3} parent=1 // pred_check_branch
      %50 = sbr.rel (0) target = $region57
    $region56: #{variance_adaptor_forward.3} parent=1 // pred_region
      _
    $region57: #{variance_adaptor_forward.3} parent=1 // pred_fallthru
      _
    %v52 = vld [vmem:[%s4] sm:$0xff]
    %v53 = vld [vmem:[%s4 + $0x8] sm:$0xff]
    %v54 = vld [vmem:[%s0] sm:$0xff]
    %v55 = vld [vmem:[%s0 + $0x8] sm:$0xff]
    %v56 = vld [vmem:[%s0 + $0x10] sm:$0xff]
    %v57 = vld [vmem:[%s0 + $0x18] sm:$0xff]
    %v58 = vld [vmem:[%s5] sm:$0xff]
    %v59 = vld [vmem:[%s5 + $0x8] sm:$0xff]
    %v60 = vld [vmem:[%s5 + $0x10] sm:$0xff]
    %v61 = vld [vmem:[%s5 + $0x18] sm:$0xff]
    %v62 = vld [vmem:[%s6] sm:$0x1]
    %vm63 = vcmp.ge.f32.partialorder %v58, 0.0
    %vm64 = vcmp.ge.f32.partialorder %v59, 0.0
    %vm65 = vcmp.ge.f32.partialorder %v60, 0.0
    %vm66 = vcmp.ge.f32.partialorder %v61, 0.0
    %v67 = vsel %vm63, 1, 0
    %v68 = vsel %vm64, 1, 0
    %v69 = vsel %vm65, 1, 0
    %v70 = vsel %vm66, 1, 0
    %v71 = vcvt.s32.f32 %v67
    %v72 = vcvt.s32.f32 %v68
    %v73 = vcvt.s32.f32 %v69
    %v74 = vcvt.s32.f32 %v70
    %vm75 = vcmp.ge.f32.partialorder %v62, 0.0
    %v76 = vsel %vm75, 1, 0
    %v77 = vcvt.s32.f32 %v76
    %79 = vset.pattern.permute.xlu0 0
    %80 = vperm.xlu0 %79, %v58
    %v81 = vpop.permute.xlu0 %80
    %84 = vset.pattern.permute.xlu0 0
    %85 = vperm.xlu0 %84, %v59
    %v86 = vpop.permute.xlu0 %85
    %89 = vset.pattern.permute.xlu0 0
    %90 = vperm.xlu0 %89, %v60
    %v91 = vpop.permute.xlu0 %90
    %94 = vset.pattern.permute.xlu0 0
    %95 = vperm.xlu0 %94, %v61
    %v96 = vpop.permute.xlu0 %95
    %v99 = vlaneseq
    %v100 = vshrl.u32 %v99, 7
    %v101 = vsub.s32 0, %v100
    %v102 = vrot.slane %v62, %v101
    %vm104 = vcmp.eq.f32.partialorder %v81, %v102
    %vm105 = vcmp.eq.f32.partialorder %v86, %v102
    %vm106 = vcmp.eq.f32.partialorder %v91, %v102
    %vm107 = vcmp.eq.f32.partialorder %v96, %v102
    %v108 = vsel %vm104, 0.0, -1e+09
    %v109 = vsel %vm105, 0.0, -1e+09
    %v110 = vsel %vm106, 0.0, -1e+09
    %v111 = vsel %vm107, 0.0, -1e+09
    %v112 = vld [vmem:[%s1] sm:$0xff]
    %v113 = vld [vmem:[%s1 + $0x8] sm:$0xff]
    %v114 = vld [vmem:[%s1 + $0x10] sm:$0xff]
    %v115 = vld [vmem:[%s1 + $0x18] sm:$0xff]
    %v116 = vadd.f32 %v54, %v112
    %v117 = vadd.f32 %v55, %v113
    %v118 = vadd.f32 %v56, %v114
    %v119 = vadd.f32 %v57, %v115
    %v120 = vadd.f32 %v116, %v52
    %v121 = vadd.f32 %v117, %v53
    %v122 = vadd.f32 %v118, %v52
    %v123 = vadd.f32 %v119, %v53
    %v124 = vld [vmem:[%s7] sm:$0xf]
    %v125 = vld [vmem:[%s7 + $0x4] sm:$0xf]
    %v126 = vld [vmem:[%s7 + $0x8] sm:$0xf]
    %v127 = vld [vmem:[%s7 + $0xc] sm:$0xf]
    %v128 = vld [vmem:[%s8] sm:$0xf]
    %v129 = vld [vmem:[%s8 + $0x4] sm:$0xf]
    %v130 = vld [vmem:[%s8 + $0x8] sm:$0xf]
    %v131 = vld [vmem:[%s8 + $0xc] sm:$0xf]
    %v132 = vld [vmem:[%s9] sm:$0xf]
    %v133 = vld [vmem:[%s9 + $0x4] sm:$0xf]
    %v134 = vld [vmem:[%s9 + $0x8] sm:$0xf]
    %v135 = vld [vmem:[%s9 + $0xc] sm:$0xf]
    %v136 = vld [vmem:[%s10] sm:$0xf]
    %v137 = vld [vmem:[%s10 + $0x4] sm:$0xf]
    %v138 = vld [vmem:[%s10 + $0x8] sm:$0xf]
    %v139 = vld [vmem:[%s10 + $0xc] sm:$0xf]
    %v140 = vld [vmem:[%s10 + $0x10] sm:$0xf]
    %v141 = vld [vmem:[%s10 + $0x14] sm:$0xf]
    %v142 = vld [vmem:[%s10 + $0x18] sm:$0xf]
    %v143 = vld [vmem:[%s10 + $0x1c] sm:$0xf]
    %v144 = vld [vmem:[%s11] sm:$0x1]
    %v145 = vld [vmem:[%s12] sm:$0x1]
    %v146 = vld [vmem:[%s13] sm:$0xff]
    %v147 = vpack.c.bf16 %v121, %v120
    %v148 = vpack.c.bf16 %v123, %v122
    %v150 = vlaneseq
    %v151 = vshrl.u32 %v150, 7
    %v152 = vsub.s32 0, %v151
    %v153 = vrot.slane %v144, %v152
    %v159 = vunpack.c.l.b16 %v124
    %v160 = vunpack.c.l.b16 %v125
    %v161 = vunpack.c.l.b16 %v126
    %v162 = vunpack.c.l.b16 %v127
    %v163 = vpack.c.b16 %v160, %v159
    %v164 = vpack.c.b16 %v162, %v161
    %vm167 = vcmask 261120
    %v169 = vsel %vm167, %v147, 0
    %v172 = vsel %vm167, %v148, 0
    %174 = vmatprep.subr.bf16.mxu0 0
    %175 = vmatpush1.bf16.msra.mxu0 %v163
    %176 = vmatprep.subr.bf16.mxu0 0
    %177 = vmatpush1.bf16.msra.mxu0 %v164
    %178 = vmatprep.subr.bf16.mxu0 0
    %179 = vmatpush1.bf16.msra.mxu0 0
    %180 = vmatprep.subr.bf16.mxu0 0
    %181 = vmatpush1.bf16.msra.mxu0 0
    %182 = vmatprep.subr.bf16.mxu0 0
    %183 = vmatpush1.bf16.msra.mxu0 0
    %184 = vmatprep.subr.bf16.mxu0 0
    %185 = vmatpush1.bf16.msra.mxu0 0
    %186 = vmatprep.subr.bf16.mxu0 0
    %187 = vmatpush1.bf16.msra.mxu0 0
    %188 = vmatprep.subr.bf16.mxu0 0
    %189 = vmatpush1.bf16.msra.mxu0 0
    %190 = vmatprep.subr.bf16.mxu0 0
    %191 = vmatpush1.bf16.msra.mxu0 0
    %192 = vmatprep.subr.bf16.mxu0 0
    %193 = vmatpush1.bf16.msra.mxu0 0
    %194 = vmatprep.subr.bf16.mxu0 0
    %195 = vmatpush1.bf16.msra.mxu0 0
    %196 = vmatprep.subr.bf16.mxu0 0
    %197 = vmatpush1.bf16.msra.mxu0 0
    %198 = vmatprep.subr.bf16.mxu0 0
    %199 = vmatpush1.bf16.msra.mxu0 0
    %200 = vmatprep.subr.bf16.mxu0 0
    %201 = vmatpush1.bf16.msra.mxu0 0
    %202 = vmatprep.subr.bf16.mxu0 0
    %203 = vmatpush1.bf16.msra.mxu0 0
    %204 = vmatprep.subr.bf16.mxu0 0
    %205 = vmatpush1.bf16.msra.mxu0 0
    %206 = vmatprep.mubr.bf16.mxu0 0
    %207 = vmatmul.mubr.bf16.gmra.mrb[0].mxu0 %v169
    %v208 = vpop.f32.mrb[0].mxu0
    %v209 = vadd.f32 %v153, %v208
    %v210 = vpop.f32.mrb[0].mxu0
    %v211 = vpop.f32.mrb[0].mxu0
    %v212 = vadd.f32 %v153, %v211
    %v213 = vpop.f32.mrb[0].mxu0
    %214 = vmatprep.mubr.bf16.mxu0 0
    %215 = vmatmul.mubr.bf16.gmra.mrb[0].mxu0 %v172
    %v216 = vpop.f32.mrb[0].mxu0
    %v217 = vadd.f32 %v153, %v216
    %v218 = vpop.f32.mrb[0].mxu0
    %v219 = vpop.f32.mrb[0].mxu0
    %v220 = vadd.f32 %v153, %v219
    %v221 = vpop.f32.mrb[0].mxu0
    %222 = vdwg.mxu0
    %227 = vrot.lane.b32.xlu0 %v209, 96
    %v228 = vpop.permute.xlu0 %227
    %229 = vrot.lane.b32.xlu0 %v212, 96
    %v230 = vpop.permute.xlu0 %229
    %231 = vrot.lane.b32.xlu0 %v217, 96
    %v232 = vpop.permute.xlu0 %231
    %233 = vrot.lane.b32.xlu0 %v220, 96
    %v234 = vpop.permute.xlu0 %233
    %vm235 = vcmask 130048
    %v236 = vsel %vm235, %v209, 0
    %v238 = vsel %vm235, %v212, 0
    %v240 = vsel %vm235, %v217, 0
    %v242 = vsel %vm235, %v220, 0
    %v244 = vsel %vm235, %v228, 0
    %v246 = vsel %vm235, %v230, 0
    %v248 = vsel %vm235, %v232, 0
    %v250 = vsel %vm235, %v234, 0
    %252 = vmatprep.subr.mxu0 0.0
    %253 = vmatpush1.xpose.msra.mxu0 %v244
    %254 = vmatprep.subr.mxu0 0.0
    %255 = vmatpush1.xpose.msra.mxu0 %v246
    %256 = vmatprep.subr.mxu0 0.0
    %257 = vmatpush1.xpose.msra.mxu0 %v248
    %258 = vmatprep.subr.mxu0 0.0
    %259 = vmatpush1.xpose.msra.mxu0 %v250
    %260 = vmatprep.subr.mxu0 0.0
    %261 = vmatpush1.xpose.msra.mxu0 0.0
    %262 = vmatprep.subr.mxu0 0.0
    %263 = vmatpush1.xpose.msra.mxu0 0.0
    %264 = vmatprep.subr.mxu0 0.0
    %265 = vmatpush1.xpose.msra.mxu0 0.0
    %266 = vmatprep.subr.mxu0 0.0
    %267 = vmatpush1.xpose.msra.mxu0 0.0
    %268 = vmatprep.subr.mxu0 0.0
    %269 = vmatpush1.xpose.msra.mxu0 0.0
    %270 = vmatprep.subr.mxu0 0.0
    %271 = vmatpush1.xpose.msra.mxu0 0.0
    %272 = vmatprep.subr.mxu0 0.0
    %273 = vmatpush1.xpose.msra.mxu0 0.0
    %274 = vmatprep.subr.mxu0 0.0
    %275 = vmatpush1.xpose.msra.mxu0 0.0
    %276 = vmatprep.subr.mxu0 0.0
    %277 = vmatpush1.xpose.msra.mxu0 0.0
    %278 = vmatprep.subr.mxu0 0.0
    %279 = vmatpush1.xpose.msra.mxu0 0.0
    %280 = vmatprep.subr.mxu0 0.0
    %281 = vmatpush1.xpose.msra.mxu0 0.0
    %282 = vmatprep.subr.mxu0 0.0
    %283 = vmatpush1.xpose.msra.mxu0 0.0
    %284 = vmatprep.subr.mxu0 0.0
    %285 = vmatpush1.xpose.msra.mxu0 0.0
    %286 = vmatprep.subr.mxu0 0.0
    %287 = vmatpush1.xpose.msra.mxu0 0.0
    %288 = vmatprep.subr.mxu0 0.0
    %289 = vmatpush1.xpose.msra.mxu0 0.0
    %290 = vmatprep.subr.mxu0 0.0
    %291 = vmatpush1.xpose.msra.mxu0 0.0
    %292 = vmatprep.subr.mxu0 0.0
    %293 = vmatpush1.xpose.msra.mxu0 0.0
    %294 = vmatprep.subr.mxu0 0.0
    %295 = vmatpush1.xpose.msra.mxu0 0.0
    %296 = vmatprep.subr.mxu0 0.0
    %297 = vmatpush1.xpose.msra.mxu0 0.0
    %298 = vmatprep.subr.mxu0 0.0
    %299 = vmatpush1.xpose.msra.mxu0 0.0
    %300 = vmatprep.subr.mxu0 0.0
    %301 = vmatpush1.xpose.msra.mxu0 0.0
    %302 = vmatprep.subr.mxu0 0.0
    %303 = vmatpush1.xpose.msra.mxu0 0.0
    %304 = vmatprep.subr.mxu0 0.0
    %305 = vmatpush1.xpose.msra.mxu0 0.0
    %306 = vmatprep.subr.mxu0 0.0
    %307 = vmatpush1.xpose.msra.mxu0 0.0
    %308 = vmatprep.subr.mxu0 0.0
    %309 = vmatpush1.xpose.msra.mxu0 0.0
    %310 = vmatprep.subr.mxu0 0.0
    %311 = vmatpush1.xpose.msra.mxu0 0.0
    %312 = vmatprep.subr.mxu0 0.0
    %313 = vmatpush1.xpose.msra.mxu0 0.0
    %314 = vmatprep.subr.mxu0 0.0
    %315 = vmatpush1.xpose.msra.mxu0 0.0
    %316 = vmatprep.mubr.f32.mxu0 0.0
    %317 = vmatmul.mubr.f32.gmra.mrb[0].mxu0 %v236
    %v318 = vpop.f32.mrb[0].mxu0
    %v319 = vadd.f32 0.0, %v318
    %v320 = vpop.f32.mrb[0].mxu0
    %321 = vmatprep.mubr.f32.mxu0 0.0
    %322 = vmatmul.mubr.f32.gmra.mrb[0].mxu0 %v238
    %v323 = vpop.f32.mrb[0].mxu0
    %v324 = vadd.f32 0.0, %v323
    %v325 = vpop.f32.mrb[0].mxu0
    %326 = vmatprep.mubr.f32.mxu0 0.0
    %327 = vmatmul.mubr.f32.gmra.mrb[0].mxu0 %v240
    %v328 = vpop.f32.mrb[0].mxu0
    %v329 = vadd.f32 0.0, %v328
    %v330 = vpop.f32.mrb[0].mxu0
    %331 = vmatprep.mubr.f32.mxu0 0.0
    %332 = vmatmul.mubr.f32.gmra.mrb[0].mxu0 %v242
    %v333 = vpop.f32.mrb[0].mxu0
    %v334 = vadd.f32 0.0, %v333
    %v335 = vpop.f32.mrb[0].mxu0
    %336 = vdwg.mxu0
    %v337 = vmul.f32 %v319, 0.25
    %v338 = vmul.f32 %v324, 0.25
    %v339 = vmul.f32 %v329, 0.25
    %v340 = vmul.f32 %v334, 0.25
    %v341 = vadd.f32 %v337, %v108
    %v342 = vadd.f32 %v338, %v109
    %v343 = vadd.f32 %v339, %v110
    %v344 = vadd.f32 %v340, %v111
    %v345 = vsel %vm167, %v341, -inf
    %346 = vmax.xlane.f32.xlu0 %v345
    %v347 = vpop.xlane.xlu0 %346
    %v348 = vsel %vm167, %v342, -inf
    %349 = vmax.xlane.f32.xlu0 %v348
    %v350 = vpop.xlane.xlu0 %349
    %v351 = vsel %vm167, %v343, -inf
    %352 = vmax.xlane.f32.xlu0 %v351
    %v353 = vpop.xlane.xlu0 %352
    %v354 = vsel %vm167, %v344, -inf
    %355 = vmax.xlane.f32.xlu0 %v354
    %v356 = vpop.xlane.xlu0 %355
    %v357 = vsub.f32 %v341, %v347
    %v358 = vsub.f32 %v342, %v350
    %v359 = vsub.f32 %v343, %v353
    %v360 = vsub.f32 %v344, %v356
    %v361 = vmul.f32 %v357, 1.442695
    %v362 = vpow.pop %v361
    %v363 = vmul.f32 %v358, 1.442695
    %v364 = vpow.pop %v363
    %v365 = vmul.f32 %v359, 1.442695
    %v366 = vpow.pop %v365
    %v367 = vmul.f32 %v360, 1.442695
    %v368 = vpow.pop %v367
    %v369 = vsel %vm167, %v362, 0.0
    %370 = vadd.xlane.f32.xlu0 %v369
    %v371 = vpop.xlane.xlu0 %370
    %v372 = vsel %vm167, %v364, 0.0
    %373 = vadd.xlane.f32.xlu0 %v372
    %v374 = vpop.xlane.xlu0 %373
    %v375 = vsel %vm167, %v366, 0.0
    %376 = vadd.xlane.f32.xlu0 %v375
    %v377 = vpop.xlane.xlu0 %376
    %v378 = vsel %vm167, %v368, 0.0
    %379 = vadd.xlane.f32.xlu0 %v378
    %v380 = vpop.xlane.xlu0 %379
    %v381 = vrcp.pop %v371
    %v382 = vrcp.pop %v374
    %v383 = vrcp.pop %v377
    %v384 = vrcp.pop %v380
    %v385 = vmul.f32 %v362, %v381
    %v386 = vmul.f32 %v364, %v382
    %v387 = vmul.f32 %v366, %v383
    %v388 = vmul.f32 %v368, %v384
    %v389 = vpack.c.bf16 %v386, %v385
    %v390 = vpack.c.bf16 %v388, %v387
    %v391 = vpack.c.bf16 %v212, %v209
    %v392 = vpack.c.bf16 %v220, %v217
    %395 = vrot.lane.b32.xlu0 %v391, 64
    %v396 = vpop.permute.xlu0 %395
    %397 = vrot.lane.b32.xlu0 %v392, 64
    %v398 = vpop.permute.xlu0 %397
    %v402 = vsel %vm167, %v389, 0
    %v405 = vsel %vm167, %v390, 0
    %407 = vmatprep.subr.bf16.mxu0 0
    %408 = vmatpush1.bf16.msra.mxu0 %v396
    %409 = vmatprep.subr.bf16.mxu0 0
    %410 = vmatpush1.bf16.msra.mxu0 %v398
    %411 = vmatprep.subr.bf16.mxu0 0
    %412 = vmatpush1.bf16.msra.mxu0 0
    %413 = vmatprep.subr.bf16.mxu0 0
    %414 = vmatpush1.bf16.msra.mxu0 0
    %415 = vmatprep.subr.bf16.mxu0 0
    %416 = vmatpush1.bf16.msra.mxu0 0
    %417 = vmatprep.subr.bf16.mxu0 0
    %418 = vmatpush1.bf16.msra.mxu0 0
    %419 = vmatprep.subr.bf16.mxu0 0
    %420 = vmatpush1.bf16.msra.mxu0 0
    %421 = vmatprep.subr.bf16.mxu0 0
    %422 = vmatpush1.bf16.msra.mxu0 0
    %423 = vmatprep.subr.bf16.mxu0 0
    %424 = vmatpush1.bf16.msra.mxu0 0
    %425 = vmatprep.subr.bf16.mxu0 0
    %426 = vmatpush1.bf16.msra.mxu0 0
    %427 = vmatprep.subr.bf16.mxu0 0
    %428 = vmatpush1.bf16.msra.mxu0 0
    %429 = vmatprep.subr.bf16.mxu0 0
    %430 = vmatpush1.bf16.msra.mxu0 0
    %431 = vmatprep.subr.bf16.mxu0 0
    %432 = vmatpush1.bf16.msra.mxu0 0
    %433 = vmatprep.subr.bf16.mxu0 0
    %434 = vmatpush1.bf16.msra.mxu0 0
    %435 = vmatprep.subr.bf16.mxu0 0
    %436 = vmatpush1.bf16.msra.mxu0 0
    %437 = vmatprep.subr.bf16.mxu0 0
    %438 = vmatpush1.bf16.msra.mxu0 0
    %439 = vmatprep.mubr.bf16.mxu0 0
    %440 = vmatmul.mubr.bf16.gmra.mrb[0].mxu0 %v402
    %v441 = vpop.f32.mrb[0].mxu0
    %v442 = vadd.f32 0.0, %v441
    %v443 = vpop.f32.mrb[0].mxu0
    %v444 = vpop.f32.mrb[0].mxu0
    %v445 = vadd.f32 0.0, %v444
    %v446 = vpop.f32.mrb[0].mxu0
    %447 = vmatprep.mubr.bf16.mxu0 0
    %448 = vmatmul.mubr.bf16.gmra.mrb[0].mxu0 %v405
    %v449 = vpop.f32.mrb[0].mxu0
    %v450 = vadd.f32 0.0, %v449
    %v451 = vpop.f32.mrb[0].mxu0
    %v452 = vpop.f32.mrb[0].mxu0
    %v453 = vadd.f32 0.0, %v452
    %v454 = vpop.f32.mrb[0].mxu0
    %455 = vdwg.mxu0
    %456 = vrot.lane.b32.xlu0 %v209, 112
    %v457 = vpop.permute.xlu0 %456
    %458 = vrot.lane.b32.xlu0 %v212, 112
    %v459 = vpop.permute.xlu0 %458
    %460 = vrot.lane.b32.xlu0 %v217, 112
    %v461 = vpop.permute.xlu0 %460
    %462 = vrot.lane.b32.xlu0 %v220, 112
    %v463 = vpop.permute.xlu0 %462
    %464 = vrot.lane.b32.xlu0 %v209, 80
    %v465 = vpop.permute.xlu0 %464
    %466 = vrot.lane.b32.xlu0 %v212, 80
    %v467 = vpop.permute.xlu0 %466
    %468 = vrot.lane.b32.xlu0 %v217, 80
    %v469 = vpop.permute.xlu0 %468
    %470 = vrot.lane.b32.xlu0 %v220, 80
    %v471 = vpop.permute.xlu0 %470
    %v472 = vsel %vm235, %v457, 0
    %v474 = vsel %vm235, %v459, 0
    %v476 = vsel %vm235, %v461, 0
    %v478 = vsel %vm235, %v463, 0
    %v480 = vsel %vm235, %v465, 0
    %v482 = vsel %vm235, %v467, 0
    %v484 = vsel %vm235, %v469, 0
    %v486 = vsel %vm235, %v471, 0
    %488 = vmatprep.subr.mxu0 0.0
    %489 = vmatpush1.xpose.msra.mxu0 %v480
    %490 = vmatprep.subr.mxu0 0.0
    %491 = vmatpush1.xpose.msra.mxu0 %v482
    %492 = vmatprep.subr.mxu0 0.0
    %493 = vmatpush1.xpose.msra.mxu0 %v484
    %494 = vmatprep.subr.mxu0 0.0
    %495 = vmatpush1.xpose.msra.mxu0 %v486
    %496 = vmatprep.subr.mxu0 0.0
    %497 = vmatpush1.xpose.msra.mxu0 0.0
    %498 = vmatprep.subr.mxu0 0.0
    %499 = vmatpush1.xpose.msra.mxu0 0.0
    %500 = vmatprep.subr.mxu0 0.0
    %501 = vmatpush1.xpose.msra.mxu0 0.0
    %502 = vmatprep.subr.mxu0 0.0
    %503 = vmatpush1.xpose.msra.mxu0 0.0
    %504 = vmatprep.subr.mxu0 0.0
    %505 = vmatpush1.xpose.msra.mxu0 0.0
    %506 = vmatprep.subr.mxu0 0.0
    %507 = vmatpush1.xpose.msra.mxu0 0.0
    %508 = vmatprep.subr.mxu0 0.0
    %509 = vmatpush1.xpose.msra.mxu0 0.0
    %510 = vmatprep.subr.mxu0 0.0
    %511 = vmatpush1.xpose.msra.mxu0 0.0
    %512 = vmatprep.subr.mxu0 0.0
    %513 = vmatpush1.xpose.msra.mxu0 0.0
    %514 = vmatprep.subr.mxu0 0.0
    %515 = vmatpush1.xpose.msra.mxu0 0.0
    %516 = vmatprep.subr.mxu0 0.0
    %517 = vmatpush1.xpose.msra.mxu0 0.0
    %518 = vmatprep.subr.mxu0 0.0
    %519 = vmatpush1.xpose.msra.mxu0 0.0
    %520 = vmatprep.subr.mxu0 0.0
    %521 = vmatpush1.xpose.msra.mxu0 0.0
    %522 = vmatprep.subr.mxu0 0.0
    %523 = vmatpush1.xpose.msra.mxu0 0.0
    %524 = vmatprep.subr.mxu0 0.0
    %525 = vmatpush1.xpose.msra.mxu0 0.0
    %526 = vmatprep.subr.mxu0 0.0
    %527 = vmatpush1.xpose.msra.mxu0 0.0
    %528 = vmatprep.subr.mxu0 0.0
    %529 = vmatpush1.xpose.msra.mxu0 0.0
    %530 = vmatprep.subr.mxu0 0.0
    %531 = vmatpush1.xpose.msra.mxu0 0.0
    %532 = vmatprep.subr.mxu0 0.0
    %533 = vmatpush1.xpose.msra.mxu0 0.0
    %534 = vmatprep.subr.mxu0 0.0
    %535 = vmatpush1.xpose.msra.mxu0 0.0
    %536 = vmatprep.subr.mxu0 0.0
    %537 = vmatpush1.xpose.msra.mxu0 0.0
    %538 = vmatprep.subr.mxu0 0.0
    %539 = vmatpush1.xpose.msra.mxu0 0.0
    %540 = vmatprep.subr.mxu0 0.0
    %541 = vmatpush1.xpose.msra.mxu0 0.0
    %542 = vmatprep.subr.mxu0 0.0
    %543 = vmatpush1.xpose.msra.mxu0 0.0
    %544 = vmatprep.subr.mxu0 0.0
    %545 = vmatpush1.xpose.msra.mxu0 0.0
    %546 = vmatprep.subr.mxu0 0.0
    %547 = vmatpush1.xpose.msra.mxu0 0.0
    %548 = vmatprep.subr.mxu0 0.0
    %549 = vmatpush1.xpose.msra.mxu0 0.0
    %550 = vmatprep.subr.mxu0 0.0
    %551 = vmatpush1.xpose.msra.mxu0 0.0
    %552 = vmatprep.mubr.f32.mxu0 0.0
    %553 = vmatmul.mubr.f32.gmra.mrb[0].mxu0 %v472
    %v554 = vpop.f32.mrb[0].mxu0
    %v555 = vadd.f32 0.0, %v554
    %v556 = vpop.f32.mrb[0].mxu0
    %557 = vmatprep.mubr.f32.mxu0 0.0
    %558 = vmatmul.mubr.f32.gmra.mrb[0].mxu0 %v474
    %v559 = vpop.f32.mrb[0].mxu0
    %v560 = vadd.f32 0.0, %v559
    %v561 = vpop.f32.mrb[0].mxu0
    %562 = vmatprep.mubr.f32.mxu0 0.0
    %563 = vmatmul.mubr.f32.gmra.mrb[0].mxu0 %v476
    %v564 = vpop.f32.mrb[0].mxu0
    %v565 = vadd.f32 0.0, %v564
    %v566 = vpop.f32.mrb[0].mxu0
    %567 = vmatprep.mubr.f32.mxu0 0.0
    %568 = vmatmul.mubr.f32.gmra.mrb[0].mxu0 %v478
    %v569 = vpop.f32.mrb[0].mxu0
    %v570 = vadd.f32 0.0, %v569
    %v571 = vpop.f32.mrb[0].mxu0
    %572 = vdwg.mxu0
    %v573 = vmul.f32 %v555, 0.25
    %v574 = vmul.f32 %v560, 0.25
    %v575 = vmul.f32 %v565, 0.25
    %v576 = vmul.f32 %v570, 0.25
    %v577 = vadd.f32 %v573, %v108
    %v578 = vadd.f32 %v574, %v109
    %v579 = vadd.f32 %v575, %v110
    %v580 = vadd.f32 %v576, %v111
    %v581 = vsel %vm167, %v577, -inf
    %582 = vmax.xlane.f32.xlu0 %v581
    %v583 = vpop.xlane.xlu0 %582
    %v584 = vsel %vm167, %v578, -inf
    %585 = vmax.xlane.f32.xlu0 %v584
    %v586 = vpop.xlane.xlu0 %585
    %v587 = vsel %vm167, %v579, -inf
    %588 = vmax.xlane.f32.xlu0 %v587
    %v589 = vpop.xlane.xlu0 %588
    %v590 = vsel %vm167, %v580, -inf
    %591 = vmax.xlane.f32.xlu0 %v590
    %v592 = vpop.xlane.xlu0 %591
    %v593 = vsub.f32 %v577, %v583
    %v594 = vsub.f32 %v578, %v586
    %v595 = vsub.f32 %v579, %v589
    %v596 = vsub.f32 %v580, %v592
    %v597 = vmul.f32 %v593, 1.442695
    %v598 = vpow.pop %v597
    %v599 = vmul.f32 %v594, 1.442695
    %v600 = vpow.pop %v599
    %v601 = vmul.f32 %v595, 1.442695
    %v602 = vpow.pop %v601
    %v603 = vmul.f32 %v596, 1.442695
    %v604 = vpow.pop %v603
    %v605 = vsel %vm167, %v598, 0.0
    %606 = vadd.xlane.f32.xlu0 %v605
    %v607 = vpop.xlane.xlu0 %606
    %v608 = vsel %vm167, %v600, 0.0
    %609 = vadd.xlane.f32.xlu0 %v608
    %v610 = vpop.xlane.xlu0 %609
    %v611 = vsel %vm167, %v602, 0.0
    %612 = vadd.xlane.f32.xlu0 %v611
    %v613 = vpop.xlane.xlu0 %612
    %v614 = vsel %vm167, %v604, 0.0
    %615 = vadd.xlane.f32.xlu0 %v614
    %v616 = vpop.xlane.xlu0 %615
    %v617 = vrcp.pop %v607
    %v618 = vrcp.pop %v610
    %v619 = vrcp.pop %v613
    %v620 = vrcp.pop %v616
    %v621 = vmul.f32 %v598, %v617
    %v622 = vmul.f32 %v600, %v618
    %v623 = vmul.f32 %v602, %v619
    %v624 = vmul.f32 %v604, %v620
    %v625 = vpack.c.bf16 %v622, %v621
    %v626 = vpack.c.bf16 %v624, %v623
    %627 = vrot.lane.b32.xlu0 %v391, 48
    %v628 = vpop.permute.xlu0 %627
    %629 = vrot.lane.b32.xlu0 %v392, 48
    %v630 = vpop.permute.xlu0 %629
    %v634 = vsel %vm167, %v625, 0
    %v637 = vsel %vm167, %v626, 0
    %639 = vmatprep.subr.bf16.mxu0 0
    %640 = vmatpush1.bf16.msra.mxu0 %v628
    %641 = vmatprep.subr.bf16.mxu0 0
    %642 = vmatpush1.bf16.msra.mxu0 %v630
    %643 = vmatprep.subr.bf16.mxu0 0
    %644 = vmatpush1.bf16.msra.mxu0 0
    %645 = vmatprep.subr.bf16.mxu0 0
    %646 = vmatpush1.bf16.msra.mxu0 0
    %647 = vmatprep.subr.bf16.mxu0 0
    %648 = vmatpush1.bf16.msra.mxu0 0
    %649 = vmatprep.subr.bf16.mxu0 0
    %650 = vmatpush1.bf16.msra.mxu0 0
    %651 = vmatprep.subr.bf16.mxu0 0
    %652 = vmatpush1.bf16.msra.mxu0 0
    %653 = vmatprep.subr.bf16.mxu0 0
    %654 = vmatpush1.bf16.msra.mxu0 0
    %655 = vmatprep.subr.bf16.mxu0 0
    %656 = vmatpush1.bf16.msra.mxu0 0
    %657 = vmatprep.subr.bf16.mxu0 0
    %658 = vmatpush1.bf16.msra.mxu0 0
    %659 = vmatprep.subr.bf16.mxu0 0
    %660 = vmatpush1.bf16.msra.mxu0 0
    %661 = vmatprep.subr.bf16.mxu0 0
    %662 = vmatpush1.bf16.msra.mxu0 0
    %663 = vmatprep.subr.bf16.mxu0 0
    %664 = vmatpush1.bf16.msra.mxu0 0
    %665 = vmatprep.subr.bf16.mxu0 0
    %666 = vmatpush1.bf16.msra.mxu0 0
    %667 = vmatprep.subr.bf16.mxu0 0
    %668 = vmatpush1.bf16.msra.mxu0 0
    %669 = vmatprep.subr.bf16.mxu0 0
    %670 = vmatpush1.bf16.msra.mxu0 0
    %671 = vmatprep.mubr.bf16.mxu0 0
    %672 = vmatmul.mubr.bf16.gmra.mrb[0].mxu0 %v634
    %v673 = vpop.f32.mrb[0].mxu0
    %v674 = vadd.f32 0.0, %v673
    %v675 = vpop.f32.mrb[0].mxu0
    %v676 = vpop.f32.mrb[0].mxu0
    %v677 = vadd.f32 0.0, %v676
    %v678 = vpop.f32.mrb[0].mxu0
    %679 = vmatprep.mubr.bf16.mxu0 0
    %680 = vmatmul.mubr.bf16.gmra.mrb[0].mxu0 %v637
    %v681 = vpop.f32.mrb[0].mxu0
    %v682 = vadd.f32 0.0, %v681
    %v683 = vpop.f32.mrb[0].mxu0
    %v684 = vpop.f32.mrb[0].mxu0
    %v685 = vadd.f32 0.0, %v684
    %v686 = vpop.f32.mrb[0].mxu0
    %687 = vdwg.mxu0
    %692 = vrot.lane.b32.xlu0 %v674, 16
    %v693 = vpop.permute.xlu0 %692
    %694 = vrot.lane.b32.xlu0 %v677, 16
    %v695 = vpop.permute.xlu0 %694
    %696 = vrot.lane.b32.xlu0 %v682, 16
    %v697 = vpop.permute.xlu0 %696
    %698 = vrot.lane.b32.xlu0 %v685, 16
    %v699 = vpop.permute.xlu0 %698
    %v704 = vsel %vm235, %v442, %v693
    %v705 = vsel %vm235, %v445, %v695
    %v706 = vsel %vm235, %v450, %v697
    %v707 = vsel %vm235, %v453, %v699
    %v708 = vpack.c.bf16 %v705, %v704
    %v709 = vpack.c.bf16 %v707, %v706
    %v710 = vlaneseq
    %v711 = vshrl.u32 %v710, 7
    %v712 = vsub.s32 0, %v711
    %v713 = vrot.slane %v146, %v712
    %v718 = vunpack.c.l.b16 %v128
    %v719 = vunpack.c.l.b16 %v129
    %v720 = vunpack.c.l.b16 %v130
    %v721 = vunpack.c.l.b16 %v131
    %v722 = vpack.c.b16 %v719, %v718
    %v723 = vpack.c.b16 %v721, %v720
    %v727 = vsel %vm167, %v708, 0
    %v730 = vsel %vm167, %v709, 0
    %732 = vmatprep.subr.bf16.mxu0 0
    %733 = vmatpush1.bf16.msra.mxu0 %v722
    %734 = vmatprep.subr.bf16.mxu0 0
    %735 = vmatpush1.bf16.msra.mxu0 %v723
    %736 = vmatprep.subr.bf16.mxu0 0
    %737 = vmatpush1.bf16.msra.mxu0 0
    %738 = vmatprep.subr.bf16.mxu0 0
    %739 = vmatpush1.bf16.msra.mxu0 0
    %740 = vmatprep.subr.bf16.mxu0 0
    %741 = vmatpush1.bf16.msra.mxu0 0
    %742 = vmatprep.subr.bf16.mxu0 0
    %743 = vmatpush1.bf16.msra.mxu0 0
    %744 = vmatprep.subr.bf16.mxu0 0
    %745 = vmatpush1.bf16.msra.mxu0 0
    %746 = vmatprep.subr.bf16.mxu0 0
    %747 = vmatpush1.bf16.msra.mxu0 0
    %748 = vmatprep.subr.bf16.mxu0 0
    %749 = vmatpush1.bf16.msra.mxu0 0
    %750 = vmatprep.subr.bf16.mxu0 0
    %751 = vmatpush1.bf16.msra.mxu0 0
    %752 = vmatprep.subr.bf16.mxu0 0
    %753 = vmatpush1.bf16.msra.mxu0 0
    %754 = vmatprep.subr.bf16.mxu0 0
    %755 = vmatpush1.bf16.msra.mxu0 0
    %756 = vmatprep.subr.bf16.mxu0 0
    %757 = vmatpush1.bf16.msra.mxu0 0
    %758 = vmatprep.subr.bf16.mxu0 0
    %759 = vmatpush1.bf16.msra.mxu0 0
    %760 = vmatprep.subr.bf16.mxu0 0
    %761 = vmatpush1.bf16.msra.mxu0 0
    %762 = vmatprep.subr.bf16.mxu0 0
    %763 = vmatpush1.bf16.msra.mxu0 0
    %764 = vmatprep.mubr.bf16.mxu0 0
    %765 = vmatmul.mubr.bf16.gmra.mrb[0].mxu0 %v727
    %v766 = vpop.f32.mrb[0].mxu0
    %v767 = vadd.f32 %v713, %v766
    %v768 = vpop.f32.mrb[0].mxu0
    %v769 = vpop.f32.mrb[0].mxu0
    %v770 = vadd.f32 %v713, %v769
    %v771 = vpop.f32.mrb[0].mxu0
    %772 = vmatprep.mubr.bf16.mxu0 0
    %773 = vmatmul.mubr.bf16.gmra.mrb[0].mxu0 %v730
    %v774 = vpop.f32.mrb[0].mxu0
    %v775 = vadd.f32 %v713, %v774
    %v776 = vpop.f32.mrb[0].mxu0
    %v777 = vpop.f32.mrb[0].mxu0
    %v778 = vadd.f32 %v713, %v777
    %v779 = vpop.f32.mrb[0].mxu0
    %780 = vdwg.mxu0
    %v781 = vadd.f32 %v120, %v767
    %v782 = vadd.f32 %v121, %v770
    %v783 = vadd.f32 %v122, %v775
    %v784 = vadd.f32 %v123, %v778
    %v785 = vsel %vm167, %v781, 0.0
    %786 = vadd.xlane.f32.xlu0 %v785
    %v787 = vpop.xlane.xlu0 %786
    %v788 = vsel %vm167, %v782, 0.0
    %789 = vadd.xlane.f32.xlu0 %v788
    %v790 = vpop.xlane.xlu0 %789
    %v791 = vsel %vm167, %v783, 0.0
    %792 = vadd.xlane.f32.xlu0 %v791
    %v793 = vpop.xlane.xlu0 %792
    %v794 = vsel %vm167, %v784, 0.0
    %795 = vadd.xlane.f32.xlu0 %v794
    %v796 = vpop.xlane.xlu0 %795
    %v797 = vrcp.pop 32.0
    %v798 = vmul.f32 %v787, %v797
    %v799 = vmul.f32 %v790, %v797
    %v800 = vmul.f32 %v793, %v797
    %v801 = vmul.f32 %v796, %v797
    %v802 = vsub.f32 %v781, %v798
    %v803 = vsub.f32 %v782, %v799
    %v804 = vsub.f32 %v783, %v800
    %v805 = vsub.f32 %v784, %v801
    %v806 = vmul.f32 %v802, %v802
    %v807 = vmul.f32 %v803, %v803
    %v808 = vmul.f32 %v804, %v804
    %v809 = vmul.f32 %v805, %v805
    %v810 = vsel %vm167, %v806, 0.0
    %811 = vadd.xlane.f32.xlu0 %v810
    %v812 = vpop.xlane.xlu0 %811
    %v813 = vsel %vm167, %v807, 0.0
    %814 = vadd.xlane.f32.xlu0 %v813
    %v815 = vpop.xlane.xlu0 %814
    %v816 = vsel %vm167, %v808, 0.0
    %817 = vadd.xlane.f32.xlu0 %v816
    %v818 = vpop.xlane.xlu0 %817
    %v819 = vsel %vm167, %v809, 0.0
    %820 = vadd.xlane.f32.xlu0 %v819
    %v821 = vpop.xlane.xlu0 %820
    %v822 = vmul.f32 %v812, %v797
    %v823 = vmul.f32 %v815, %v797
    %v824 = vmul.f32 %v818, %v797
    %v825 = vmul.f32 %v821, %v797
    %v826 = vadd.f32 %v822, 1e-05
    %v827 = vadd.f32 %v823, 1e-05
    %v828 = vadd.f32 %v824, 1e-05
    %v829 = vadd.f32 %v825, 1e-05
    %v830 = vrsqrt.pop %v826
    %v831 = vrsqrt.pop %v827
    %v832 = vrsqrt.pop %v828
    %v833 = vrsqrt.pop %v829
    %v834 = vmul.f32 %v802, %v830
    %v835 = vmul.f32 %v803, %v831
    %v836 = vmul.f32 %v804, %v832
    %v837 = vmul.f32 %v805, %v833
    %v838 = vlaneseq
    %v839 = vshrl.u32 %v838, 7
    %v840 = vsub.s32 1, %v839
    %v841 = vrot.slane %v146, %v840
    %v842 = vmul.f32 %v834, %v841
    %v843 = vmul.f32 %v835, %v841
    %v844 = vmul.f32 %v836, %v841
    %v845 = vmul.f32 %v837, %v841
    %v846 = vlaneseq
    %v847 = vshrl.u32 %v846, 7
    %v848 = vsub.s32 2, %v847
    %v849 = vrot.slane %v146, %v848
    %v850 = vadd.f32 %v842, %v849
    %v851 = vadd.f32 %v843, %v849
    %v852 = vadd.f32 %v844, %v849
    %v853 = vadd.f32 %v845, %v849
    %855 = vset.pattern.permute.xlu0 0
    %856 = vperm.xlu0 %855, %v71
    %v857 = vpop.permute.xlu0 %856
    %860 = vset.pattern.permute.xlu0 0
    %861 = vperm.xlu0 %860, %v72
    %v862 = vpop.permute.xlu0 %861
    %865 = vset.pattern.permute.xlu0 0
    %866 = vperm.xlu0 %865, %v73
    %v867 = vpop.permute.xlu0 %866
    %870 = vset.pattern.permute.xlu0 0
    %871 = vperm.xlu0 %870, %v74
    %v872 = vpop.permute.xlu0 %871
    %v874 = vmul.f32 %v850, %v857
    %v875 = vmul.f32 %v851, %v862
    %v876 = vmul.f32 %v852, %v867
    %v877 = vmul.f32 %v853, %v872
    %v878 = vpack.c.bf16 %v875, %v874
    %v879 = vpack.c.bf16 %v877, %v876
    %v881 = vlaneseq
    %v882 = vshrl.u32 %v881, 7
    %v883 = vsub.s32 0, %v882
    %v884 = vrot.slane %v145, %v883
    %v890 = vunpack.c.l.b16 %v132
    %v891 = vunpack.c.l.b16 %v133
    %v892 = vunpack.c.l.b16 %v134
    %v893 = vunpack.c.l.b16 %v135
    %v894 = vpack.c.b16 %v891, %v890
    %v895 = vpack.c.b16 %v893, %v892
    %v899 = vsel %vm167, %v878, 0
    %v902 = vsel %vm167, %v879, 0
    %904 = vmatprep.subr.bf16.mxu0 0
    %905 = vmatpush1.bf16.msra.mxu0 %v894
    %906 = vmatprep.subr.bf16.mxu0 0
    %907 = vmatpush1.bf16.msra.mxu0 %v895
    %908 = vmatprep.subr.bf16.mxu0 0
    %909 = vmatpush1.bf16.msra.mxu0 0
    %910 = vmatprep.subr.bf16.mxu0 0
    %911 = vmatpush1.bf16.msra.mxu0 0
    %912 = vmatprep.subr.bf16.mxu0 0
    %913 = vmatpush1.bf16.msra.mxu0 0
    %914 = vmatprep.subr.bf16.mxu0 0
    %915 = vmatpush1.bf16.msra.mxu0 0
    %916 = vmatprep.subr.bf16.mxu0 0
    %917 = vmatpush1.bf16.msra.mxu0 0
    %918 = vmatprep.subr.bf16.mxu0 0
    %919 = vmatpush1.bf16.msra.mxu0 0
    %920 = vmatprep.subr.bf16.mxu0 0
    %921 = vmatpush1.bf16.msra.mxu0 0
    %922 = vmatprep.subr.bf16.mxu0 0
    %923 = vmatpush1.bf16.msra.mxu0 0
    %924 = vmatprep.subr.bf16.mxu0 0
    %925 = vmatpush1.bf16.msra.mxu0 0
    %926 = vmatprep.subr.bf16.mxu0 0
    %927 = vmatpush1.bf16.msra.mxu0 0
    %928 = vmatprep.subr.bf16.mxu0 0
    %929 = vmatpush1.bf16.msra.mxu0 0
    %930 = vmatprep.subr.bf16.mxu0 0
    %931 = vmatpush1.bf16.msra.mxu0 0
    %932 = vmatprep.subr.bf16.mxu0 0
    %933 = vmatpush1.bf16.msra.mxu0 0
    %934 = vmatprep.subr.bf16.mxu0 0
    %935 = vmatpush1.bf16.msra.mxu0 0
    %936 = vmatprep.mubr.bf16.mxu0 0
    %937 = vmatmul.mubr.bf16.gmra.mrb[0].mxu0 %v899
    %v938 = vpop.f32.mrb[0].mxu0
    %v939 = vadd.f32 %v884, %v938
    %v940 = vpop.f32.mrb[0].mxu0
    %v941 = vpop.f32.mrb[0].mxu0
    %v942 = vadd.f32 %v884, %v941
    %v943 = vpop.f32.mrb[0].mxu0
    %944 = vmatprep.mubr.bf16.mxu0 0
    %945 = vmatmul.mubr.bf16.gmra.mrb[0].mxu0 %v902
    %v946 = vpop.f32.mrb[0].mxu0
    %v947 = vadd.f32 %v884, %v946
    %v948 = vpop.f32.mrb[0].mxu0
    %v949 = vpop.f32.mrb[0].mxu0
    %v950 = vadd.f32 %v884, %v949
    %v951 = vpop.f32.mrb[0].mxu0
    %952 = vdwg.mxu0
    %v953 = vmax.f32 %v939, 0.0
    %v954 = vmax.f32 %v942, 0.0
    %v955 = vmax.f32 %v947, 0.0
    %v956 = vmax.f32 %v950, 0.0
    %v957 = vpack.c.bf16 %v954, %v953
    %v958 = vpack.c.bf16 %v956, %v955
    %v959 = vlaneseq
    %v960 = vshrl.u32 %v959, 7
    %v961 = vsub.s32 3, %v960
    %v962 = vrot.slane %v146, %v961
    %v971 = vunpack.c.l.b16 %v136
    %v972 = vunpack.c.l.b16 %v137
    %v973 = vunpack.c.l.b16 %v138
    %v974 = vunpack.c.l.b16 %v139
    %v975 = vunpack.c.l.b16 %v140
    %v976 = vunpack.c.l.b16 %v141
    %v977 = vunpack.c.l.b16 %v142
    %v978 = vunpack.c.l.b16 %v143
    %v979 = vpack.c.b16 %v972, %v971
    %v980 = vpack.c.b16 %v974, %v973
    %v981 = vpack.c.b16 %v976, %v975
    %v982 = vpack.c.b16 %v978, %v977
    %vm987 = vcmask 523264
    %v989 = vsel %vm987, %v957, 0
    %v992 = vsel %vm987, %v958, 0
    %994 = vmatprep.subr.bf16.mxu0 0
    %995 = vmatpush1.bf16.msra.mxu0 %v979
    %996 = vmatprep.subr.bf16.mxu0 0
    %997 = vmatpush1.bf16.msra.mxu0 %v980
    %998 = vmatprep.subr.bf16.mxu0 0
    %999 = vmatpush1.bf16.msra.mxu0 %v981
    %1000 = vmatprep.subr.bf16.mxu0 0
    %1001 = vmatpush1.bf16.msra.mxu0 %v982
    %1002 = vmatprep.subr.bf16.mxu0 0
    %1003 = vmatpush1.bf16.msra.mxu0 0
    %1004 = vmatprep.subr.bf16.mxu0 0
    %1005 = vmatpush1.bf16.msra.mxu0 0
    %1006 = vmatprep.subr.bf16.mxu0 0
    %1007 = vmatpush1.bf16.msra.mxu0 0
    %1008 = vmatprep.subr.bf16.mxu0 0
    %1009 = vmatpush1.bf16.msra.mxu0 0
    %1010 = vmatprep.subr.bf16.mxu0 0
    %1011 = vmatpush1.bf16.msra.mxu0 0
    %1012 = vmatprep.subr.bf16.mxu0 0
    %1013 = vmatpush1.bf16.msra.mxu0 0
    %1014 = vmatprep.subr.bf16.mxu0 0
    %1015 = vmatpush1.bf16.msra.mxu0 0
    %1016 = vmatprep.subr.bf16.mxu0 0
    %1017 = vmatpush1.bf16.msra.mxu0 0
    %1018 = vmatprep.subr.bf16.mxu0 0
    %1019 = vmatpush1.bf16.msra.mxu0 0
    %1020 = vmatprep.subr.bf16.mxu0 0
    %1021 = vmatpush1.bf16.msra.mxu0 0
    %1022 = vmatprep.subr.bf16.mxu0 0
    %1023 = vmatpush1.bf16.msra.mxu0 0
    %1024 = vmatprep.subr.bf16.mxu0 0
    %1025 = vmatpush1.bf16.msra.mxu0 0
    %1026 = vmatprep.mubr.bf16.mxu0 0
    %1027 = vmatmul.mubr.bf16.gmra.mrb[0].mxu0 %v989
    %v1028 = vpop.f32.mrb[0].mxu0
    %v1029 = vadd.f32 %v962, %v1028
    %v1030 = vpop.f32.mrb[0].mxu0
    %v1031 = vpop.f32.mrb[0].mxu0
    %v1032 = vadd.f32 %v962, %v1031
    %v1033 = vpop.f32.mrb[0].mxu0
    %1034 = vmatprep.mubr.bf16.mxu0 0
    %1035 = vmatmul.mubr.bf16.gmra.mrb[0].mxu0 %v992
    %v1036 = vpop.f32.mrb[0].mxu0
    %v1037 = vadd.f32 %v962, %v1036
    %v1038 = vpop.f32.mrb[0].mxu0
    %v1039 = vpop.f32.mrb[0].mxu0
    %v1040 = vadd.f32 %v962, %v1039
    %v1041 = vpop.f32.mrb[0].mxu0
    %1042 = vdwg.mxu0
    %v1043 = vadd.f32 %v874, %v1029
    %v1044 = vadd.f32 %v875, %v1032
    %v1045 = vadd.f32 %v876, %v1037
    %v1046 = vadd.f32 %v877, %v1040
    %v1047 = vsel %vm167, %v1043, 0.0
    %1048 = vadd.xlane.f32.xlu0 %v1047
    %v1049 = vpop.xlane.xlu0 %1048
    %v1050 = vsel %vm167, %v1044, 0.0
    %1051 = vadd.xlane.f32.xlu0 %v1050
    %v1052 = vpop.xlane.xlu0 %1051
    %v1053 = vsel %vm167, %v1045, 0.0
    %1054 = vadd.xlane.f32.xlu0 %v1053
    %v1055 = vpop.xlane.xlu0 %1054
    %v1056 = vsel %vm167, %v1046, 0.0
    %1057 = vadd.xlane.f32.xlu0 %v1056
    %v1058 = vpop.xlane.xlu0 %1057
    %v1059 = vmul.f32 %v1049, %v797
    %v1060 = vmul.f32 %v1052, %v797
    %v1061 = vmul.f32 %v1055, %v797
    %v1062 = vmul.f32 %v1058, %v797
    %v1063 = vsub.f32 %v1043, %v1059
    %v1064 = vsub.f32 %v1044, %v1060
    %v1065 = vsub.f32 %v1045, %v1061
    %v1066 = vsub.f32 %v1046, %v1062
    %v1067 = vmul.f32 %v1063, %v1063
    %v1068 = vmul.f32 %v1064, %v1064
    %v1069 = vmul.f32 %v1065, %v1065
    %v1070 = vmul.f32 %v1066, %v1066
    %v1071 = vsel %vm167, %v1067, 0.0
    %1072 = vadd.xlane.f32.xlu0 %v1071
    %v1073 = vpop.xlane.xlu0 %1072
    %v1074 = vsel %vm167, %v1068, 0.0
    %1075 = vadd.xlane.f32.xlu0 %v1074
    %v1076 = vpop.xlane.xlu0 %1075
    %v1077 = vsel %vm167, %v1069, 0.0
    %1078 = vadd.xlane.f32.xlu0 %v1077
    %v1079 = vpop.xlane.xlu0 %1078
    %v1080 = vsel %vm167, %v1070, 0.0
    %1081 = vadd.xlane.f32.xlu0 %v1080
    %v1082 = vpop.xlane.xlu0 %1081
    %v1083 = vmul.f32 %v1073, %v797
    %v1084 = vmul.f32 %v1076, %v797
    %v1085 = vmul.f32 %v1079, %v797
    %v1086 = vmul.f32 %v1082, %v797
    %v1087 = vadd.f32 %v1083, 1e-05
    %v1088 = vadd.f32 %v1084, 1e-05
    %v1089 = vadd.f32 %v1085, 1e-05
    %v1090 = vadd.f32 %v1086, 1e-05
    %v1091 = vrsqrt.pop %v1087
    %v1092 = vrsqrt.pop %v1088
    %v1093 = vrsqrt.pop %v1089
    %v1094 = vrsqrt.pop %v1090
    %v1095 = vmul.f32 %v1063, %v1091
    %v1096 = vmul.f32 %v1064, %v1092
    %v1097 = vmul.f32 %v1065, %v1093
    %v1098 = vmul.f32 %v1066, %v1094
    %v1099 = vlaneseq
    %v1100 = vshrl.u32 %v1099, 7
    %v1101 = vsub.s32 4, %v1100
    %v1102 = vrot.slane %v146, %v1101
    %v1103 = vmul.f32 %v1095, %v1102
    %v1104 = vmul.f32 %v1096, %v1102
    %v1105 = vmul.f32 %v1097, %v1102
    %v1106 = vmul.f32 %v1098, %v1102
    %v1107 = vlaneseq
    %v1108 = vshrl.u32 %v1107, 7
    %v1109 = vsub.s32 5, %v1108
    %v1110 = vrot.slane %v146, %v1109
    %v1111 = vadd.f32 %v1103, %v1110
    %v1112 = vadd.f32 %v1104, %v1110
    %v1113 = vadd.f32 %v1105, %v1110
    %v1114 = vadd.f32 %v1106, %v1110
    %v1115 = vmul.f32 %v1111, %v857
    %v1116 = vmul.f32 %v1112, %v862
    %v1117 = vmul.f32 %v1113, %v867
    %v1118 = vmul.f32 %v1114, %v872
    %1120 = vset.pattern.permute.xlu0 0
    %1121 = vperm.xlu0 %1120, %v146
    %v1122 = vpop.permute.xlu0 %1121
    %v1123 = vrot.slane %v146, 6
    %v1124 = vrot.slane %v1122, 7
    %v1126 = vsel %vm167, %v1123, 0
    %v1129 = vsel %vm167, %v1115, 0
    %v1132 = vsel %vm167, %v1116, 0
    %v1135 = vsel %vm167, %v1117, 0
    %v1138 = vsel %vm167, %v1118, 0
    %1140 = vmatprep.subr.mxu0 0.0
    %1141 = vmatpush1.xpose.msra.mxu0 %v1129
    %1142 = vmatprep.subr.mxu0 0.0
    %1143 = vmatpush1.xpose.msra.mxu0 %v1132
    %1144 = vmatprep.subr.mxu0 0.0
    %1145 = vmatpush1.xpose.msra.mxu0 %v1135
    %1146 = vmatprep.subr.mxu0 0.0
    %1147 = vmatpush1.xpose.msra.mxu0 %v1138
    %1148 = vmatprep.subr.mxu0 0.0
    %1149 = vmatpush1.xpose.msra.mxu0 0.0
    %1150 = vmatprep.subr.mxu0 0.0
    %1151 = vmatpush1.xpose.msra.mxu0 0.0
    %1152 = vmatprep.subr.mxu0 0.0
    %1153 = vmatpush1.xpose.msra.mxu0 0.0
    %1154 = vmatprep.subr.mxu0 0.0
    %1155 = vmatpush1.xpose.msra.mxu0 0.0
    %1156 = vmatprep.subr.mxu0 0.0
    %1157 = vmatpush1.xpose.msra.mxu0 0.0
    %1158 = vmatprep.subr.mxu0 0.0
    %1159 = vmatpush1.xpose.msra.mxu0 0.0
    %1160 = vmatprep.subr.mxu0 0.0
    %1161 = vmatpush1.xpose.msra.mxu0 0.0
    %1162 = vmatprep.subr.mxu0 0.0
    %1163 = vmatpush1.xpose.msra.mxu0 0.0
    %1164 = vmatprep.subr.mxu0 0.0
    %1165 = vmatpush1.xpose.msra.mxu0 0.0
    %1166 = vmatprep.subr.mxu0 0.0
    %1167 = vmatpush1.xpose.msra.mxu0 0.0
    %1168 = vmatprep.subr.mxu0 0.0
    %1169 = vmatpush1.xpose.msra.mxu0 0.0
    %1170 = vmatprep.subr.mxu0 0.0
    %1171 = vmatpush1.xpose.msra.mxu0 0.0
    %1172 = vmatprep.subr.mxu0 0.0
    %1173 = vmatpush1.xpose.msra.mxu0 0.0
    %1174 = vmatprep.subr.mxu0 0.0
    %1175 = vmatpush1.xpose.msra.mxu0 0.0
    %1176 = vmatprep.subr.mxu0 0.0
    %1177 = vmatpush1.xpose.msra.mxu0 0.0
    %1178 = vmatprep.subr.mxu0 0.0
    %1179 = vmatpush1.xpose.msra.mxu0 0.0
    %1180 = vmatprep.subr.mxu0 0.0
    %1181 = vmatpush1.xpose.msra.mxu0 0.0
    %1182 = vmatprep.subr.mxu0 0.0
    %1183 = vmatpush1.xpose.msra.mxu0 0.0
    %1184 = vmatprep.subr.mxu0 0.0
    %1185 = vmatpush1.xpose.msra.mxu0 0.0
    %1186 = vmatprep.subr.mxu0 0.0
    %1187 = vmatpush1.xpose.msra.mxu0 0.0
    %1188 = vmatprep.subr.mxu0 0.0
    %1189 = vmatpush1.xpose.msra.mxu0 0.0
    %1190 = vmatprep.subr.mxu0 0.0
    %1191 = vmatpush1.xpose.msra.mxu0 0.0
    %1192 = vmatprep.subr.mxu0 0.0
    %1193 = vmatpush1.xpose.msra.mxu0 0.0
    %1194 = vmatprep.subr.mxu0 0.0
    %1195 = vmatpush1.xpose.msra.mxu0 0.0
    %1196 = vmatprep.subr.mxu0 0.0
    %1197 = vmatpush1.xpose.msra.mxu0 0.0
    %1198 = vmatprep.subr.mxu0 0.0
    %1199 = vmatpush1.xpose.msra.mxu0 0.0
    %1200 = vmatprep.subr.mxu0 0.0
    %1201 = vmatpush1.xpose.msra.mxu0 0.0
    %1202 = vmatprep.subr.mxu0 0.0
    %1203 = vmatpush1.xpose.msra.mxu0 0.0
    %1204 = vmatprep.mubr.f32.mxu0 0.0
    %1205 = vmatmul.mubr.f32.gmra.mrb[0].mxu0 %v1126
    %v1206 = vpop.f32.mrb[0].mxu0
    %v1207 = vadd.f32 %v1124, %v1206
    %v1208 = vpop.f32.mrb[0].mxu0
    %1209 = vdwg.mxu0
    %v1210 = vmul.f32 %v1207, %v77
    %v1211 = vmax.f32 %v1210, 0.0
    %vm1212 = vcmask 253952
    %1213 = vst.msk [vmem:[%s14] sm:$0x1] %vm1212, %v1211
    %v1214 = vadd.f32 %v54, %v52
    %v1215 = vadd.f32 %v55, %v53
    %v1216 = vadd.f32 %v56, %v52
    %v1217 = vadd.f32 %v57, %v53
    %s1218 = scalar_lea.vmem %s7, 16
    %v1219 = vld [vmem:[%s1218] sm:$0xf]
    %v1220 = vld [vmem:[%s1218 + $0x4] sm:$0xf]
    %v1221 = vld [vmem:[%s1218 + $0x8] sm:$0xf]
    %v1222 = vld [vmem:[%s1218 + $0xc] sm:$0xf]
    %s1223 = scalar_lea.vmem %s8, 16
    %v1224 = vld [vmem:[%s1223] sm:$0xf]
    %v1225 = vld [vmem:[%s1223 + $0x4] sm:$0xf]
    %v1226 = vld [vmem:[%s1223 + $0x8] sm:$0xf]
    %v1227 = vld [vmem:[%s1223 + $0xc] sm:$0xf]
    %s1228 = scalar_lea.vmem %s9, 16
    %v1229 = vld [vmem:[%s1228] sm:$0xf]
    %v1230 = vld [vmem:[%s1228 + $0x4] sm:$0xf]
    %v1231 = vld [vmem:[%s1228 + $0x8] sm:$0xf]
    %v1232 = vld [vmem:[%s1228 + $0xc] sm:$0xf]
    %s1233 = scalar_lea.vmem %s10, 32
    %v1234 = vld [vmem:[%s1233] sm:$0xf]
    %v1235 = vld [vmem:[%s1233 + $0x4] sm:$0xf]
    %v1236 = vld [vmem:[%s1233 + $0x8] sm:$0xf]
    %v1237 = vld [vmem:[%s1233 + $0xc] sm:$0xf]
    %v1238 = vld [vmem:[%s1233 + $0x10] sm:$0xf]
    %v1239 = vld [vmem:[%s1233 + $0x14] sm:$0xf]
    %v1240 = vld [vmem:[%s1233 + $0x18] sm:$0xf]
    %v1241 = vld [vmem:[%s1233 + $0x1c] sm:$0xf]
    %s1242 = scalar_lea.vmem %s11, 1
    %v1243 = vld [vmem:[%s1242] sm:$0x1]
    %s1244 = scalar_lea.vmem %s12, 1
    %v1245 = vld [vmem:[%s1244] sm:$0x1]
    %s1246 = scalar_lea.vmem %s13, 8
    %v1247 = vld [vmem:[%s1246] sm:$0xff]
    %v1248 = vpack.c.bf16 %v1215, %v1214
    %v1249 = vpack.c.bf16 %v1217, %v1216
    %v1251 = vlaneseq
    %v1252 = vshrl.u32 %v1251, 7
    %v1253 = vsub.s32 0, %v1252
    %v1254 = vrot.slane %v1243, %v1253
    %v1260 = vunpack.c.l.b16 %v1219
    %v1261 = vunpack.c.l.b16 %v1220
    %v1262 = vunpack.c.l.b16 %v1221
    %v1263 = vunpack.c.l.b16 %v1222
    %v1264 = vpack.c.b16 %v1261, %v1260
    %v1265 = vpack.c.b16 %v1263, %v1262
    %v1269 = vsel %vm167, %v1248, 0
    %v1272 = vsel %vm167, %v1249, 0
    %1274 = vmatprep.subr.bf16.mxu0 0
    %1275 = vmatpush1.bf16.msra.mxu0 %v1264
    %1276 = vmatprep.subr.bf16.mxu0 0
    %1277 = vmatpush1.bf16.msra.mxu0 %v1265
    %1278 = vmatprep.subr.bf16.mxu0 0
    %1279 = vmatpush1.bf16.msra.mxu0 0
    %1280 = vmatprep.subr.bf16.mxu0 0
    %1281 = vmatpush1.bf16.msra.mxu0 0
    %1282 = vmatprep.subr.bf16.mxu0 0
    %1283 = vmatpush1.bf16.msra.mxu0 0
    %1284 = vmatprep.subr.bf16.mxu0 0
    %1285 = vmatpush1.bf16.msra.mxu0 0
    %1286 = vmatprep.subr.bf16.mxu0 0
    %1287 = vmatpush1.bf16.msra.mxu0 0
    %1288 = vmatprep.subr.bf16.mxu0 0
    %1289 = vmatpush1.bf16.msra.mxu0 0
    %1290 = vmatprep.subr.bf16.mxu0 0
    %1291 = vmatpush1.bf16.msra.mxu0 0
    %1292 = vmatprep.subr.bf16.mxu0 0
    %1293 = vmatpush1.bf16.msra.mxu0 0
    %1294 = vmatprep.subr.bf16.mxu0 0
    %1295 = vmatpush1.bf16.msra.mxu0 0
    %1296 = vmatprep.subr.bf16.mxu0 0
    %1297 = vmatpush1.bf16.msra.mxu0 0
    %1298 = vmatprep.subr.bf16.mxu0 0
    %1299 = vmatpush1.bf16.msra.mxu0 0
    %1300 = vmatprep.subr.bf16.mxu0 0
    %1301 = vmatpush1.bf16.msra.mxu0 0
    %1302 = vmatprep.subr.bf16.mxu0 0
    %1303 = vmatpush1.bf16.msra.mxu0 0
    %1304 = vmatprep.subr.bf16.mxu0 0
    %1305 = vmatpush1.bf16.msra.mxu0 0
    %1306 = vmatprep.mubr.bf16.mxu0 0
    %1307 = vmatmul.mubr.bf16.gmra.mrb[0].mxu0 %v1269
    %v1308 = vpop.f32.mrb[0].mxu0
    %v1309 = vadd.f32 %v1254, %v1308
    %v1310 = vpop.f32.mrb[0].mxu0
    %v1311 = vpop.f32.mrb[0].mxu0
    %v1312 = vadd.f32 %v1254, %v1311
    %v1313 = vpop.f32.mrb[0].mxu0
    %1314 = vmatprep.mubr.bf16.mxu0 0
    %1315 = vmatmul.mubr.bf16.gmra.mrb[0].mxu0 %v1272
    %v1316 = vpop.f32.mrb[0].mxu0
    %v1317 = vadd.f32 %v1254, %v1316
    %v1318 = vpop.f32.mrb[0].mxu0
    %v1319 = vpop.f32.mrb[0].mxu0
    %v1320 = vadd.f32 %v1254, %v1319
    %v1321 = vpop.f32.mrb[0].mxu0
    %1322 = vdwg.mxu0
    %1327 = vrot.lane.b32.xlu0 %v1309, 96
    %v1328 = vpop.permute.xlu0 %1327
    %1329 = vrot.lane.b32.xlu0 %v1312, 96
    %v1330 = vpop.permute.xlu0 %1329
    %1331 = vrot.lane.b32.xlu0 %v1317, 96
    %v1332 = vpop.permute.xlu0 %1331
    %1333 = vrot.lane.b32.xlu0 %v1320, 96
    %v1334 = vpop.permute.xlu0 %1333
    %v1335 = vsel %vm235, %v1309, 0
    %v1337 = vsel %vm235, %v1312, 0
    %v1339 = vsel %vm235, %v1317, 0
    %v1341 = vsel %vm235, %v1320, 0
    %v1343 = vsel %vm235, %v1328, 0
    %v1345 = vsel %vm235, %v1330, 0
    %v1347 = vsel %vm235, %v1332, 0
    %v1349 = vsel %vm235, %v1334, 0
    %1351 = vmatprep.subr.mxu0 0.0
    %1352 = vmatpush1.xpose.msra.mxu0 %v1343
    %1353 = vmatprep.subr.mxu0 0.0
    %1354 = vmatpush1.xpose.msra.mxu0 %v1345
    %1355 = vmatprep.subr.mxu0 0.0
    %1356 = vmatpush1.xpose.msra.mxu0 %v1347
    %1357 = vmatprep.subr.mxu0 0.0
    %1358 = vmatpush1.xpose.msra.mxu0 %v1349
    %1359 = vmatprep.subr.mxu0 0.0
    %1360 = vmatpush1.xpose.msra.mxu0 0.0
    %1361 = vmatprep.subr.mxu0 0.0
    %1362 = vmatpush1.xpose.msra.mxu0 0.0
    %1363 = vmatprep.subr.mxu0 0.0
    %1364 = vmatpush1.xpose.msra.mxu0 0.0
    %1365 = vmatprep.subr.mxu0 0.0
    %1366 = vmatpush1.xpose.msra.mxu0 0.0
    %1367 = vmatprep.subr.mxu0 0.0
    %1368 = vmatpush1.xpose.msra.mxu0 0.0
    %1369 = vmatprep.subr.mxu0 0.0
    %1370 = vmatpush1.xpose.msra.mxu0 0.0
    %1371 = vmatprep.subr.mxu0 0.0
    %1372 = vmatpush1.xpose.msra.mxu0 0.0
    %1373 = vmatprep.subr.mxu0 0.0
    %1374 = vmatpush1.xpose.msra.mxu0 0.0
    %1375 = vmatprep.subr.mxu0 0.0
    %1376 = vmatpush1.xpose.msra.mxu0 0.0
    %1377 = vmatprep.subr.mxu0 0.0
    %1378 = vmatpush1.xpose.msra.mxu0 0.0
    %1379 = vmatprep.subr.mxu0 0.0
    %1380 = vmatpush1.xpose.msra.mxu0 0.0
    %1381 = vmatprep.subr.mxu0 0.0
    %1382 = vmatpush1.xpose.msra.mxu0 0.0
    %1383 = vmatprep.subr.mxu0 0.0
    %1384 = vmatpush1.xpose.msra.mxu0 0.0
    %1385 = vmatprep.subr.mxu0 0.0
    %1386 = vmatpush1.xpose.msra.mxu0 0.0
    %1387 = vmatprep.subr.mxu0 0.0
    %1388 = vmatpush1.xpose.msra.mxu0 0.0
    %1389 = vmatprep.subr.mxu0 0.0
    %1390 = vmatpush1.xpose.msra.mxu0 0.0
    %1391 = vmatprep.subr.mxu0 0.0
    %1392 = vmatpush1.xpose.msra.mxu0 0.0
    %1393 = vmatprep.subr.mxu0 0.0
    %1394 = vmatpush1.xpose.msra.mxu0 0.0
    %1395 = vmatprep.subr.mxu0 0.0
    %1396 = vmatpush1.xpose.msra.mxu0 0.0
    %1397 = vmatprep.subr.mxu0 0.0
    %1398 = vmatpush1.xpose.msra.mxu0 0.0
    %1399 = vmatprep.subr.mxu0 0.0
    %1400 = vmatpush1.xpose.msra.mxu0 0.0
    %1401 = vmatprep.subr.mxu0 0.0
    %1402 = vmatpush1.xpose.msra.mxu0 0.0
    %1403 = vmatprep.subr.mxu0 0.0
    %1404 = vmatpush1.xpose.msra.mxu0 0.0
    %1405 = vmatprep.subr.mxu0 0.0
    %1406 = vmatpush1.xpose.msra.mxu0 0.0
    %1407 = vmatprep.subr.mxu0 0.0
    %1408 = vmatpush1.xpose.msra.mxu0 0.0
    %1409 = vmatprep.subr.mxu0 0.0
    %1410 = vmatpush1.xpose.msra.mxu0 0.0
    %1411 = vmatprep.subr.mxu0 0.0
    %1412 = vmatpush1.xpose.msra.mxu0 0.0
    %1413 = vmatprep.subr.mxu0 0.0
    %1414 = vmatpush1.xpose.msra.mxu0 0.0
    %1415 = vmatprep.mubr.f32.mxu0 0.0
    %1416 = vmatmul.mubr.f32.gmra.mrb[0].mxu0 %v1335
    %v1417 = vpop.f32.mrb[0].mxu0
    %v1418 = vadd.f32 0.0, %v1417
    %v1419 = vpop.f32.mrb[0].mxu0
    %1420 = vmatprep.mubr.f32.mxu0 0.0
    %1421 = vmatmul.mubr.f32.gmra.mrb[0].mxu0 %v1337
    %v1422 = vpop.f32.mrb[0].mxu0
    %v1423 = vadd.f32 0.0, %v1422
    %v1424 = vpop.f32.mrb[0].mxu0
    %1425 = vmatprep.mubr.f32.mxu0 0.0
    %1426 = vmatmul.mubr.f32.gmra.mrb[0].mxu0 %v1339
    %v1427 = vpop.f32.mrb[0].mxu0
    %v1428 = vadd.f32 0.0, %v1427
    %v1429 = vpop.f32.mrb[0].mxu0
    %1430 = vmatprep.mubr.f32.mxu0 0.0
    %1431 = vmatmul.mubr.f32.gmra.mrb[0].mxu0 %v1341
    %v1432 = vpop.f32.mrb[0].mxu0
    %v1433 = vadd.f32 0.0, %v1432
    %v1434 = vpop.f32.mrb[0].mxu0
    %1435 = vdwg.mxu0
    %v1436 = vmul.f32 %v1418, 0.25
    %v1437 = vmul.f32 %v1423, 0.25
    %v1438 = vmul.f32 %v1428, 0.25
    %v1439 = vmul.f32 %v1433, 0.25
    %v1440 = vadd.f32 %v1436, %v108
    %v1441 = vadd.f32 %v1437, %v109
    %v1442 = vadd.f32 %v1438, %v110
    %v1443 = vadd.f32 %v1439, %v111
    %v1444 = vsel %vm167, %v1440, -inf
    %1445 = vmax.xlane.f32.xlu0 %v1444
    %v1446 = vpop.xlane.xlu0 %1445
    %v1447 = vsel %vm167, %v1441, -inf
    %1448 = vmax.xlane.f32.xlu0 %v1447
    %v1449 = vpop.xlane.xlu0 %1448
    %v1450 = vsel %vm167, %v1442, -inf
    %1451 = vmax.xlane.f32.xlu0 %v1450
    %v1452 = vpop.xlane.xlu0 %1451
    %v1453 = vsel %vm167, %v1443, -inf
    %1454 = vmax.xlane.f32.xlu0 %v1453
    %v1455 = vpop.xlane.xlu0 %1454
    %v1456 = vsub.f32 %v1440, %v1446
    %v1457 = vsub.f32 %v1441, %v1449
    %v1458 = vsub.f32 %v1442, %v1452
    %v1459 = vsub.f32 %v1443, %v1455
    %v1460 = vmul.f32 %v1456, 1.442695
    %v1461 = vpow.pop %v1460
    %v1462 = vmul.f32 %v1457, 1.442695
    %v1463 = vpow.pop %v1462
    %v1464 = vmul.f32 %v1458, 1.442695
    %v1465 = vpow.pop %v1464
    %v1466 = vmul.f32 %v1459, 1.442695
    %v1467 = vpow.pop %v1466
    %v1468 = vsel %vm167, %v1461, 0.0
    %1469 = vadd.xlane.f32.xlu0 %v1468
    %v1470 = vpop.xlane.xlu0 %1469
    %v1471 = vsel %vm167, %v1463, 0.0
    %1472 = vadd.xlane.f32.xlu0 %v1471
    %v1473 = vpop.xlane.xlu0 %1472
    %v1474 = vsel %vm167, %v1465, 0.0
    %1475 = vadd.xlane.f32.xlu0 %v1474
    %v1476 = vpop.xlane.xlu0 %1475
    %v1477 = vsel %vm167, %v1467, 0.0
    %1478 = vadd.xlane.f32.xlu0 %v1477
    %v1479 = vpop.xlane.xlu0 %1478
    %v1480 = vrcp.pop %v1470
    %v1481 = vrcp.pop %v1473
    %v1482 = vrcp.pop %v1476
    %v1483 = vrcp.pop %v1479
    %v1484 = vmul.f32 %v1461, %v1480
    %v1485 = vmul.f32 %v1463, %v1481
    %v1486 = vmul.f32 %v1465, %v1482
    %v1487 = vmul.f32 %v1467, %v1483
    %v1488 = vpack.c.bf16 %v1485, %v1484
    %v1489 = vpack.c.bf16 %v1487, %v1486
    %v1490 = vpack.c.bf16 %v1312, %v1309
    %v1491 = vpack.c.bf16 %v1320, %v1317
    %1494 = vrot.lane.b32.xlu0 %v1490, 64
    %v1495 = vpop.permute.xlu0 %1494
    %1496 = vrot.lane.b32.xlu0 %v1491, 64
    %v1497 = vpop.permute.xlu0 %1496
    %v1501 = vsel %vm167, %v1488, 0
    %v1504 = vsel %vm167, %v1489, 0
    %1506 = vmatprep.subr.bf16.mxu0 0
    %1507 = vmatpush1.bf16.msra.mxu0 %v1495
    %1508 = vmatprep.subr.bf16.mxu0 0
    %1509 = vmatpush1.bf16.msra.mxu0 %v1497
    %1510 = vmatprep.subr.bf16.mxu0 0
    %1511 = vmatpush1.bf16.msra.mxu0 0
    %1512 = vmatprep.subr.bf16.mxu0 0
    %1513 = vmatpush1.bf16.msra.mxu0 0
    %1514 = vmatprep.subr.bf16.mxu0 0
    %1515 = vmatpush1.bf16.msra.mxu0 0
    %1516 = vmatprep.subr.bf16.mxu0 0
    %1517 = vmatpush1.bf16.msra.mxu0 0
    %1518 = vmatprep.subr.bf16.mxu0 0
    %1519 = vmatpush1.bf16.msra.mxu0 0
    %1520 = vmatprep.subr.bf16.mxu0 0
    %1521 = vmatpush1.bf16.msra.mxu0 0
    %1522 = vmatprep.subr.bf16.mxu0 0
    %1523 = vmatpush1.bf16.msra.mxu0 0
    %1524 = vmatprep.subr.bf16.mxu0 0
    %1525 = vmatpush1.bf16.msra.mxu0 0
    %1526 = vmatprep.subr.bf16.mxu0 0
    %1527 = vmatpush1.bf16.msra.mxu0 0
    %1528 = vmatprep.subr.bf16.mxu0 0
    %1529 = vmatpush1.bf16.msra.mxu0 0
    %1530 = vmatprep.subr.bf16.mxu0 0
    %1531 = vmatpush1.bf16.msra.mxu0 0
    %1532 = vmatprep.subr.bf16.mxu0 0
    %1533 = vmatpush1.bf16.msra.mxu0 0
    %1534 = vmatprep.subr.bf16.mxu0 0
    %1535 = vmatpush1.bf16.msra.mxu0 0
    %1536 = vmatprep.subr.bf16.mxu0 0
    %1537 = vmatpush1.bf16.msra.mxu0 0
    %1538 = vmatprep.mubr.bf16.mxu0 0
    %1539 = vmatmul.mubr.bf16.gmra.mrb[0].mxu0 %v1501
    %v1540 = vpop.f32.mrb[0].mxu0
    %v1541 = vadd.f32 0.0, %v1540
    %v1542 = vpop.f32.mrb[0].mxu0
    %v1543 = vpop.f32.mrb[0].mxu0
    %v1544 = vadd.f32 0.0, %v1543
    %v1545 = vpop.f32.mrb[0].mxu0
    %1546 = vmatprep.mubr.bf16.mxu0 0
    %1547 = vmatmul.mubr.bf16.gmra.mrb[0].mxu0 %v1504
    %v1548 = vpop.f32.mrb[0].mxu0
    %v1549 = vadd.f32 0.0, %v1548
    %v1550 = vpop.f32.mrb[0].mxu0
    %v1551 = vpop.f32.mrb[0].mxu0
    %v1552 = vadd.f32 0.0, %v1551
    %v1553 = vpop.f32.mrb[0].mxu0
    %1554 = vdwg.mxu0
    %1555 = vrot.lane.b32.xlu0 %v1309, 112
    %v1556 = vpop.permute.xlu0 %1555
    %1557 = vrot.lane.b32.xlu0 %v1312, 112
    %v1558 = vpop.permute.xlu0 %1557
    %1559 = vrot.lane.b32.xlu0 %v1317, 112
    %v1560 = vpop.permute.xlu0 %1559
    %1561 = vrot.lane.b32.xlu0 %v1320, 112
    %v1562 = vpop.permute.xlu0 %1561
    %1563 = vrot.lane.b32.xlu0 %v1309, 80
    %v1564 = vpop.permute.xlu0 %1563
    %1565 = vrot.lane.b32.xlu0 %v1312, 80
    %v1566 = vpop.permute.xlu0 %1565
    %1567 = vrot.lane.b32.xlu0 %v1317, 80
    %v1568 = vpop.permute.xlu0 %1567
    %1569 = vrot.lane.b32.xlu0 %v1320, 80
    %v1570 = vpop.permute.xlu0 %1569
    %v1571 = vsel %vm235, %v1556, 0
    %v1573 = vsel %vm235, %v1558, 0
    %v1575 = vsel %vm235, %v1560, 0
    %v1577 = vsel %vm235, %v1562, 0
    %v1579 = vsel %vm235, %v1564, 0
    %v1581 = vsel %vm235, %v1566, 0
    %v1583 = vsel %vm235, %v1568, 0
    %v1585 = vsel %vm235, %v1570, 0
    %1587 = vmatprep.subr.mxu0 0.0
    %1588 = vmatpush1.xpose.msra.mxu0 %v1579
    %1589 = vmatprep.subr.mxu0 0.0
    %1590 = vmatpush1.xpose.msra.mxu0 %v1581
    %1591 = vmatprep.subr.mxu0 0.0
    %1592 = vmatpush1.xpose.msra.mxu0 %v1583
    %1593 = vmatprep.subr.mxu0 0.0
    %1594 = vmatpush1.xpose.msra.mxu0 %v1585
    %1595 = vmatprep.subr.mxu0 0.0
    %1596 = vmatpush1.xpose.msra.mxu0 0.0
    %1597 = vmatprep.subr.mxu0 0.0
    %1598 = vmatpush1.xpose.msra.mxu0 0.0
    %1599 = vmatprep.subr.mxu0 0.0
    %1600 = vmatpush1.xpose.msra.mxu0 0.0
    %1601 = vmatprep.subr.mxu0 0.0
    %1602 = vmatpush1.xpose.msra.mxu0 0.0
    %1603 = vmatprep.subr.mxu0 0.0
    %1604 = vmatpush1.xpose.msra.mxu0 0.0
    %1605 = vmatprep.subr.mxu0 0.0
    %1606 = vmatpush1.xpose.msra.mxu0 0.0
    %1607 = vmatprep.subr.mxu0 0.0
    %1608 = vmatpush1.xpose.msra.mxu0 0.0
    %1609 = vmatprep.subr.mxu0 0.0
    %1610 = vmatpush1.xpose.msra.mxu0 0.0
    %1611 = vmatprep.subr.mxu0 0.0
    %1612 = vmatpush1.xpose.msra.mxu0 0.0
    %1613 = vmatprep.subr.mxu0 0.0
    %1614 = vmatpush1.xpose.msra.mxu0 0.0
    %1615 = vmatprep.subr.mxu0 0.0
    %1616 = vmatpush1.xpose.msra.mxu0 0.0
    %1617 = vmatprep.subr.mxu0 0.0
    %1618 = vmatpush1.xpose.msra.mxu0 0.0
    %1619 = vmatprep.subr.mxu0 0.0
    %1620 = vmatpush1.xpose.msra.mxu0 0.0
    %1621 = vmatprep.subr.mxu0 0.0
    %1622 = vmatpush1.xpose.msra.mxu0 0.0
    %1623 = vmatprep.subr.mxu0 0.0
    %1624 = vmatpush1.xpose.msra.mxu0 0.0
    %1625 = vmatprep.subr.mxu0 0.0
    %1626 = vmatpush1.xpose.msra.mxu0 0.0
    %1627 = vmatprep.subr.mxu0 0.0
    %1628 = vmatpush1.xpose.msra.mxu0 0.0
    %1629 = vmatprep.subr.mxu0 0.0
    %1630 = vmatpush1.xpose.msra.mxu0 0.0
    %1631 = vmatprep.subr.mxu0 0.0
    %1632 = vmatpush1.xpose.msra.mxu0 0.0
    %1633 = vmatprep.subr.mxu0 0.0
    %1634 = vmatpush1.xpose.msra.mxu0 0.0
    %1635 = vmatprep.subr.mxu0 0.0
    %1636 = vmatpush1.xpose.msra.mxu0 0.0
    %1637 = vmatprep.subr.mxu0 0.0
    %1638 = vmatpush1.xpose.msra.mxu0 0.0
    %1639 = vmatprep.subr.mxu0 0.0
    %1640 = vmatpush1.xpose.msra.mxu0 0.0
    %1641 = vmatprep.subr.mxu0 0.0
    %1642 = vmatpush1.xpose.msra.mxu0 0.0
    %1643 = vmatprep.subr.mxu0 0.0
    %1644 = vmatpush1.xpose.msra.mxu0 0.0
    %1645 = vmatprep.subr.mxu0 0.0
    %1646 = vmatpush1.xpose.msra.mxu0 0.0
    %1647 = vmatprep.subr.mxu0 0.0
    %1648 = vmatpush1.xpose.msra.mxu0 0.0
    %1649 = vmatprep.subr.mxu0 0.0
    %1650 = vmatpush1.xpose.msra.mxu0 0.0
    %1651 = vmatprep.mubr.f32.mxu0 0.0
    %1652 = vmatmul.mubr.f32.gmra.mrb[0].mxu0 %v1571
    %v1653 = vpop.f32.mrb[0].mxu0
    %v1654 = vadd.f32 0.0, %v1653
    %v1655 = vpop.f32.mrb[0].mxu0
    %1656 = vmatprep.mubr.f32.mxu0 0.0
    %1657 = vmatmul.mubr.f32.gmra.mrb[0].mxu0 %v1573
    %v1658 = vpop.f32.mrb[0].mxu0
    %v1659 = vadd.f32 0.0, %v1658
    %v1660 = vpop.f32.mrb[0].mxu0
    %1661 = vmatprep.mubr.f32.mxu0 0.0
    %1662 = vmatmul.mubr.f32.gmra.mrb[0].mxu0 %v1575
    %v1663 = vpop.f32.mrb[0].mxu0
    %v1664 = vadd.f32 0.0, %v1663
    %v1665 = vpop.f32.mrb[0].mxu0
    %1666 = vmatprep.mubr.f32.mxu0 0.0
    %1667 = vmatmul.mubr.f32.gmra.mrb[0].mxu0 %v1577
    %v1668 = vpop.f32.mrb[0].mxu0
    %v1669 = vadd.f32 0.0, %v1668
    %v1670 = vpop.f32.mrb[0].mxu0
    %1671 = vdwg.mxu0
    %v1672 = vmul.f32 %v1654, 0.25
    %v1673 = vmul.f32 %v1659, 0.25
    %v1674 = vmul.f32 %v1664, 0.25
    %v1675 = vmul.f32 %v1669, 0.25
    %v1676 = vadd.f32 %v1672, %v108
    %v1677 = vadd.f32 %v1673, %v109
    %v1678 = vadd.f32 %v1674, %v110
    %v1679 = vadd.f32 %v1675, %v111
    %v1680 = vsel %vm167, %v1676, -inf
    %1681 = vmax.xlane.f32.xlu0 %v1680
    %v1682 = vpop.xlane.xlu0 %1681
    %v1683 = vsel %vm167, %v1677, -inf
    %1684 = vmax.xlane.f32.xlu0 %v1683
    %v1685 = vpop.xlane.xlu0 %1684
    %v1686 = vsel %vm167, %v1678, -inf
    %1687 = vmax.xlane.f32.xlu0 %v1686
    %v1688 = vpop.xlane.xlu0 %1687
    %v1689 = vsel %vm167, %v1679, -inf
    %1690 = vmax.xlane.f32.xlu0 %v1689
    %v1691 = vpop.xlane.xlu0 %1690
    %v1692 = vsub.f32 %v1676, %v1682
    %v1693 = vsub.f32 %v1677, %v1685
    %v1694 = vsub.f32 %v1678, %v1688
    %v1695 = vsub.f32 %v1679, %v1691
    %v1696 = vmul.f32 %v1692, 1.442695
    %v1697 = vpow.pop %v1696
    %v1698 = vmul.f32 %v1693, 1.442695
    %v1699 = vpow.pop %v1698
    %v1700 = vmul.f32 %v1694, 1.442695
    %v1701 = vpow.pop %v1700
    %v1702 = vmul.f32 %v1695, 1.442695
    %v1703 = vpow.pop %v1702
    %v1704 = vsel %vm167, %v1697, 0.0
    %1705 = vadd.xlane.f32.xlu0 %v1704
    %v1706 = vpop.xlane.xlu0 %1705
    %v1707 = vsel %vm167, %v1699, 0.0
    %1708 = vadd.xlane.f32.xlu0 %v1707
    %v1709 = vpop.xlane.xlu0 %1708
    %v1710 = vsel %vm167, %v1701, 0.0
    %1711 = vadd.xlane.f32.xlu0 %v1710
    %v1712 = vpop.xlane.xlu0 %1711
    %v1713 = vsel %vm167, %v1703, 0.0
    %1714 = vadd.xlane.f32.xlu0 %v1713
    %v1715 = vpop.xlane.xlu0 %1714
    %v1716 = vrcp.pop %v1706
    %v1717 = vrcp.pop %v1709
    %v1718 = vrcp.pop %v1712
    %v1719 = vrcp.pop %v1715
    %v1720 = vmul.f32 %v1697, %v1716
    %v1721 = vmul.f32 %v1699, %v1717
    %v1722 = vmul.f32 %v1701, %v1718
    %v1723 = vmul.f32 %v1703, %v1719
    %v1724 = vpack.c.bf16 %v1721, %v1720
    %v1725 = vpack.c.bf16 %v1723, %v1722
    %1726 = vrot.lane.b32.xlu0 %v1490, 48
    %v1727 = vpop.permute.xlu0 %1726
    %1728 = vrot.lane.b32.xlu0 %v1491, 48
    %v1729 = vpop.permute.xlu0 %1728
    %v1733 = vsel %vm167, %v1724, 0
    %v1736 = vsel %vm167, %v1725, 0
    %1738 = vmatprep.subr.bf16.mxu0 0
    %1739 = vmatpush1.bf16.msra.mxu0 %v1727
    %1740 = vmatprep.subr.bf16.mxu0 0
    %1741 = vmatpush1.bf16.msra.mxu0 %v1729
    %1742 = vmatprep.subr.bf16.mxu0 0
    %1743 = vmatpush1.bf16.msra.mxu0 0
    %1744 = vmatprep.subr.bf16.mxu0 0
    %1745 = vmatpush1.bf16.msra.mxu0 0
    %1746 = vmatprep.subr.bf16.mxu0 0
    %1747 = vmatpush1.bf16.msra.mxu0 0
    %1748 = vmatprep.subr.bf16.mxu0 0
    %1749 = vmatpush1.bf16.msra.mxu0 0
    %1750 = vmatprep.subr.bf16.mxu0 0
    %1751 = vmatpush1.bf16.msra.mxu0 0
    %1752 = vmatprep.subr.bf16.mxu0 0
    %1753 = vmatpush1.bf16.msra.mxu0 0
    %1754 = vmatprep.subr.bf16.mxu0 0
    %1755 = vmatpush1.bf16.msra.mxu0 0
    %1756 = vmatprep.subr.bf16.mxu0 0
    %1757 = vmatpush1.bf16.msra.mxu0 0
    %1758 = vmatprep.subr.bf16.mxu0 0
    %1759 = vmatpush1.bf16.msra.mxu0 0
    %1760 = vmatprep.subr.bf16.mxu0 0
    %1761 = vmatpush1.bf16.msra.mxu0 0
    %1762 = vmatprep.subr.bf16.mxu0 0
    %1763 = vmatpush1.bf16.msra.mxu0 0
    %1764 = vmatprep.subr.bf16.mxu0 0
    %1765 = vmatpush1.bf16.msra.mxu0 0
    %1766 = vmatprep.subr.bf16.mxu0 0
    %1767 = vmatpush1.bf16.msra.mxu0 0
    %1768 = vmatprep.subr.bf16.mxu0 0
    %1769 = vmatpush1.bf16.msra.mxu0 0
    %1770 = vmatprep.mubr.bf16.mxu0 0
    %1771 = vmatmul.mubr.bf16.gmra.mrb[0].mxu0 %v1733
    %v1772 = vpop.f32.mrb[0].mxu0
    %v1773 = vadd.f32 0.0, %v1772
    %v1774 = vpop.f32.mrb[0].mxu0
    %v1775 = vpop.f32.mrb[0].mxu0
    %v1776 = vadd.f32 0.0, %v1775
    %v1777 = vpop.f32.mrb[0].mxu0
    %1778 = vmatprep.mubr.bf16.mxu0 0
    %1779 = vmatmul.mubr.bf16.gmra.mrb[0].mxu0 %v1736
    %v1780 = vpop.f32.mrb[0].mxu0
    %v1781 = vadd.f32 0.0, %v1780
    %v1782 = vpop.f32.mrb[0].mxu0
    %v1783 = vpop.f32.mrb[0].mxu0
    %v1784 = vadd.f32 0.0, %v1783
    %v1785 = vpop.f32.mrb[0].mxu0
    %1786 = vdwg.mxu0
    %1791 = vrot.lane.b32.xlu0 %v1773, 16
    %v1792 = vpop.permute.xlu0 %1791
    %1793 = vrot.lane.b32.xlu0 %v1776, 16
    %v1794 = vpop.permute.xlu0 %1793
    %1795 = vrot.lane.b32.xlu0 %v1781, 16
    %v1796 = vpop.permute.xlu0 %1795
    %1797 = vrot.lane.b32.xlu0 %v1784, 16
    %v1798 = vpop.permute.xlu0 %1797
    %v1803 = vsel %vm235, %v1541, %v1792
    %v1804 = vsel %vm235, %v1544, %v1794
    %v1805 = vsel %vm235, %v1549, %v1796
    %v1806 = vsel %vm235, %v1552, %v1798
    %v1807 = vpack.c.bf16 %v1804, %v1803
    %v1808 = vpack.c.bf16 %v1806, %v1805
    %v1809 = vlaneseq
    %v1810 = vshrl.u32 %v1809, 7
    %v1811 = vsub.s32 0, %v1810
    %v1812 = vrot.slane %v1247, %v1811
    %v1817 = vunpack.c.l.b16 %v1224
    %v1818 = vunpack.c.l.b16 %v1225
    %v1819 = vunpack.c.l.b16 %v1226
    %v1820 = vunpack.c.l.b16 %v1227
    %v1821 = vpack.c.b16 %v1818, %v1817
    %v1822 = vpack.c.b16 %v1820, %v1819
    %v1826 = vsel %vm167, %v1807, 0
    %v1829 = vsel %vm167, %v1808, 0
    %1831 = vmatprep.subr.bf16.mxu0 0
    %1832 = vmatpush1.bf16.msra.mxu0 %v1821
    %1833 = vmatprep.subr.bf16.mxu0 0
    %1834 = vmatpush1.bf16.msra.mxu0 %v1822
    %1835 = vmatprep.subr.bf16.mxu0 0
    %1836 = vmatpush1.bf16.msra.mxu0 0
    %1837 = vmatprep.subr.bf16.mxu0 0
    %1838 = vmatpush1.bf16.msra.mxu0 0
    %1839 = vmatprep.subr.bf16.mxu0 0
    %1840 = vmatpush1.bf16.msra.mxu0 0
    %1841 = vmatprep.subr.bf16.mxu0 0
    %1842 = vmatpush1.bf16.msra.mxu0 0
    %1843 = vmatprep.subr.bf16.mxu0 0
    %1844 = vmatpush1.bf16.msra.mxu0 0
    %1845 = vmatprep.subr.bf16.mxu0 0
    %1846 = vmatpush1.bf16.msra.mxu0 0
    %1847 = vmatprep.subr.bf16.mxu0 0
    %1848 = vmatpush1.bf16.msra.mxu0 0
    %1849 = vmatprep.subr.bf16.mxu0 0
    %1850 = vmatpush1.bf16.msra.mxu0 0
    %1851 = vmatprep.subr.bf16.mxu0 0
    %1852 = vmatpush1.bf16.msra.mxu0 0
    %1853 = vmatprep.subr.bf16.mxu0 0
    %1854 = vmatpush1.bf16.msra.mxu0 0
    %1855 = vmatprep.subr.bf16.mxu0 0
    %1856 = vmatpush1.bf16.msra.mxu0 0
    %1857 = vmatprep.subr.bf16.mxu0 0
    %1858 = vmatpush1.bf16.msra.mxu0 0
    %1859 = vmatprep.subr.bf16.mxu0 0
    %1860 = vmatpush1.bf16.msra.mxu0 0
    %1861 = vmatprep.subr.bf16.mxu0 0
    %1862 = vmatpush1.bf16.msra.mxu0 0
    %1863 = vmatprep.mubr.bf16.mxu0 0
    %1864 = vmatmul.mubr.bf16.gmra.mrb[0].mxu0 %v1826
    %v1865 = vpop.f32.mrb[0].mxu0
    %v1866 = vadd.f32 %v1812, %v1865
    %v1867 = vpop.f32.mrb[0].mxu0
    %v1868 = vpop.f32.mrb[0].mxu0
    %v1869 = vadd.f32 %v1812, %v1868
    %v1870 = vpop.f32.mrb[0].mxu0
    %1871 = vmatprep.mubr.bf16.mxu0 0
    %1872 = vmatmul.mubr.bf16.gmra.mrb[0].mxu0 %v1829
    %v1873 = vpop.f32.mrb[0].mxu0
    %v1874 = vadd.f32 %v1812, %v1873
    %v1875 = vpop.f32.mrb[0].mxu0
    %v1876 = vpop.f32.mrb[0].mxu0
    %v1877 = vadd.f32 %v1812, %v1876
    %v1878 = vpop.f32.mrb[0].mxu0
    %1879 = vdwg.mxu0
    %v1880 = vadd.f32 %v1214, %v1866
    %v1881 = vadd.f32 %v1215, %v1869
    %v1882 = vadd.f32 %v1216, %v1874
    %v1883 = vadd.f32 %v1217, %v1877
    %v1884 = vsel %vm167, %v1880, 0.0
    %1885 = vadd.xlane.f32.xlu0 %v1884
    %v1886 = vpop.xlane.xlu0 %1885
    %v1887 = vsel %vm167, %v1881, 0.0
    %1888 = vadd.xlane.f32.xlu0 %v1887
    %v1889 = vpop.xlane.xlu0 %1888
    %v1890 = vsel %vm167, %v1882, 0.0
    %1891 = vadd.xlane.f32.xlu0 %v1890
    %v1892 = vpop.xlane.xlu0 %1891
    %v1893 = vsel %vm167, %v1883, 0.0
    %1894 = vadd.xlane.f32.xlu0 %v1893
    %v1895 = vpop.xlane.xlu0 %1894
    %v1896 = vmul.f32 %v1886, %v797
    %v1897 = vmul.f32 %v1889, %v797
    %v1898 = vmul.f32 %v1892, %v797
    %v1899 = vmul.f32 %v1895, %v797
    %v1900 = vsub.f32 %v1880, %v1896
    %v1901 = vsub.f32 %v1881, %v1897
    %v1902 = vsub.f32 %v1882, %v1898
    %v1903 = vsub.f32 %v1883, %v1899
    %v1904 = vmul.f32 %v1900, %v1900
    %v1905 = vmul.f32 %v1901, %v1901
    %v1906 = vmul.f32 %v1902, %v1902
    %v1907 = vmul.f32 %v1903, %v1903
    %v1908 = vsel %vm167, %v1904, 0.0
    %1909 = vadd.xlane.f32.xlu0 %v1908
    %v1910 = vpop.xlane.xlu0 %1909
    %v1911 = vsel %vm167, %v1905, 0.0
    %1912 = vadd.xlane.f32.xlu0 %v1911
    %v1913 = vpop.xlane.xlu0 %1912
    %v1914 = vsel %vm167, %v1906, 0.0
    %1915 = vadd.xlane.f32.xlu0 %v1914
    %v1916 = vpop.xlane.xlu0 %1915
    %v1917 = vsel %vm167, %v1907, 0.0
    %1918 = vadd.xlane.f32.xlu0 %v1917
    %v1919 = vpop.xlane.xlu0 %1918
    %v1920 = vmul.f32 %v1910, %v797
    %v1921 = vmul.f32 %v1913, %v797
    %v1922 = vmul.f32 %v1916, %v797
    %v1923 = vmul.f32 %v1919, %v797
    %v1924 = vadd.f32 %v1920, 1e-05
    %v1925 = vadd.f32 %v1921, 1e-05
    %v1926 = vadd.f32 %v1922, 1e-05
    %v1927 = vadd.f32 %v1923, 1e-05
    %v1928 = vrsqrt.pop %v1924
    %v1929 = vrsqrt.pop %v1925
    %v1930 = vrsqrt.pop %v1926
    %v1931 = vrsqrt.pop %v1927
    %v1932 = vmul.f32 %v1900, %v1928
    %v1933 = vmul.f32 %v1901, %v1929
    %v1934 = vmul.f32 %v1902, %v1930
    %v1935 = vmul.f32 %v1903, %v1931
    %v1936 = vlaneseq
    %v1937 = vshrl.u32 %v1936, 7
    %v1938 = vsub.s32 1, %v1937
    %v1939 = vrot.slane %v1247, %v1938
    %v1940 = vmul.f32 %v1932, %v1939
    %v1941 = vmul.f32 %v1933, %v1939
    %v1942 = vmul.f32 %v1934, %v1939
    %v1943 = vmul.f32 %v1935, %v1939
    %v1944 = vlaneseq
    %v1945 = vshrl.u32 %v1944, 7
    %v1946 = vsub.s32 2, %v1945
    %v1947 = vrot.slane %v1247, %v1946
    %v1948 = vadd.f32 %v1940, %v1947
    %v1949 = vadd.f32 %v1941, %v1947
    %v1950 = vadd.f32 %v1942, %v1947
    %v1951 = vadd.f32 %v1943, %v1947
    %v1952 = vmul.f32 %v1948, %v857
    %v1953 = vmul.f32 %v1949, %v862
    %v1954 = vmul.f32 %v1950, %v867
    %v1955 = vmul.f32 %v1951, %v872
    %v1956 = vpack.c.bf16 %v1953, %v1952
    %v1957 = vpack.c.bf16 %v1955, %v1954
    %v1959 = vlaneseq
    %v1960 = vshrl.u32 %v1959, 7
    %v1961 = vsub.s32 0, %v1960
    %v1962 = vrot.slane %v1245, %v1961
    %v1968 = vunpack.c.l.b16 %v1229
    %v1969 = vunpack.c.l.b16 %v1230
    %v1970 = vunpack.c.l.b16 %v1231
    %v1971 = vunpack.c.l.b16 %v1232
    %v1972 = vpack.c.b16 %v1969, %v1968
    %v1973 = vpack.c.b16 %v1971, %v1970
    %v1977 = vsel %vm167, %v1956, 0
    %v1980 = vsel %vm167, %v1957, 0
    %1982 = vmatprep.subr.bf16.mxu0 0
    %1983 = vmatpush1.bf16.msra.mxu0 %v1972
    %1984 = vmatprep.subr.bf16.mxu0 0
    %1985 = vmatpush1.bf16.msra.mxu0 %v1973
    %1986 = vmatprep.subr.bf16.mxu0 0
    %1987 = vmatpush1.bf16.msra.mxu0 0
    %1988 = vmatprep.subr.bf16.mxu0 0
    %1989 = vmatpush1.bf16.msra.mxu0 0
    %1990 = vmatprep.subr.bf16.mxu0 0
    %1991 = vmatpush1.bf16.msra.mxu0 0
    %1992 = vmatprep.subr.bf16.mxu0 0
    %1993 = vmatpush1.bf16.msra.mxu0 0
    %1994 = vmatprep.subr.bf16.mxu0 0
    %1995 = vmatpush1.bf16.msra.mxu0 0
    %1996 = vmatprep.subr.bf16.mxu0 0
    %1997 = vmatpush1.bf16.msra.mxu0 0
    %1998 = vmatprep.subr.bf16.mxu0 0
    %1999 = vmatpush1.bf16.msra.mxu0 0
    %2000 = vmatprep.subr.bf16.mxu0 0
    %2001 = vmatpush1.bf16.msra.mxu0 0
    %2002 = vmatprep.subr.bf16.mxu0 0
    %2003 = vmatpush1.bf16.msra.mxu0 0
    %2004 = vmatprep.subr.bf16.mxu0 0
    %2005 = vmatpush1.bf16.msra.mxu0 0
    %2006 = vmatprep.subr.bf16.mxu0 0
    %2007 = vmatpush1.bf16.msra.mxu0 0
    %2008 = vmatprep.subr.bf16.mxu0 0
    %2009 = vmatpush1.bf16.msra.mxu0 0
    %2010 = vmatprep.subr.bf16.mxu0 0
    %2011 = vmatpush1.bf16.msra.mxu0 0
    %2012 = vmatprep.subr.bf16.mxu0 0
    %2013 = vmatpush1.bf16.msra.mxu0 0
    %2014 = vmatprep.mubr.bf16.mxu0 0
    %2015 = vmatmul.mubr.bf16.gmra.mrb[0].mxu0 %v1977
    %v2016 = vpop.f32.mrb[0].mxu0
    %v2017 = vadd.f32 %v1962, %v2016
    %v2018 = vpop.f32.mrb[0].mxu0
    %v2019 = vpop.f32.mrb[0].mxu0
    %v2020 = vadd.f32 %v1962, %v2019
    %v2021 = vpop.f32.mrb[0].mxu0
    %2022 = vmatprep.mubr.bf16.mxu0 0
    %2023 = vmatmul.mubr.bf16.gmra.mrb[0].mxu0 %v1980
    %v2024 = vpop.f32.mrb[0].mxu0
    %v2025 = vadd.f32 %v1962, %v2024
    %v2026 = vpop.f32.mrb[0].mxu0
    %v2027 = vpop.f32.mrb[0].mxu0
    %v2028 = vadd.f32 %v1962, %v2027
    %v2029 = vpop.f32.mrb[0].mxu0
    %2030 = vdwg.mxu0
    %v2031 = vmax.f32 %v2017, 0.0
    %v2032 = vmax.f32 %v2020, 0.0
    %v2033 = vmax.f32 %v2025, 0.0
    %v2034 = vmax.f32 %v2028, 0.0
    %v2035 = vpack.c.bf16 %v2032, %v2031
    %v2036 = vpack.c.bf16 %v2034, %v2033
    %v2037 = vlaneseq
    %v2038 = vshrl.u32 %v2037, 7
    %v2039 = vsub.s32 3, %v2038
    %v2040 = vrot.slane %v1247, %v2039
    %v2049 = vunpack.c.l.b16 %v1234
    %v2050 = vunpack.c.l.b16 %v1235
    %v2051 = vunpack.c.l.b16 %v1236
    %v2052 = vunpack.c.l.b16 %v1237
    %v2053 = vunpack.c.l.b16 %v1238
    %v2054 = vunpack.c.l.b16 %v1239
    %v2055 = vunpack.c.l.b16 %v1240
    %v2056 = vunpack.c.l.b16 %v1241
    %v2057 = vpack.c.b16 %v2050, %v2049
    %v2058 = vpack.c.b16 %v2052, %v2051
    %v2059 = vpack.c.b16 %v2054, %v2053
    %v2060 = vpack.c.b16 %v2056, %v2055
    %v2066 = vsel %vm987, %v2035, 0
    %v2069 = vsel %vm987, %v2036, 0
    %2071 = vmatprep.subr.bf16.mxu0 0
    %2072 = vmatpush1.bf16.msra.mxu0 %v2057
    %2073 = vmatprep.subr.bf16.mxu0 0
    %2074 = vmatpush1.bf16.msra.mxu0 %v2058
    %2075 = vmatprep.subr.bf16.mxu0 0
    %2076 = vmatpush1.bf16.msra.mxu0 %v2059
    %2077 = vmatprep.subr.bf16.mxu0 0
    %2078 = vmatpush1.bf16.msra.mxu0 %v2060
    %2079 = vmatprep.subr.bf16.mxu0 0
    %2080 = vmatpush1.bf16.msra.mxu0 0
    %2081 = vmatprep.subr.bf16.mxu0 0
    %2082 = vmatpush1.bf16.msra.mxu0 0
    %2083 = vmatprep.subr.bf16.mxu0 0
    %2084 = vmatpush1.bf16.msra.mxu0 0
    %2085 = vmatprep.subr.bf16.mxu0 0
    %2086 = vmatpush1.bf16.msra.mxu0 0
    %2087 = vmatprep.subr.bf16.mxu0 0
    %2088 = vmatpush1.bf16.msra.mxu0 0
    %2089 = vmatprep.subr.bf16.mxu0 0
    %2090 = vmatpush1.bf16.msra.mxu0 0
    %2091 = vmatprep.subr.bf16.mxu0 0
    %2092 = vmatpush1.bf16.msra.mxu0 0
    %2093 = vmatprep.subr.bf16.mxu0 0
    %2094 = vmatpush1.bf16.msra.mxu0 0
    %2095 = vmatprep.subr.bf16.mxu0 0
    %2096 = vmatpush1.bf16.msra.mxu0 0
    %2097 = vmatprep.subr.bf16.mxu0 0
    %2098 = vmatpush1.bf16.msra.mxu0 0
    %2099 = vmatprep.subr.bf16.mxu0 0
    %2100 = vmatpush1.bf16.msra.mxu0 0
    %2101 = vmatprep.subr.bf16.mxu0 0
    %2102 = vmatpush1.bf16.msra.mxu0 0
    %2103 = vmatprep.mubr.bf16.mxu0 0
    %2104 = vmatmul.mubr.bf16.gmra.mrb[0].mxu0 %v2066
    %v2105 = vpop.f32.mrb[0].mxu0
    %v2106 = vadd.f32 %v2040, %v2105
    %v2107 = vpop.f32.mrb[0].mxu0
    %v2108 = vpop.f32.mrb[0].mxu0
    %v2109 = vadd.f32 %v2040, %v2108
    %v2110 = vpop.f32.mrb[0].mxu0
    %2111 = vmatprep.mubr.bf16.mxu0 0
    %2112 = vmatmul.mubr.bf16.gmra.mrb[0].mxu0 %v2069
    %v2113 = vpop.f32.mrb[0].mxu0
    %v2114 = vadd.f32 %v2040, %v2113
    %v2115 = vpop.f32.mrb[0].mxu0
    %v2116 = vpop.f32.mrb[0].mxu0
    %v2117 = vadd.f32 %v2040, %v2116
    %v2118 = vpop.f32.mrb[0].mxu0
    %2119 = vdwg.mxu0
    %v2120 = vadd.f32 %v1952, %v2106
    %v2121 = vadd.f32 %v1953, %v2109
    %v2122 = vadd.f32 %v1954, %v2114
    %v2123 = vadd.f32 %v1955, %v2117
    %v2124 = vsel %vm167, %v2120, 0.0
    %2125 = vadd.xlane.f32.xlu0 %v2124
    %v2126 = vpop.xlane.xlu0 %2125
    %v2127 = vsel %vm167, %v2121, 0.0
    %2128 = vadd.xlane.f32.xlu0 %v2127
    %v2129 = vpop.xlane.xlu0 %2128
    %v2130 = vsel %vm167, %v2122, 0.0
    %2131 = vadd.xlane.f32.xlu0 %v2130
    %v2132 = vpop.xlane.xlu0 %2131
    %v2133 = vsel %vm167, %v2123, 0.0
    %2134 = vadd.xlane.f32.xlu0 %v2133
    %v2135 = vpop.xlane.xlu0 %2134
    %v2136 = vmul.f32 %v2126, %v797
    %v2137 = vmul.f32 %v2129, %v797
    %v2138 = vmul.f32 %v2132, %v797
    %v2139 = vmul.f32 %v2135, %v797
    %v2140 = vsub.f32 %v2120, %v2136
    %v2141 = vsub.f32 %v2121, %v2137
    %v2142 = vsub.f32 %v2122, %v2138
    %v2143 = vsub.f32 %v2123, %v2139
    %v2144 = vmul.f32 %v2140, %v2140
    %v2145 = vmul.f32 %v2141, %v2141
    %v2146 = vmul.f32 %v2142, %v2142
    %v2147 = vmul.f32 %v2143, %v2143
    %v2148 = vsel %vm167, %v2144, 0.0
    %2149 = vadd.xlane.f32.xlu0 %v2148
    %v2150 = vpop.xlane.xlu0 %2149
    %v2151 = vsel %vm167, %v2145, 0.0
    %2152 = vadd.xlane.f32.xlu0 %v2151
    %v2153 = vpop.xlane.xlu0 %2152
    %v2154 = vsel %vm167, %v2146, 0.0
    %2155 = vadd.xlane.f32.xlu0 %v2154
    %v2156 = vpop.xlane.xlu0 %2155
    %v2157 = vsel %vm167, %v2147, 0.0
    %2158 = vadd.xlane.f32.xlu0 %v2157
    %v2159 = vpop.xlane.xlu0 %2158
    %v2160 = vmul.f32 %v2150, %v797
    %v2161 = vmul.f32 %v2153, %v797
    %v2162 = vmul.f32 %v2156, %v797
    %v2163 = vmul.f32 %v2159, %v797
    %v2164 = vadd.f32 %v2160, 1e-05
    %v2165 = vadd.f32 %v2161, 1e-05
    %v2166 = vadd.f32 %v2162, 1e-05
    %v2167 = vadd.f32 %v2163, 1e-05
    %v2168 = vrsqrt.pop %v2164
    %v2169 = vrsqrt.pop %v2165
    %v2170 = vrsqrt.pop %v2166
    %v2171 = vrsqrt.pop %v2167
    %v2172 = vmul.f32 %v2140, %v2168
    %v2173 = vmul.f32 %v2141, %v2169
    %v2174 = vmul.f32 %v2142, %v2170
    %v2175 = vmul.f32 %v2143, %v2171
    %v2176 = vlaneseq
    %v2177 = vshrl.u32 %v2176, 7
    %v2178 = vsub.s32 4, %v2177
    %v2179 = vrot.slane %v1247, %v2178
    %v2180 = vmul.f32 %v2172, %v2179
    %v2181 = vmul.f32 %v2173, %v2179
    %v2182 = vmul.f32 %v2174, %v2179
    %v2183 = vmul.f32 %v2175, %v2179
    %v2184 = vlaneseq
    %v2185 = vshrl.u32 %v2184, 7
    %v2186 = vsub.s32 5, %v2185
    %v2187 = vrot.slane %v1247, %v2186
    %v2188 = vadd.f32 %v2180, %v2187
    %v2189 = vadd.f32 %v2181, %v2187
    %v2190 = vadd.f32 %v2182, %v2187
    %v2191 = vadd.f32 %v2183, %v2187
    %v2192 = vmul.f32 %v2188, %v857
    %v2193 = vmul.f32 %v2189, %v862
    %v2194 = vmul.f32 %v2190, %v867
    %v2195 = vmul.f32 %v2191, %v872
    %2197 = vset.pattern.permute.xlu0 0
    %2198 = vperm.xlu0 %2197, %v1247
    %v2199 = vpop.permute.xlu0 %2198
    %v2200 = vrot.slane %v1247, 6
    %v2201 = vrot.slane %v2199, 7
    %v2203 = vsel %vm167, %v2200, 0
    %v2206 = vsel %vm167, %v2192, 0
    %v2209 = vsel %vm167, %v2193, 0
    %v2212 = vsel %vm167, %v2194, 0
    %v2215 = vsel %vm167, %v2195, 0
    %2217 = vmatprep.subr.mxu0 0.0
    %2218 = vmatpush1.xpose.msra.mxu0 %v2206
    %2219 = vmatprep.subr.mxu0 0.0
    %2220 = vmatpush1.xpose.msra.mxu0 %v2209
    %2221 = vmatprep.subr.mxu0 0.0
    %2222 = vmatpush1.xpose.msra.mxu0 %v2212
    %2223 = vmatprep.subr.mxu0 0.0
    %2224 = vmatpush1.xpose.msra.mxu0 %v2215
    %2225 = vmatprep.subr.mxu0 0.0
    %2226 = vmatpush1.xpose.msra.mxu0 0.0
    %2227 = vmatprep.subr.mxu0 0.0
    %2228 = vmatpush1.xpose.msra.mxu0 0.0
    %2229 = vmatprep.subr.mxu0 0.0
    %2230 = vmatpush1.xpose.msra.mxu0 0.0
    %2231 = vmatprep.subr.mxu0 0.0
    %2232 = vmatpush1.xpose.msra.mxu0 0.0
    %2233 = vmatprep.subr.mxu0 0.0
    %2234 = vmatpush1.xpose.msra.mxu0 0.0
    %2235 = vmatprep.subr.mxu0 0.0
    %2236 = vmatpush1.xpose.msra.mxu0 0.0
    %2237 = vmatprep.subr.mxu0 0.0
    %2238 = vmatpush1.xpose.msra.mxu0 0.0
    %2239 = vmatprep.subr.mxu0 0.0
    %2240 = vmatpush1.xpose.msra.mxu0 0.0
    %2241 = vmatprep.subr.mxu0 0.0
    %2242 = vmatpush1.xpose.msra.mxu0 0.0
    %2243 = vmatprep.subr.mxu0 0.0
    %2244 = vmatpush1.xpose.msra.mxu0 0.0
    %2245 = vmatprep.subr.mxu0 0.0
    %2246 = vmatpush1.xpose.msra.mxu0 0.0
    %2247 = vmatprep.subr.mxu0 0.0
    %2248 = vmatpush1.xpose.msra.mxu0 0.0
    %2249 = vmatprep.subr.mxu0 0.0
    %2250 = vmatpush1.xpose.msra.mxu0 0.0
    %2251 = vmatprep.subr.mxu0 0.0
    %2252 = vmatpush1.xpose.msra.mxu0 0.0
    %2253 = vmatprep.subr.mxu0 0.0
    %2254 = vmatpush1.xpose.msra.mxu0 0.0
    %2255 = vmatprep.subr.mxu0 0.0
    %2256 = vmatpush1.xpose.msra.mxu0 0.0
    %2257 = vmatprep.subr.mxu0 0.0
    %2258 = vmatpush1.xpose.msra.mxu0 0.0
    %2259 = vmatprep.subr.mxu0 0.0
    %2260 = vmatpush1.xpose.msra.mxu0 0.0
    %2261 = vmatprep.subr.mxu0 0.0
    %2262 = vmatpush1.xpose.msra.mxu0 0.0
    %2263 = vmatprep.subr.mxu0 0.0
    %2264 = vmatpush1.xpose.msra.mxu0 0.0
    %2265 = vmatprep.subr.mxu0 0.0
    %2266 = vmatpush1.xpose.msra.mxu0 0.0
    %2267 = vmatprep.subr.mxu0 0.0
    %2268 = vmatpush1.xpose.msra.mxu0 0.0
    %2269 = vmatprep.subr.mxu0 0.0
    %2270 = vmatpush1.xpose.msra.mxu0 0.0
    %2271 = vmatprep.subr.mxu0 0.0
    %2272 = vmatpush1.xpose.msra.mxu0 0.0
    %2273 = vmatprep.subr.mxu0 0.0
    %2274 = vmatpush1.xpose.msra.mxu0 0.0
    %2275 = vmatprep.subr.mxu0 0.0
    %2276 = vmatpush1.xpose.msra.mxu0 0.0
    %2277 = vmatprep.subr.mxu0 0.0
    %2278 = vmatpush1.xpose.msra.mxu0 0.0
    %2279 = vmatprep.subr.mxu0 0.0
    %2280 = vmatpush1.xpose.msra.mxu0 0.0
    %2281 = vmatprep.mubr.f32.mxu0 0.0
    %2282 = vmatmul.mubr.f32.gmra.mrb[0].mxu0 %v2203
    %v2283 = vpop.f32.mrb[0].mxu0
    %v2284 = vadd.f32 %v2201, %v2283
    %v2285 = vpop.f32.mrb[0].mxu0
    %2286 = vdwg.mxu0
    %v2287 = vmul.f32 %v2284, %v77
    %2288 = vst.msk [vmem:[%s15] sm:$0x1] %vm1212, %v2287
    %v2289 = vld [vmem:[%s2] sm:$0xff]
    %v2290 = vld [vmem:[%s2 + $0x8] sm:$0xff]
    %v2291 = vld [vmem:[%s2 + $0x10] sm:$0xff]
    %v2292 = vld [vmem:[%s2 + $0x18] sm:$0xff]
    %v2293 = vadd.f32 %v54, %v2289
    %v2294 = vadd.f32 %v55, %v2290
    %v2295 = vadd.f32 %v56, %v2291
    %v2296 = vadd.f32 %v57, %v2292
    %v2297 = vld [vmem:[%s3] sm:$0xff]
    %v2298 = vld [vmem:[%s3 + $0x8] sm:$0xff]
    %v2299 = vld [vmem:[%s3 + $0x10] sm:$0xff]
    %v2300 = vld [vmem:[%s3 + $0x18] sm:$0xff]
    %v2301 = vadd.f32 %v2293, %v2297
    %v2302 = vadd.f32 %v2294, %v2298
    %v2303 = vadd.f32 %v2295, %v2299
    %v2304 = vadd.f32 %v2296, %v2300
    %2305 = vst.msk [vmem:[#allocation2] sm:$0xff] %vm167, %v2301
    %2306 = vst.msk [vmem:[#allocation2 + $0x8] sm:$0xff] %vm167, %v2302
    %2307 = vst.msk [vmem:[#allocation2 + $0x10] sm:$0xff] %vm167, %v2303
    %2308 = vst.msk [vmem:[#allocation2 + $0x18] sm:$0xff] %vm167, %v2304
    // Predicated region
    $region58: #{variance_adaptor_forward.3} parent=1 // pred_check
      _
    $region59: #{variance_adaptor_forward.3} parent=1 // pred_check_branch
      %2310 = sbr.rel (0) target = $region61
    $region60: #{variance_adaptor_forward.3} parent=1 // pred_region
      _
    $region61: #{variance_adaptor_forward.3} parent=1 // pred_fallthru
      _
    // Predicated region
    $region62: #{variance_adaptor_forward.3} parent=1 // pred_check
      _
    $region63: #{variance_adaptor_forward.3} parent=1 // pred_check_branch
      %2312 = sbr.rel (0) target = $region65
    $region64: #{variance_adaptor_forward.3} parent=1 // pred_region
      _
    $region65: #{variance_adaptor_forward.3} parent=1 // pred_fallthru
      _
    // Predicated region
    $region66: #{variance_adaptor_forward.3} parent=1 // pred_check
      _
    $region67: #{variance_adaptor_forward.3} parent=1 // pred_check_branch
      %2314 = sbr.rel (0) target = $region69
    $region68: #{variance_adaptor_forward.3} parent=1 // pred_region
      %s2316 = ssub.s32 512, 512
      %2317 = vsyncadd [#allocation3], %s2316
      %s2318 = sshll.u32 [#allocation2], 4
      %s2319 = int_to_ptr.vmem [resolvable:$true] %s2318
      %2324 = dma.vmem_to_hbm [thread:$0]  %s2319, 512, %s16, [#allocation3], 128, 128, 8
    $region69: #{variance_adaptor_forward.3} parent=1 // pred_fallthru
      _
    // Predicated region
    $region70: #{variance_adaptor_forward.3} parent=1 // pred_check
      _
    $region71: #{variance_adaptor_forward.3} parent=1 // pred_check_branch
      %2326 = sbr.rel (0) target = $region73
    $region72: #{variance_adaptor_forward.3} parent=1 // pred_region
      _
    $region73: #{variance_adaptor_forward.3} parent=1 // pred_fallthru
      _
    // Predicated region
    $region74: #{variance_adaptor_forward.3} parent=1 // pred_check
      _
    $region75: #{variance_adaptor_forward.3} parent=1 // pred_check_branch
      %2328 = sbr.rel (0) target = $region77
    $region76: #{variance_adaptor_forward.3} parent=1 // pred_region
      _
    $region77: #{variance_adaptor_forward.3} parent=1 // pred_fallthru
      _
    // Predicated region
    $region78: #{variance_adaptor_forward.3} parent=1 // pred_check
      _
    $region79: #{variance_adaptor_forward.3} parent=1 // pred_check_branch
      %2330 = sbr.rel (0) target = $region81
    $region80: #{variance_adaptor_forward.3} parent=1 // pred_region
      %2331 = dma.done [#allocation3], 512
    $region81: #{variance_adaptor_forward.3} parent=1 // pred_fallthru
      _
    %2332 = vsyncpa [#allocation3], 1

</llo_original>
